<compile_context>
chip_gen: v7x
topology: tpu7x:2x2x1
jax: 0.10.0
libtpu: 0.0.40
codegen_flags: <defaults>
</compile_context>

<pallas_src>
import jax
import jax.numpy as jnp
from jax.experimental import pallas as pl
from jax.experimental.pallas import tpu as pltpu

LANE = 128


# ----------------------------- Pallas kernel -------------------------------

def _residual_fused_kernel(lhs_ref, w1_ref, b1_ref, w2_ref, wd_ref, b2_ref,
                           o_ref):
    """conv1(all shifts)+BN+ReLU, conv2+BN, down-sample conv+BN, skip, ReLU."""
    lhs = lhs_ref[...]                                         # (tm, KPACK) bf16
    # Skip path: small-K matmul off the shared LHS (down-sample lanes). Issues
    # while the longer conv1 / conv2 matmuls fill the MXU pipeline.
    acc = jnp.dot(lhs, wd_ref[...], preferred_element_type=jnp.float32)
    # conv1 (+ folded BN) for all S shifts in ONE matmul (block-diagonal w1),
    # then bias + ReLU + bf16 cast, kept on-chip.
    h = jnp.dot(lhs, w1_ref[...], preferred_element_type=jnp.float32)
    h = jnp.maximum(h + b1_ref[...], 0.0).astype(w2_ref.dtype)  # (tm, S*F) bf16
    # conv2 (+ folded BN) as a single long-K (S*F) matmul.
    acc = acc + jnp.dot(h, w2_ref[...], preferred_element_type=jnp.float32)
    # Single epilogue: combined conv2 + down-sample bias, final ReLU.
    o_ref[...] = jnp.maximum(acc + b2_ref[...], 0.0).astype(o_ref.dtype)


def _fused_call(lhs, w1_blk, b1t, w2, wd, b2, *, tile_m, out_dtype):
    m_pad, kpack = lhs.shape
    sf, f = w2.shape
    grid_m = m_pad // tile_m

    flops = 2 * m_pad * (kpack * sf + kpack * f + sf * f)
    bytes_accessed = (lhs.size * lhs.dtype.itemsize
                      + (w1_blk.size + w2.size + wd.size) * 2
                      + (b1t.size + b2.size) * 4
                      + m_pad * f * jnp.dtype(out_dtype).itemsize)

    return pl.pallas_call(
        _residual_fused_kernel,
        out_shape=jax.ShapeDtypeStruct((m_pad, f), out_dtype),
        grid=(grid_m,),
        in_specs=[
            pl.BlockSpec((tile_m, kpack), lambda m: (m, 0)),   # packed patches
            pl.BlockSpec((kpack, sf), lambda m: (0, 0)),       # block-diag w1
            pl.BlockSpec((1, sf), lambda m: (0, 0)),           # b1 (tiled S)
            pl.BlockSpec((sf, f), lambda m: (0, 0)),           # w2 (long K)
            pl.BlockSpec((kpack, f), lambda m: (0, 0)),        # wd (padded rows)
            pl.BlockSpec((1, f), lambda m: (0, 0)),            # fused bias
        ],
        out_specs=pl.BlockSpec((tile_m, f), lambda m: (m, 0)),
        compiler_params=pltpu.CompilerParams(
            dimension_semantics=("parallel",),
            vmem_limit_bytes=32 * 1024 * 1024),
        cost_estimate=pl.CostEstimate(flops=flops, transcendentals=0,
                                      bytes_accessed=bytes_accessed),
    )(lhs, w1_blk, b1t, w2, wd, b2)


# ------------------------------- glue (JAX) --------------------------------

def _round_up(x, m):
    return pl.cdiv(x, m) * m


def _pick_tile_m(m, target=512):
    """Row tile: as large as `target`, multiple of 8, minimal padding, and
    >= 2 grid steps whenever there is enough work (keeps the single 'parallel'
    grid axis splittable across v7x's two TensorCores)."""
    m8 = _round_up(max(m, 8), 8)
    if m8 <= 16:
        return m8
    steps = max(2, pl.cdiv(m8, target))
    return _round_up(pl.cdiv(m8, steps), 8)


def _fold_bn(w2d, conv_bias, gamma, beta, mean, var, eps=1e-5):
    """Fold eval-mode BN into (weight, bias) so y = x @ w_eff + b_eff."""
    scale = gamma / jnp.sqrt(var + eps)
    return w2d * scale[None, :], ((conv_bias - mean) * scale + beta).reshape(1, -1)


def residual_layer(x_nchw, params, kernel_size=(2, 2), tile_m=512,
                   out_dtype=jnp.float32):
    kh, kw = kernel_size
    dkh, dkw = kh * 2 - 1, kw * 2 - 1
    S = kh * kw
    N, Cin, H, W = x_nchw.shape
    F = params["conv1"]["w"].shape[-1]
    K1 = kh * kw * Cin
    Kd = dkh * dkw * Cin

    Ho2, Wo2 = H - dkh + 1, W - dkw + 1            # final (conv2 == down) grid
    M2 = N * Ho2 * Wo2

    x = jnp.transpose(x_nchw, (0, 2, 3, 1)).astype(jnp.float32)   # NCHW -> NHWC

    # Every x offset any path needs lies inside the (dkh, dkw) down-sample
    # window.  Slice each offset once and pack a single lane-axis LHS:
    #   lanes [0 : S*K1)       = the S conv1 shift patches (one per conv2 tap)
    #   lanes [S*K1 : S*K1+Kd) = the down-sample patch
    win = {(iy, ix): x[:, iy:iy + Ho2, ix:ix + Wo2, :]
           for iy in range(dkh) for ix in range(dkw)}
    parts = [win[(dy + ky, dx + kx)]
             for dy in range(kh) for dx in range(kw)        # conv2 tap / shift
             for ky in range(kh) for kx in range(kw)]       # conv1 tap
    parts += [win[(iy, ix)] for iy in range(dkh) for ix in range(dkw)]  # down
    lhs = jnp.concatenate(parts, axis=-1).reshape(M2, S * K1 + Kd)

    # Fold eval-mode BN into the conv weights / biases.
    c1, c2, cd = params["conv1"], params["conv2"], params["down"]
    w1, b1 = _fold_bn(c1["w"].reshape(K1, F), c1["b"], c1["gamma"],
                      c1["beta"], c1["mean"], c1["var"])
    w2, b2 = _fold_bn(c2["w"].reshape(S * F, F), c2["b"], c2["gamma"],
                      c2["beta"], c2["mean"], c2["var"])
    wd, bd = _fold_bn(cd["w"].reshape(Kd, F), cd["b"], cd["gamma"],
                      cd["beta"], cd["mean"], cd["var"])

    kpack = _round_up(S * K1 + Kd, LANE)
    # Block-diagonal conv1 weight: lane block s of the LHS hits column block s;
    # down-sample / pad lanes see zero rows.
    w1_blk = jnp.zeros((kpack, S * F), jnp.float32)
    for s in range(S):
        w1_blk = w1_blk.at[s * K1:(s + 1) * K1, s * F:(s + 1) * F].set(w1)
    b1t = jnp.tile(b1, (1, S))                               # (1, S*F)
    # Down-sample weight lives on the down-sample lanes only.
    wd_pad = jnp.zeros((kpack, F), jnp.float32)
    wd_pad = wd_pad.at[S * K1:S * K1 + Kd, :].set(wd)
    b2d = b2 + bd                                            # fused epilogue bias

    # Pad rows to the row tile, lanes to kpack; bf16 matmul inputs, f32 accum.
    tm = _pick_tile_m(M2, tile_m)
    m_pad = _round_up(M2, tm)
    lhs = jnp.pad(lhs, ((0, m_pad - M2), (0, kpack - lhs.shape[1])))
    lhs = lhs.astype(jnp.bfloat16)

    out = _fused_call(lhs,
                      w1_blk.astype(jnp.bfloat16),
                      b1t.astype(jnp.float32),
                      w2.astype(jnp.bfloat16),
                      wd_pad.astype(jnp.bfloat16),
                      b2d.astype(jnp.float32),
                      tile_m=tm, out_dtype=out_dtype)
    out = out[:M2].astype(jnp.float32).reshape(N, Ho2, Wo2, F)
    return jnp.transpose(out, (0, 3, 1, 2))                  # NHWC -> NCHW


# ------------------------------ params / ref --------------------------------

def _conv_bn_params(keys, kh, kw, cin, cout):
    return dict(
        w=0.05 * jax.random.normal(keys[0], (kh, kw, cin, cout), jnp.float32),  # HWIO
        b=0.05 * jax.random.normal(keys[1], (cout,), jnp.float32),
        gamma=1.0 + 0.1 * jax.random.normal(keys[2], (cout,), jnp.float32),
        beta=0.1 * jax.random.normal(keys[3], (cout,), jnp.float32),
        mean=0.1 * jax.random.normal(keys[4], (cout,), jnp.float32),
        var=jax.random.uniform(keys[5], (cout,), jnp.float32, 0.5, 1.5),
    )


def init_params(key, in_channels, filter_size=256, kernel_size=(2, 2)):
    kh, kw = kernel_size
    dkh, dkw = kh * 2 - 1, kw * 2 - 1
    keys = jax.random.split(key, 18)
    return dict(
        conv1=_conv_bn_params(keys[0:6], kh, kw, in_channels, filter_size),
        conv2=_conv_bn_params(keys[6:12], kh, kw, filter_size, filter_size),
        down=_conv_bn_params(keys[12:18], dkh, dkw, in_channels, filter_size),
    )


def _ref_forward(x_nchw, params, kernel_size=(2, 2), eps=1e-5):
    """Pure-JAX reference (same eval-mode BN semantics)."""
    def conv_bn(x, p, relu):
        y = jax.lax.conv_general_dilated(
            x, p["w"], window_strides=(1, 1), padding="VALID",
            dimension_numbers=("NHWC", "HWIO", "NHWC"))
        y = y + p["b"]
        y = (y - p["mean"]) / jnp.sqrt(p["var"] + eps) * p["gamma"] + p["beta"]
        return jnp.maximum(y, 0.0) if relu else y

    x = jnp.transpose(x_nchw, (0, 2, 3, 1))
    out = conv_bn(conv_bn(x, params["conv1"], True), params["conv2"], False)
    out = out + conv_bn(x, params["down"], False)
    return jnp.transpose(jnp.maximum(out, 0.0), (0, 3, 1, 2))


if __name__ == "__main__":
    key = jax.random.PRNGKey(0)
    kx, kp = jax.random.split(key)
    N, Cin, H, W = 2, 4, 16, 16
    filter_size = 256
    x = jax.random.normal(kx, (N, Cin, H, W), jnp.float32)
    params = init_params(kp, in_channels=Cin, filter_size=filter_size,
                         kernel_size=(2, 2))

    fwd = jax.jit(residual_layer)
    out = jax.block_until_ready(fwd(x, params))
    assert out.shape == (N, filter_size, H - 2, W - 2), out.shape

    ref = _ref_forward(x, params)
    if not jnp.allclose(out, ref, rtol=2e-2, atol=2e-2):
        max_err = jnp.max(jnp.abs(out - ref))
        raise AssertionError(
            f"Pallas output does not match JAX reference (max abs err {max_err})")

    print("KERNEL_OK")
</pallas_src>

<mosaic_0001>
module attributes {stable_mosaic.version = 11 : i64} {
  func.func @_residual_fused_kernel(%arg0: i32, %arg1: memref<200x128xbf16, #tpu.memory_space<vmem>>, %arg2: memref<128x1024xbf16, #tpu.memory_space<vmem>>, %arg3: memref<1x1024xf32, #tpu.memory_space<vmem>>, %arg4: memref<1024x256xbf16, #tpu.memory_space<vmem>>, %arg5: memref<128x256xbf16, #tpu.memory_space<vmem>>, %arg6: memref<1x256xf32, #tpu.memory_space<vmem>>, %arg7: memref<200x256xf32, #tpu.memory_space<vmem>>) attributes {dimension_semantics = [#tpu.dimension_semantics<parallel>], iteration_bounds = array<i64: 2>, scalar_prefetch = 0 : i64, scratch_operands = 0 : i64, tpu.core_type = #tpu.core_type<tc>, window_params = [{transform_indices = @transform_0, window_bounds = array<i64: 200, 128>}, {pipeline_mode = #tpu.pipeline_mode<synchronous>, transform_indices = @transform_1, window_bounds = array<i64: 128, 1024>}, {pipeline_mode = #tpu.pipeline_mode<synchronous>, transform_indices = @transform_2, window_bounds = array<i64: 1, 1024>}, {pipeline_mode = #tpu.pipeline_mode<synchronous>, transform_indices = @transform_3, window_bounds = array<i64: 1024, 256>}, {pipeline_mode = #tpu.pipeline_mode<synchronous>, transform_indices = @transform_4, window_bounds = array<i64: 128, 256>}, {pipeline_mode = #tpu.pipeline_mode<synchronous>, transform_indices = @transform_5, window_bounds = array<i64: 1, 256>}, {transform_indices = @transform_6, window_bounds = array<i64: 200, 256>}]} {
    %c0 = arith.constant 0 : index
    %c0_0 = arith.constant 0 : index
    %0 = vector.load %arg1[%c0, %c0_0] : memref<200x128xbf16, #tpu.memory_space<vmem>>, vector<200x128xbf16>
    %c0_1 = arith.constant 0 : index
    %c0_2 = arith.constant 0 : index
    %1 = vector.load %arg5[%c0_1, %c0_2] : memref<128x256xbf16, #tpu.memory_space<vmem>>, vector<128x256xbf16>
    %cst = arith.constant dense<0.000000e+00> : vector<200x256xf32>
    %2 = tpu.matmul %0, %1, %cst {dimension_numbers = #tpu.dot_dimension_numbers<[1], [0], [0], [1], [0, 0, 1, 1], [], []>} : vector<200x128xbf16>, vector<128x256xbf16>, vector<200x256xf32> -> vector<200x256xf32>
    %c0_3 = arith.constant 0 : index
    %c0_4 = arith.constant 0 : index
    %3 = vector.load %arg2[%c0_3, %c0_4] : memref<128x1024xbf16, #tpu.memory_space<vmem>>, vector<128x1024xbf16>
    %cst_5 = arith.constant dense<0.000000e+00> : vector<200x1024xf32>
    %4 = tpu.matmul %0, %3, %cst_5 {dimension_numbers = #tpu.dot_dimension_numbers<[1], [0], [0], [1], [0, 0, 1, 1], [], []>} : vector<200x128xbf16>, vector<128x1024xbf16>, vector<200x1024xf32> -> vector<200x1024xf32>
    %c0_6 = arith.constant 0 : index
    %c0_7 = arith.constant 0 : index
    %5 = vector.load %arg3[%c0_6, %c0_7] : memref<1x1024xf32, #tpu.memory_space<vmem>>, vector<1x1024xf32>
    %6 = vector.broadcast %5 : vector<1x1024xf32> to vector<200x1024xf32>
    %7 = arith.addf %4, %6 : vector<200x1024xf32>
    %cst_8 = arith.constant 0.000000e+00 : f32
    %8 = vector.broadcast %cst_8 : f32 to vector<200x1024xf32>
    %9 = arith.maximumf %7, %8 : vector<200x1024xf32>
    %10 = arith.truncf %9 : vector<200x1024xf32> to vector<200x1024xbf16>
    %c0_9 = arith.constant 0 : index
    %c0_10 = arith.constant 0 : index
    %11 = vector.load %arg4[%c0_9, %c0_10] : memref<1024x256xbf16, #tpu.memory_space<vmem>>, vector<1024x256xbf16>
    %cst_11 = arith.constant dense<0.000000e+00> : vector<200x256xf32>
    %12 = tpu.matmul %10, %11, %cst_11 {dimension_numbers = #tpu.dot_dimension_numbers<[1], [0], [0], [1], [0, 0, 1, 1], [], []>} : vector<200x1024xbf16>, vector<1024x256xbf16>, vector<200x256xf32> -> vector<200x256xf32>
    %13 = arith.addf %2, %12 : vector<200x256xf32>
    %c0_12 = arith.constant 0 : index
    %c0_13 = arith.constant 0 : index
    %14 = vector.load %arg6[%c0_12, %c0_13] : memref<1x256xf32, #tpu.memory_space<vmem>>, vector<1x256xf32>
    %15 = vector.broadcast %14 : vector<1x256xf32> to vector<200x256xf32>
    %16 = arith.addf %13, %15 : vector<200x256xf32>
    %cst_14 = arith.constant 0.000000e+00 : f32
    %17 = vector.broadcast %cst_14 : f32 to vector<200x256xf32>
    %18 = arith.maximumf %16, %17 : vector<200x256xf32>
    %c0_15 = arith.constant 0 : index
    %c0_16 = arith.constant 0 : index
    %19 = vector.load %arg7[%c0_15, %c0_16] : memref<200x256xf32, #tpu.memory_space<vmem>>, vector<200x256xf32>
    tpu.vector_store %arg7[%c0_15, %c0_16], %18 {strides = array<i32>} : memref<200x256xf32, #tpu.memory_space<vmem>>, vector<200x256xf32>,
    return
  }
  func.func @transform_0(%arg0: i32) -> (i32, i32) {
    %c0_i32 = arith.constant 0 : i32
    %c0_i32_0 = arith.constant 0 : i32
    return %arg0, %c0_i32 : i32, i32
  }
  func.func @transform_1(%arg0: i32) -> (i32, i32) {
    %c0_i32 = arith.constant 0 : i32
    %c0_i32_0 = arith.constant 0 : i32
    %c0_i32_1 = arith.constant 0 : i32
    return %c0_i32, %c0_i32_0 : i32, i32
  }
  func.func @transform_2(%arg0: i32) -> (i32, i32) {
    %c0_i32 = arith.constant 0 : i32
    %c0_i32_0 = arith.constant 0 : i32
    %c0_i32_1 = arith.constant 0 : i32
    return %c0_i32, %c0_i32_0 : i32, i32
  }
  func.func @transform_3(%arg0: i32) -> (i32, i32) {
    %c0_i32 = arith.constant 0 : i32
    %c0_i32_0 = arith.constant 0 : i32
    %c0_i32_1 = arith.constant 0 : i32
    return %c0_i32, %c0_i32_0 : i32, i32
  }
  func.func @transform_4(%arg0: i32) -> (i32, i32) {
    %c0_i32 = arith.constant 0 : i32
    %c0_i32_0 = arith.constant 0 : i32
    %c0_i32_1 = arith.constant 0 : i32
    return %c0_i32, %c0_i32_0 : i32, i32
  }
  func.func @transform_5(%arg0: i32) -> (i32, i32) {
    %c0_i32 = arith.constant 0 : i32
    %c0_i32_0 = arith.constant 0 : i32
    %c0_i32_1 = arith.constant 0 : i32
    return %c0_i32, %c0_i32_0 : i32, i32
  }
  func.func @transform_6(%arg0: i32) -> (i32, i32) {
    %c0_i32 = arith.constant 0 : i32
    %c0_i32_0 = arith.constant 0 : i32
    return %arg0, %c0_i32 : i32, i32
  }
}

</mosaic_0001>

<llo_original>
// kernel: residual_layer.1
$region0: #{residual_layer.1}
  #allocation0 [shape = 'u32[]', space=smem, size = 0x4, offset = 0x4, fixed_abs, tag = 'smem constant byte address 0x4 - core index']
  #allocation1 [shape = 'u32[144,128]{1,0:T(1,128)}', space=vmem, size = 0x12000, scoped, tag = 'internal scratch']
  %s0 = inlined_call_operand.vmem [shape: bf16[400,128], index: 0, kind: input, shape index: {}]
  %s1 = inlined_call_operand.vmem [shape: bf16[128,1024], index: 1, kind: input, shape index: {}]
  %s2 = inlined_call_operand.vmem [shape: f32[1,1024], index: 2, kind: input, shape index: {}]
  %s3 = inlined_call_operand.vmem [shape: bf16[1024,256], index: 3, kind: input, shape index: {}]
  %s4 = inlined_call_operand.vmem [shape: bf16[128,256], index: 4, kind: input, shape index: {}]
  %s5 = inlined_call_operand.vmem [shape: f32[1,256], index: 5, kind: input, shape index: {}]
  %s6 = inlined_call_operand.vmem [shape: f32[400,256], index: 6, kind: output, shape index: {}]
  %s7 = sld [smem:[#allocation0]]
  $region57: #{residual_layer.1} parent=0
    _
  %s9 = ssub.s32 1, %s7
  %s10 = scalar_select 0, %s9, %s7
  loop: start=0, step=1, limit=4
  $region2: #{residual_layer.1} parent=0 // loop_pre_header
    _
  $region3: #{residual_layer.1} parent=0 // loop_header
    %s12 = sphi 0, %s16
    %p13 = scmp.ge.s32.totalorder %s12, 4
    %s22 = sphi 0, %s24
    %s25 = sphi 0, %s22
    %s26 = sphi 0, %s25
    %s42 = sphi 0, %s26
    %s46 = sphi 0, %s46
    %s48 = sphi 0, %s46
    %s49 = sphi 0, %s48
    %s63 = sphi 0, %s49
    %s67 = sphi 0, %s67
    %s69 = sphi 0, %s67
    %s70 = sphi 0, %s69
    %s84 = sphi 0, %s70
    %s88 = sphi 0, %s88
    %s90 = sphi 0, %s88
    %s91 = sphi 0, %s90
    %s105 = sphi 0, %s91
    %s109 = sphi 0, %s109
    %s111 = sphi 0, %s109
    %s112 = sphi 0, %s111
    %s126 = sphi 0, %s112
    %s130 = sphi 0, %s130
    %s132 = sphi 0, %s130
    %s133 = sphi 0, %s132
    %s147 = sphi 0, %s133
    %s153 = sphi 0, %s155
    %s156 = sphi 0, %s153
    %s157 = sphi 0, %s156
    %s173 = sphi 0, %s157
  $region4: #{residual_layer.1} parent=0 // loop_header_branch
    %15 = sbr.rel (%p13) target = $region8
  $region5: #{residual_layer.1} parent=0 // loop_body
    %s17 = ssub.s32 %s12, 1
    %s18 = ssub.s32 %s12, 2
    %s19 = sadd.s32 %s12, 1
    %s20 = ssub.s32 %s12, %s19
    %p21 = scmp.eq.s32.totalorder %s20, 0
    %s23 = sadd.s32 %s22, 1
    %s24 = scalar_select %p21, %s22, %s23
    %p27 = pneg %p21
    %p28 = scmp.eq.s32.totalorder %s12, 1
    %p29 = por %p27, %p28
    %p30 = scmp.ne.s32.totalorder %s22, %s25
    %p31 = scmp.eq.s32.totalorder %s12, 0
    %p32 = por %p30, %p31
    %p33 = scmp.ne.s32.totalorder %s22, %s25
    %p34 = scmp.eq.s32.totalorder %s17, 1
    %p35 = por %p33, %p34
    %p36 = scmp.ne.s32.totalorder %s25, %s26
    %p37 = scmp.eq.s32.totalorder %s17, 0
    %p38 = por %p36, %p37
    %p39 = scmp.ne.s32.totalorder %s25, %s26
    %p40 = scmp.eq.s32.totalorder %s18, 1
    %p41 = por %p39, %p40
    %p43 = scmp.ne.s32.totalorder %s26, %s42
    %p44 = scmp.eq.s32.totalorder %s18, 0
    %p45 = por %p43, %p44
    %s47 = sadd.s32 %s46, 1
    %p50 = scmp.eq.s32.totalorder %s12, 1
    %p51 = scmp.ne.s32.totalorder %s46, %s48
    %p52 = scmp.eq.s32.totalorder %s12, 0
    %p53 = por %p51, %p52
    %p54 = scmp.ne.s32.totalorder %s46, %s48
    %p55 = scmp.eq.s32.totalorder %s17, 1
    %p56 = por %p54, %p55
    %p57 = scmp.ne.s32.totalorder %s48, %s49
    %p58 = scmp.eq.s32.totalorder %s17, 0
    %p59 = por %p57, %p58
    %p60 = scmp.ne.s32.totalorder %s48, %s49
    %p61 = scmp.eq.s32.totalorder %s18, 1
    %p62 = por %p60, %p61
    %p64 = scmp.ne.s32.totalorder %s49, %s63
    %p65 = scmp.eq.s32.totalorder %s18, 0
    %p66 = por %p64, %p65
    %s68 = sadd.s32 %s67, 1
    %p71 = scmp.eq.s32.totalorder %s12, 1
    %p72 = scmp.ne.s32.totalorder %s67, %s69
    %p73 = scmp.eq.s32.totalorder %s12, 0
    %p74 = por %p72, %p73
    %p75 = scmp.ne.s32.totalorder %s67, %s69
    %p76 = scmp.eq.s32.totalorder %s17, 1
    %p77 = por %p75, %p76
    %p78 = scmp.ne.s32.totalorder %s69, %s70
    %p79 = scmp.eq.s32.totalorder %s17, 0
    %p80 = por %p78, %p79
    %p81 = scmp.ne.s32.totalorder %s69, %s70
    %p82 = scmp.eq.s32.totalorder %s18, 1
    %p83 = por %p81, %p82
    %p85 = scmp.ne.s32.totalorder %s70, %s84
    %p86 = scmp.eq.s32.totalorder %s18, 0
    %p87 = por %p85, %p86
    %s89 = sadd.s32 %s88, 1
    %p92 = scmp.eq.s32.totalorder %s12, 1
    %p93 = scmp.ne.s32.totalorder %s88, %s90
    %p94 = scmp.eq.s32.totalorder %s12, 0
    %p95 = por %p93, %p94
    %p96 = scmp.ne.s32.totalorder %s88, %s90
    %p97 = scmp.eq.s32.totalorder %s17, 1
    %p98 = por %p96, %p97
    %p99 = scmp.ne.s32.totalorder %s90, %s91
    %p100 = scmp.eq.s32.totalorder %s17, 0
    %p101 = por %p99, %p100
    %p102 = scmp.ne.s32.totalorder %s90, %s91
    %p103 = scmp.eq.s32.totalorder %s18, 1
    %p104 = por %p102, %p103
    %p106 = scmp.ne.s32.totalorder %s91, %s105
    %p107 = scmp.eq.s32.totalorder %s18, 0
    %p108 = por %p106, %p107
    %s110 = sadd.s32 %s109, 1
    %p113 = scmp.eq.s32.totalorder %s12, 1
    %p114 = scmp.ne.s32.totalorder %s109, %s111
    %p115 = scmp.eq.s32.totalorder %s12, 0
    %p116 = por %p114, %p115
    %p117 = scmp.ne.s32.totalorder %s109, %s111
    %p118 = scmp.eq.s32.totalorder %s17, 1
    %p119 = por %p117, %p118
    %p120 = scmp.ne.s32.totalorder %s111, %s112
    %p121 = scmp.eq.s32.totalorder %s17, 0
    %p122 = por %p120, %p121
    %p123 = scmp.ne.s32.totalorder %s111, %s112
    %p124 = scmp.eq.s32.totalorder %s18, 1
    %p125 = por %p123, %p124
    %p127 = scmp.ne.s32.totalorder %s112, %s126
    %p128 = scmp.eq.s32.totalorder %s18, 0
    %p129 = por %p127, %p128
    %s131 = sadd.s32 %s130, 1
    %p134 = scmp.eq.s32.totalorder %s12, 1
    %p135 = scmp.ne.s32.totalorder %s130, %s132
    %p136 = scmp.eq.s32.totalorder %s12, 0
    %p137 = por %p135, %p136
    %p138 = scmp.ne.s32.totalorder %s130, %s132
    %p139 = scmp.eq.s32.totalorder %s17, 1
    %p140 = por %p138, %p139
    %p141 = scmp.ne.s32.totalorder %s132, %s133
    %p142 = scmp.eq.s32.totalorder %s17, 0
    %p143 = por %p141, %p142
    %p144 = scmp.ne.s32.totalorder %s132, %s133
    %p145 = scmp.eq.s32.totalorder %s18, 1
    %p146 = por %p144, %p145
    %p148 = scmp.ne.s32.totalorder %s133, %s147
    %p149 = scmp.eq.s32.totalorder %s18, 0
    %p150 = por %p148, %p149
    %s151 = ssub.s32 %s12, %s19
    %p152 = scmp.eq.s32.totalorder %s151, 0
    %s154 = sadd.s32 %s153, 1
    %s155 = scalar_select %p152, %s153, %s154
    %p158 = pneg %p152
    %p159 = scmp.eq.s32.totalorder %s12, 1
    %p160 = por %p158, %p159
    %p161 = scmp.ne.s32.totalorder %s153, %s156
    %p162 = scmp.eq.s32.totalorder %s12, 0
    %p163 = por %p161, %p162
    %p164 = scmp.ne.s32.totalorder %s153, %s156
    %p165 = scmp.eq.s32.totalorder %s17, 1
    %p166 = por %p164, %p165
    %p167 = scmp.ne.s32.totalorder %s156, %s157
    %p168 = scmp.eq.s32.totalorder %s17, 0
    %p169 = por %p167, %p168
    %p170 = scmp.ne.s32.totalorder %s156, %s157
    %p171 = scmp.eq.s32.totalorder %s18, 1
    %p172 = por %p170, %p171
    %p174 = scmp.ne.s32.totalorder %s157, %s173
    %p175 = scmp.eq.s32.totalorder %s18, 0
    %p176 = por %p174, %p175
    %p177 = scmp.le.s32.totalorder 1, %s12
    %p178 = scmp.lt.s32.totalorder %s12, 3
    %p179 = pnand %p177, %p178
    %p180 = pneg %p179
    // Predicated region
    $region9: #{residual_layer.1} parent=5 // pred_check
      _
    $region10: #{residual_layer.1} parent=5 // pred_check_branch
      %182 = sbr.rel (%p179) target = $region12
    $region11: #{residual_layer.1} parent=5 // pred_region
      %s183 = ssub.s32 %s12, 1
      // Predicated region
      $region13: #{residual_layer.1} parent=11 // pred_check
        %p184 = pneg %p59
      $region14: #{residual_layer.1} parent=11 // pred_check_branch
        %186 = sbr.rel (%p184) target = $region16
      $region15: #{residual_layer.1} parent=11 // pred_region
        _
      $region16: #{residual_layer.1} parent=11 // pred_fallthru
        _
      // Predicated region
      $region17: #{residual_layer.1} parent=11 // pred_check
        %p187 = pneg %p80
      $region18: #{residual_layer.1} parent=11 // pred_check_branch
        %189 = sbr.rel (%p187) target = $region20
      $region19: #{residual_layer.1} parent=11 // pred_region
        _
      $region20: #{residual_layer.1} parent=11 // pred_fallthru
        _
      // Predicated region
      $region21: #{residual_layer.1} parent=11 // pred_check
        %p190 = pneg %p101
      $region22: #{residual_layer.1} parent=11 // pred_check_branch
        %192 = sbr.rel (%p190) target = $region24
      $region23: #{residual_layer.1} parent=11 // pred_region
        _
      $region24: #{residual_layer.1} parent=11 // pred_fallthru
        _
      // Predicated region
      $region25: #{residual_layer.1} parent=11 // pred_check
        %p193 = pneg %p122
      $region26: #{residual_layer.1} parent=11 // pred_check_branch
        %195 = sbr.rel (%p193) target = $region28
      $region27: #{residual_layer.1} parent=11 // pred_region
        _
      $region28: #{residual_layer.1} parent=11 // pred_fallthru
        _
      // Predicated region
      $region29: #{residual_layer.1} parent=11 // pred_check
        %p196 = pneg %p143
      $region30: #{residual_layer.1} parent=11 // pred_check_branch
        %198 = sbr.rel (%p196) target = $region32
      $region31: #{residual_layer.1} parent=11 // pred_region
        _
      $region32: #{residual_layer.1} parent=11 // pred_fallthru
        _
    $region12: #{residual_layer.1} parent=5 // pred_fallthru
      _
    %p199 = scmp.lt.s32.totalorder %s12, 2
    // Predicated region
    $region33: #{residual_layer.1} parent=5 // pred_check
      %p200 = pneg %p199
    $region34: #{residual_layer.1} parent=5 // pred_check_branch
      %202 = sbr.rel (%p200) target = $region36
    $region35: #{residual_layer.1} parent=5 // pred_region
      // Predicated region
      $region37: #{residual_layer.1} parent=35 // pred_check
        %p203 = pneg %p32
      $region38: #{residual_layer.1} parent=35 // pred_check_branch
        %205 = sbr.rel (%p203) target = $region40
      $region39: #{residual_layer.1} parent=35 // pred_region
        %s206 = smul.u32 25, %s12
        %p207 = scmp.lt.s32.totalorder %s206, 49
        %s208 = scalar_select %p207, %s206, 49
        %s209 = smul.addr %s208, 4
        %s210 = scalar_lea.vmem %s0, %s209
        %s211 = smul.u32 25, %s12
      $region40: #{residual_layer.1} parent=35 // pred_fallthru
        _
    $region36: #{residual_layer.1} parent=5 // pred_fallthru
      _
    %p212 = scmp.le.s32.totalorder 1, %s12
    %p213 = scmp.lt.s32.totalorder %s12, 3
    %p214 = pnand %p212, %p213
    %p215 = pneg %p214
    // Predicated region
    $region41: #{residual_layer.1} parent=5 // pred_check
      _
    $region42: #{residual_layer.1} parent=5 // pred_check_branch
      %217 = sbr.rel (%p214) target = $region44
    $region43: #{residual_layer.1} parent=5 // pred_region
      %s218 = ssub.s32 %s12, 1
      %s219 = smul.u32 25, %s17
      %p220 = scmp.lt.s32.totalorder %s219, 49
      %s221 = scalar_select %p220, %s219, 49
      %s222 = smul.addr %s221, 4
      %s223 = scalar_lea.vmem %s0, %s222
      %p224 = pneg %p38
      %p225 = pneg %p35
      %p226 = pneg %p59
      %p227 = pneg %p56
      %p228 = pneg %p80
      %p229 = pneg %p77
      %p230 = pneg %p101
      %p231 = pneg %p98
      %p232 = pneg %p122
      %p233 = pneg %p119
      %p234 = pneg %p143
      %p235 = pneg %p140
      %p236 = pneg %p169
      %p237 = pneg %p166
      %s238 = smul.u32 25, %s17
      %p239 = scmp.lt.s32.totalorder %s238, 49
      %s240 = scalar_select %p239, %s238, 49
      %s241 = smul.addr %s240, 2
      %s242 = smul.addr %s241, 8
      %s243 = scalar_lea.vmem %s6, %s242
      %s244 = smul.u32 25, %s17
      %p245 = scmp.lt.s32.totalorder %s244, 49
      %s246 = scalar_select %p245, %s244, 49
      %s247 = smul.addr %s246, 4
      %s248 = scalar_lea.vmem %s0, %s247
      %s249 = smul.u32 25, %s17
      %s250 = smul.u32 25, %s17
      %p251 = scmp.lt.s32.totalorder %s250, 49
      %s252 = scalar_select %p251, %s250, 49
      %s253 = smul.addr %s252, 2
      %s254 = smul.addr %s253, 8
      %s255 = scalar_lea.vmem %s6, %s254
      %s256 = smul.u32 25, %s17
      %v258 = vld [vmem:[%s248] sm:$0xf]
      %v259 = vld [vmem:[%s248 + $0x4] sm:$0xf]
      %v260 = vld [vmem:[%s248 + $0x8] sm:$0xf]
      %v261 = vld [vmem:[%s248 + $0xc] sm:$0xf]
      %v262 = vld [vmem:[%s248 + $0x10] sm:$0xf]
      %v263 = vld [vmem:[%s248 + $0x14] sm:$0xf]
      %v264 = vld [vmem:[%s248 + $0x18] sm:$0xf]
      %v265 = vld [vmem:[%s248 + $0x1c] sm:$0xf]
      %v266 = vld [vmem:[%s248 + $0x20] sm:$0xf]
      %v267 = vld [vmem:[%s248 + $0x24] sm:$0xf]
      %v268 = vld [vmem:[%s248 + $0x28] sm:$0xf]
      %v269 = vld [vmem:[%s248 + $0x2c] sm:$0xf]
      %v270 = vld [vmem:[%s248 + $0x30] sm:$0xf]
      %v271 = vld [vmem:[%s248 + $0x34] sm:$0xf]
      %v272 = vld [vmem:[%s248 + $0x38] sm:$0xf]
      %v273 = vld [vmem:[%s248 + $0x3c] sm:$0xf]
      %v274 = vld [vmem:[%s248 + $0x40] sm:$0xf]
      %v275 = vld [vmem:[%s248 + $0x44] sm:$0xf]
      %v276 = vld [vmem:[%s248 + $0x48] sm:$0xf]
      %v277 = vld [vmem:[%s248 + $0x4c] sm:$0xf]
      %v278 = vld [vmem:[%s248 + $0x50] sm:$0xf]
      %v279 = vld [vmem:[%s248 + $0x54] sm:$0xf]
      %v280 = vld [vmem:[%s248 + $0x58] sm:$0xf]
      %v281 = vld [vmem:[%s248 + $0x5c] sm:$0xf]
      %v282 = vld [vmem:[%s248 + $0x60] sm:$0xf]
      %v283 = vld [vmem:[%s4] sm:$0xff]
      %v284 = vld [vmem:[%s4 + $0x8] sm:$0xff]
      %v285 = vld [vmem:[%s4 + $0x10] sm:$0xff]
      %v286 = vld [vmem:[%s4 + $0x18] sm:$0xff]
      %v287 = vld [vmem:[%s4 + $0x20] sm:$0xff]
      %v288 = vld [vmem:[%s4 + $0x28] sm:$0xff]
      %v289 = vld [vmem:[%s4 + $0x30] sm:$0xff]
      %v290 = vld [vmem:[%s4 + $0x38] sm:$0xff]
      %v291 = vld [vmem:[%s4 + $0x40] sm:$0xff]
      %v292 = vld [vmem:[%s4 + $0x48] sm:$0xff]
      %v293 = vld [vmem:[%s4 + $0x50] sm:$0xff]
      %v294 = vld [vmem:[%s4 + $0x58] sm:$0xff]
      %v295 = vld [vmem:[%s4 + $0x60] sm:$0xff]
      %v296 = vld [vmem:[%s4 + $0x68] sm:$0xff]
      %v297 = vld [vmem:[%s4 + $0x70] sm:$0xff]
      %v298 = vld [vmem:[%s4 + $0x78] sm:$0xff]
      %v299 = vld [vmem:[%s1] sm:$0xff]
      %v300 = vld [vmem:[%s1 + $0x8] sm:$0xff]
      %v301 = vld [vmem:[%s1 + $0x10] sm:$0xff]
      %v302 = vld [vmem:[%s1 + $0x18] sm:$0xff]
      %v303 = vld [vmem:[%s1 + $0x20] sm:$0xff]
      %v304 = vld [vmem:[%s1 + $0x28] sm:$0xff]
      %v305 = vld [vmem:[%s1 + $0x30] sm:$0xff]
      %v306 = vld [vmem:[%s1 + $0x38] sm:$0xff]
      %v307 = vld [vmem:[%s1 + $0x40] sm:$0xff]
      %v308 = vld [vmem:[%s1 + $0x48] sm:$0xff]
      %v309 = vld [vmem:[%s1 + $0x50] sm:$0xff]
      %v310 = vld [vmem:[%s1 + $0x58] sm:$0xff]
      %v311 = vld [vmem:[%s1 + $0x60] sm:$0xff]
      %v312 = vld [vmem:[%s1 + $0x68] sm:$0xff]
      %v313 = vld [vmem:[%s1 + $0x70] sm:$0xff]
      %v314 = vld [vmem:[%s1 + $0x78] sm:$0xff]
      %v315 = vld [vmem:[%s1 + $0x80] sm:$0xff]
      %v316 = vld [vmem:[%s1 + $0x88] sm:$0xff]
      %v317 = vld [vmem:[%s1 + $0x90] sm:$0xff]
      %v318 = vld [vmem:[%s1 + $0x98] sm:$0xff]
      %v319 = vld [vmem:[%s1 + $0xa0] sm:$0xff]
      %v320 = vld [vmem:[%s1 + $0xa8] sm:$0xff]
      %v321 = vld [vmem:[%s1 + $0xb0] sm:$0xff]
      %v322 = vld [vmem:[%s1 + $0xb8] sm:$0xff]
      %v323 = vld [vmem:[%s1 + $0xc0] sm:$0xff]
      %v324 = vld [vmem:[%s1 + $0xc8] sm:$0xff]
      %v325 = vld [vmem:[%s1 + $0xd0] sm:$0xff]
      %v326 = vld [vmem:[%s1 + $0xd8] sm:$0xff]
      %v327 = vld [vmem:[%s1 + $0xe0] sm:$0xff]
      %v328 = vld [vmem:[%s1 + $0xe8] sm:$0xff]
      %v329 = vld [vmem:[%s1 + $0xf0] sm:$0xff]
      %v330 = vld [vmem:[%s1 + $0xf8] sm:$0xff]
      %v331 = vld [vmem:[%s1 + $0x100] sm:$0xff]
      %v332 = vld [vmem:[%s1 + $0x108] sm:$0xff]
      %v333 = vld [vmem:[%s1 + $0x110] sm:$0xff]
      %v334 = vld [vmem:[%s1 + $0x118] sm:$0xff]
      %v335 = vld [vmem:[%s1 + $0x120] sm:$0xff]
      %v336 = vld [vmem:[%s1 + $0x128] sm:$0xff]
      %v337 = vld [vmem:[%s1 + $0x130] sm:$0xff]
      %v338 = vld [vmem:[%s1 + $0x138] sm:$0xff]
      %v339 = vld [vmem:[%s1 + $0x140] sm:$0xff]
      %v340 = vld [vmem:[%s1 + $0x148] sm:$0xff]
      %v341 = vld [vmem:[%s1 + $0x150] sm:$0xff]
      %v342 = vld [vmem:[%s1 + $0x158] sm:$0xff]
      %v343 = vld [vmem:[%s1 + $0x160] sm:$0xff]
      %v344 = vld [vmem:[%s1 + $0x168] sm:$0xff]
      %v345 = vld [vmem:[%s1 + $0x170] sm:$0xff]
      %v346 = vld [vmem:[%s1 + $0x178] sm:$0xff]
      %v347 = vld [vmem:[%s1 + $0x180] sm:$0xff]
      %v348 = vld [vmem:[%s1 + $0x188] sm:$0xff]
      %v349 = vld [vmem:[%s1 + $0x190] sm:$0xff]
      %v350 = vld [vmem:[%s1 + $0x198] sm:$0xff]
      %v351 = vld [vmem:[%s1 + $0x1a0] sm:$0xff]
      %v352 = vld [vmem:[%s1 + $0x1a8] sm:$0xff]
      %v353 = vld [vmem:[%s1 + $0x1b0] sm:$0xff]
      %v354 = vld [vmem:[%s1 + $0x1b8] sm:$0xff]
      %v355 = vld [vmem:[%s1 + $0x1c0] sm:$0xff]
      %v356 = vld [vmem:[%s1 + $0x1c8] sm:$0xff]
      %v357 = vld [vmem:[%s1 + $0x1d0] sm:$0xff]
      %v358 = vld [vmem:[%s1 + $0x1d8] sm:$0xff]
      %v359 = vld [vmem:[%s1 + $0x1e0] sm:$0xff]
      %v360 = vld [vmem:[%s1 + $0x1e8] sm:$0xff]
      %v361 = vld [vmem:[%s1 + $0x1f0] sm:$0xff]
      %v362 = vld [vmem:[%s1 + $0x1f8] sm:$0xff]
      %v363 = vld [vmem:[%s2] sm:$0xff]
      %v365 = vlaneseq
      %v366 = vshrl.u32 %v365, 7
      %v367 = vsub.s32 0, %v366
      %v368 = vrot.slane %v363, %v367
      %v369 = vlaneseq
      %v370 = vshrl.u32 %v369, 7
      %v371 = vsub.s32 1, %v370
      %v372 = vrot.slane %v363, %v371
      %v373 = vlaneseq
      %v374 = vshrl.u32 %v373, 7
      %v375 = vsub.s32 2, %v374
      %v376 = vrot.slane %v363, %v375
      %v377 = vlaneseq
      %v378 = vshrl.u32 %v377, 7
      %v379 = vsub.s32 3, %v378
      %v380 = vrot.slane %v363, %v379
      %v381 = vlaneseq
      %v382 = vshrl.u32 %v381, 7
      %v383 = vsub.s32 4, %v382
      %v384 = vrot.slane %v363, %v383
      %v385 = vlaneseq
      %v386 = vshrl.u32 %v385, 7
      %v387 = vsub.s32 5, %v386
      %v388 = vrot.slane %v363, %v387
      %v389 = vlaneseq
      %v390 = vshrl.u32 %v389, 7
      %v391 = vsub.s32 6, %v390
      %v392 = vrot.slane %v363, %v391
      %v393 = vlaneseq
      %v394 = vshrl.u32 %v393, 7
      %v395 = vsub.s32 7, %v394
      %v396 = vrot.slane %v363, %v395
      %v430 = vunpack.c.l.b16 %v258
      %v431 = vunpack.c.l.b16 %v259
      %v432 = vunpack.c.l.b16 %v260
      %v433 = vunpack.c.l.b16 %v261
      %v434 = vunpack.c.l.b16 %v262
      %v435 = vunpack.c.l.b16 %v263
      %v436 = vunpack.c.l.b16 %v264
      %v437 = vunpack.c.l.b16 %v265
      %v438 = vunpack.c.l.b16 %v266
      %v439 = vunpack.c.l.b16 %v267
      %v440 = vunpack.c.l.b16 %v268
      %v441 = vunpack.c.l.b16 %v269
      %v442 = vunpack.c.l.b16 %v270
      %v443 = vunpack.c.l.b16 %v271
      %v444 = vunpack.c.l.b16 %v272
      %v445 = vunpack.c.l.b16 %v273
      %v446 = vunpack.c.l.b16 %v274
      %v447 = vunpack.c.l.b16 %v275
      %v448 = vunpack.c.l.b16 %v276
      %v449 = vunpack.c.l.b16 %v277
      %v450 = vunpack.c.l.b16 %v278
      %v451 = vunpack.c.l.b16 %v279
      %v452 = vunpack.c.l.b16 %v280
      %v453 = vunpack.c.l.b16 %v281
      %v454 = vunpack.c.l.b16 %v282
      %v455 = vpack.c.b16 %v431, %v430
      %v456 = vpack.c.b16 %v433, %v432
      %v457 = vpack.c.b16 %v435, %v434
      %v458 = vpack.c.b16 %v437, %v436
      %v459 = vpack.c.b16 %v439, %v438
      %v460 = vpack.c.b16 %v441, %v440
      %v461 = vpack.c.b16 %v443, %v442
      %v462 = vpack.c.b16 %v445, %v444
      %v463 = vpack.c.b16 %v447, %v446
      %v464 = vpack.c.b16 %v449, %v448
      %v465 = vpack.c.b16 %v451, %v450
      %v466 = vpack.c.b16 %v453, %v452
      %v467 = vpack.c.b16 %v454, %v454
      %v545 = vunpack.c.l.b16 %v299
      %v546 = vunpack.c.h.b16 %v299
      %v547 = vunpack.c.l.b16 %v300
      %v548 = vunpack.c.h.b16 %v300
      %v549 = vunpack.c.l.b16 %v301
      %v550 = vunpack.c.h.b16 %v301
      %v551 = vunpack.c.l.b16 %v302
      %v552 = vunpack.c.h.b16 %v302
      %v553 = vunpack.c.l.b16 %v303
      %v554 = vunpack.c.h.b16 %v303
      %v555 = vunpack.c.l.b16 %v304
      %v556 = vunpack.c.h.b16 %v304
      %v557 = vunpack.c.l.b16 %v305
      %v558 = vunpack.c.h.b16 %v305
      %v559 = vunpack.c.l.b16 %v306
      %v560 = vunpack.c.h.b16 %v306
      %v561 = vunpack.c.l.b16 %v307
      %v562 = vunpack.c.h.b16 %v307
      %v563 = vunpack.c.l.b16 %v308
      %v564 = vunpack.c.h.b16 %v308
      %v565 = vunpack.c.l.b16 %v309
      %v566 = vunpack.c.h.b16 %v309
      %v567 = vunpack.c.l.b16 %v310
      %v568 = vunpack.c.h.b16 %v310
      %v569 = vunpack.c.l.b16 %v311
      %v570 = vunpack.c.h.b16 %v311
      %v571 = vunpack.c.l.b16 %v312
      %v572 = vunpack.c.h.b16 %v312
      %v573 = vunpack.c.l.b16 %v313
      %v574 = vunpack.c.h.b16 %v313
      %v575 = vunpack.c.l.b16 %v314
      %v576 = vunpack.c.h.b16 %v314
      %v577 = vunpack.c.l.b16 %v315
      %v578 = vunpack.c.h.b16 %v315
      %v579 = vunpack.c.l.b16 %v316
      %v580 = vunpack.c.h.b16 %v316
      %v581 = vunpack.c.l.b16 %v317
      %v582 = vunpack.c.h.b16 %v317
      %v583 = vunpack.c.l.b16 %v318
      %v584 = vunpack.c.h.b16 %v318
      %v585 = vunpack.c.l.b16 %v319
      %v586 = vunpack.c.h.b16 %v319
      %v587 = vunpack.c.l.b16 %v320
      %v588 = vunpack.c.h.b16 %v320
      %v589 = vunpack.c.l.b16 %v321
      %v590 = vunpack.c.h.b16 %v321
      %v591 = vunpack.c.l.b16 %v322
      %v592 = vunpack.c.h.b16 %v322
      %v593 = vunpack.c.l.b16 %v323
      %v594 = vunpack.c.h.b16 %v323
      %v595 = vunpack.c.l.b16 %v324
      %v596 = vunpack.c.h.b16 %v324
      %v597 = vunpack.c.l.b16 %v325
      %v598 = vunpack.c.h.b16 %v325
      %v599 = vunpack.c.l.b16 %v326
      %v600 = vunpack.c.h.b16 %v326
      %v601 = vunpack.c.l.b16 %v327
      %v602 = vunpack.c.h.b16 %v327
      %v603 = vunpack.c.l.b16 %v328
      %v604 = vunpack.c.h.b16 %v328
      %v605 = vunpack.c.l.b16 %v329
      %v606 = vunpack.c.h.b16 %v329
      %v607 = vunpack.c.l.b16 %v330
      %v608 = vunpack.c.h.b16 %v330
      %v609 = vunpack.c.l.b16 %v331
      %v610 = vunpack.c.h.b16 %v331
      %v611 = vunpack.c.l.b16 %v332
      %v612 = vunpack.c.h.b16 %v332
      %v613 = vunpack.c.l.b16 %v333
      %v614 = vunpack.c.h.b16 %v333
      %v615 = vunpack.c.l.b16 %v334
      %v616 = vunpack.c.h.b16 %v334
      %v617 = vunpack.c.l.b16 %v335
      %v618 = vunpack.c.h.b16 %v335
      %v619 = vunpack.c.l.b16 %v336
      %v620 = vunpack.c.h.b16 %v336
      %v621 = vunpack.c.l.b16 %v337
      %v622 = vunpack.c.h.b16 %v337
      %v623 = vunpack.c.l.b16 %v338
      %v624 = vunpack.c.h.b16 %v338
      %v625 = vunpack.c.l.b16 %v339
      %v626 = vunpack.c.h.b16 %v339
      %v627 = vunpack.c.l.b16 %v340
      %v628 = vunpack.c.h.b16 %v340
      %v629 = vunpack.c.l.b16 %v341
      %v630 = vunpack.c.h.b16 %v341
      %v631 = vunpack.c.l.b16 %v342
      %v632 = vunpack.c.h.b16 %v342
      %v633 = vunpack.c.l.b16 %v343
      %v634 = vunpack.c.h.b16 %v343
      %v635 = vunpack.c.l.b16 %v344
      %v636 = vunpack.c.h.b16 %v344
      %v637 = vunpack.c.l.b16 %v345
      %v638 = vunpack.c.h.b16 %v345
      %v639 = vunpack.c.l.b16 %v346
      %v640 = vunpack.c.h.b16 %v346
      %v641 = vunpack.c.l.b16 %v347
      %v642 = vunpack.c.h.b16 %v347
      %v643 = vunpack.c.l.b16 %v348
      %v644 = vunpack.c.h.b16 %v348
      %v645 = vunpack.c.l.b16 %v349
      %v646 = vunpack.c.h.b16 %v349
      %v647 = vunpack.c.l.b16 %v350
      %v648 = vunpack.c.h.b16 %v350
      %v649 = vunpack.c.l.b16 %v351
      %v650 = vunpack.c.h.b16 %v351
      %v651 = vunpack.c.l.b16 %v352
      %v652 = vunpack.c.h.b16 %v352
      %v653 = vunpack.c.l.b16 %v353
      %v654 = vunpack.c.h.b16 %v353
      %v655 = vunpack.c.l.b16 %v354
      %v656 = vunpack.c.h.b16 %v354
      %v657 = vunpack.c.l.b16 %v355
      %v658 = vunpack.c.h.b16 %v355
      %v659 = vunpack.c.l.b16 %v356
      %v660 = vunpack.c.h.b16 %v356
      %v661 = vunpack.c.l.b16 %v357
      %v662 = vunpack.c.h.b16 %v357
      %v663 = vunpack.c.l.b16 %v358
      %v664 = vunpack.c.h.b16 %v358
      %v665 = vunpack.c.l.b16 %v359
      %v666 = vunpack.c.h.b16 %v359
      %v667 = vunpack.c.l.b16 %v360
      %v668 = vunpack.c.h.b16 %v360
      %v669 = vunpack.c.l.b16 %v361
      %v670 = vunpack.c.h.b16 %v361
      %v671 = vunpack.c.l.b16 %v362
      %v672 = vunpack.c.h.b16 %v362
      %v673 = vpack.c.b16 %v553, %v545
      %v674 = vpack.c.b16 %v554, %v546
      %v675 = vpack.c.b16 %v555, %v547
      %v676 = vpack.c.b16 %v556, %v548
      %v677 = vpack.c.b16 %v557, %v549
      %v678 = vpack.c.b16 %v558, %v550
      %v679 = vpack.c.b16 %v559, %v551
      %v680 = vpack.c.b16 %v560, %v552
      %v681 = vpack.c.b16 %v569, %v561
      %v682 = vpack.c.b16 %v570, %v562
      %v683 = vpack.c.b16 %v571, %v563
      %v684 = vpack.c.b16 %v572, %v564
      %v685 = vpack.c.b16 %v573, %v565
      %v686 = vpack.c.b16 %v574, %v566
      %v687 = vpack.c.b16 %v575, %v567
      %v688 = vpack.c.b16 %v576, %v568
      %v689 = vpack.c.b16 %v585, %v577
      %v690 = vpack.c.b16 %v586, %v578
      %v691 = vpack.c.b16 %v587, %v579
      %v692 = vpack.c.b16 %v588, %v580
      %v693 = vpack.c.b16 %v589, %v581
      %v694 = vpack.c.b16 %v590, %v582
      %v695 = vpack.c.b16 %v591, %v583
      %v696 = vpack.c.b16 %v592, %v584
      %v697 = vpack.c.b16 %v601, %v593
      %v698 = vpack.c.b16 %v602, %v594
      %v699 = vpack.c.b16 %v603, %v595
      %v700 = vpack.c.b16 %v604, %v596
      %v701 = vpack.c.b16 %v605, %v597
      %v702 = vpack.c.b16 %v606, %v598
      %v703 = vpack.c.b16 %v607, %v599
      %v704 = vpack.c.b16 %v608, %v600
      %v705 = vpack.c.b16 %v617, %v609
      %v706 = vpack.c.b16 %v618, %v610
      %v707 = vpack.c.b16 %v619, %v611
      %v708 = vpack.c.b16 %v620, %v612
      %v709 = vpack.c.b16 %v621, %v613
      %v710 = vpack.c.b16 %v622, %v614
      %v711 = vpack.c.b16 %v623, %v615
      %v712 = vpack.c.b16 %v624, %v616
      %v713 = vpack.c.b16 %v633, %v625
      %v714 = vpack.c.b16 %v634, %v626
      %v715 = vpack.c.b16 %v635, %v627
      %v716 = vpack.c.b16 %v636, %v628
      %v717 = vpack.c.b16 %v637, %v629
      %v718 = vpack.c.b16 %v638, %v630
      %v719 = vpack.c.b16 %v639, %v631
      %v720 = vpack.c.b16 %v640, %v632
      %v721 = vpack.c.b16 %v649, %v641
      %v722 = vpack.c.b16 %v650, %v642
      %v723 = vpack.c.b16 %v651, %v643
      %v724 = vpack.c.b16 %v652, %v644
      %v725 = vpack.c.b16 %v653, %v645
      %v726 = vpack.c.b16 %v654, %v646
      %v727 = vpack.c.b16 %v655, %v647
      %v728 = vpack.c.b16 %v656, %v648
      %v729 = vpack.c.b16 %v665, %v657
      %v730 = vpack.c.b16 %v666, %v658
      %v731 = vpack.c.b16 %v667, %v659
      %v732 = vpack.c.b16 %v668, %v660
      %v733 = vpack.c.b16 %v669, %v661
      %v734 = vpack.c.b16 %v670, %v662
      %v735 = vpack.c.b16 %v671, %v663
      %v736 = vpack.c.b16 %v672, %v664
      %801 = vmatprep.subr.bf16.mxu0 %v674
      %802 = vmatpush1.bf16.msra.mxu0 %v673
      %803 = vmatprep.subr.bf16.mxu0 %v682
      %804 = vmatpush1.bf16.msra.mxu0 %v681
      %805 = vmatprep.subr.bf16.mxu0 %v690
      %806 = vmatpush1.bf16.msra.mxu0 %v689
      %807 = vmatprep.subr.bf16.mxu0 %v698
      %808 = vmatpush1.bf16.msra.mxu0 %v697
      %809 = vmatprep.subr.bf16.mxu0 %v706
      %810 = vmatpush1.bf16.msra.mxu0 %v705
      %811 = vmatprep.subr.bf16.mxu0 %v714
      %812 = vmatpush1.bf16.msra.mxu0 %v713
      %813 = vmatprep.subr.bf16.mxu0 %v722
      %814 = vmatpush1.bf16.msra.mxu0 %v721
      %815 = vmatprep.subr.bf16.mxu0 %v730
      %816 = vmatpush1.bf16.msra.mxu0 %v729
      %817 = vmatprep.subr.bf16.mxu0 0
      %818 = vmatpush1.bf16.msra.mxu0 0
      %819 = vmatprep.subr.bf16.mxu0 0
      %820 = vmatpush1.bf16.msra.mxu0 0
      %821 = vmatprep.subr.bf16.mxu0 0
      %822 = vmatpush1.bf16.msra.mxu0 0
      %823 = vmatprep.subr.bf16.mxu0 0
      %824 = vmatpush1.bf16.msra.mxu0 0
      %825 = vmatprep.subr.bf16.mxu0 0
      %826 = vmatpush1.bf16.msra.mxu0 0
      %827 = vmatprep.subr.bf16.mxu0 0
      %828 = vmatpush1.bf16.msra.mxu0 0
      %829 = vmatprep.subr.bf16.mxu0 0
      %830 = vmatpush1.bf16.msra.mxu0 0
      %831 = vmatprep.subr.bf16.mxu0 0
      %832 = vmatpush1.bf16.msra.mxu0 0
      %833 = vmatprep.mubr.bf16.mxu0 0
      %834 = vmatmul.mubr.bf16.gmra.mrb[0].mxu0 %v455
      %v835 = vpop.f32.mrb[0].mxu0
      %v836 = vadd.f32 %v368, %v835
      %v837 = vpop.f32.mrb[0].mxu0
      %v838 = vadd.f32 %v372, %v837
      %v839 = vpop.f32.mrb[0].mxu0
      %v840 = vadd.f32 %v368, %v839
      %v841 = vpop.f32.mrb[0].mxu0
      %v842 = vadd.f32 %v372, %v841
      %843 = vmatprep.mubr.bf16.mxu0 0
      %844 = vmatmul.mubr.bf16.gmra.mrb[0].mxu0 %v456
      %v845 = vpop.f32.mrb[0].mxu0
      %v846 = vadd.f32 %v368, %v845
      %v847 = vpop.f32.mrb[0].mxu0
      %v848 = vadd.f32 %v372, %v847
      %v849 = vpop.f32.mrb[0].mxu0
      %v850 = vadd.f32 %v368, %v849
      %v851 = vpop.f32.mrb[0].mxu0
      %v852 = vadd.f32 %v372, %v851
      %853 = vmatprep.mubr.bf16.mxu0 0
      %854 = vmatmul.mubr.bf16.gmra.mrb[0].mxu0 %v457
      %v855 = vpop.f32.mrb[0].mxu0
      %v856 = vadd.f32 %v368, %v855
      %v857 = vpop.f32.mrb[0].mxu0
      %v858 = vadd.f32 %v372, %v857
      %v859 = vpop.f32.mrb[0].mxu0
      %v860 = vadd.f32 %v368, %v859
      %v861 = vpop.f32.mrb[0].mxu0
      %v862 = vadd.f32 %v372, %v861
      %863 = vmatprep.mubr.bf16.mxu0 0
      %864 = vmatmul.mubr.bf16.gmra.mrb[0].mxu0 %v458
      %v865 = vpop.f32.mrb[0].mxu0
      %v866 = vadd.f32 %v368, %v865
      %v867 = vpop.f32.mrb[0].mxu0
      %v868 = vadd.f32 %v372, %v867
      %v869 = vpop.f32.mrb[0].mxu0
      %v870 = vadd.f32 %v368, %v869
      %v871 = vpop.f32.mrb[0].mxu0
      %v872 = vadd.f32 %v372, %v871
      %873 = vmatprep.mubr.bf16.mxu0 0
      %874 = vmatmul.mubr.bf16.gmra.mrb[0].mxu0 %v459
      %v875 = vpop.f32.mrb[0].mxu0
      %v876 = vadd.f32 %v368, %v875
      %v877 = vpop.f32.mrb[0].mxu0
      %v878 = vadd.f32 %v372, %v877
      %v879 = vpop.f32.mrb[0].mxu0
      %v880 = vadd.f32 %v368, %v879
      %v881 = vpop.f32.mrb[0].mxu0
      %v882 = vadd.f32 %v372, %v881
      %883 = vmatprep.mubr.bf16.mxu0 0
      %884 = vmatmul.mubr.bf16.gmra.mrb[0].mxu0 %v460
      %v885 = vpop.f32.mrb[0].mxu0
      %v886 = vadd.f32 %v368, %v885
      %v887 = vpop.f32.mrb[0].mxu0
      %v888 = vadd.f32 %v372, %v887
      %v889 = vpop.f32.mrb[0].mxu0
      %v890 = vadd.f32 %v368, %v889
      %v891 = vpop.f32.mrb[0].mxu0
      %v892 = vadd.f32 %v372, %v891
      %893 = vmatprep.mubr.bf16.mxu0 0
      %894 = vmatmul.mubr.bf16.gmra.mrb[0].mxu0 %v461
      %v895 = vpop.f32.mrb[0].mxu0
      %v896 = vadd.f32 %v368, %v895
      %v897 = vpop.f32.mrb[0].mxu0
      %v898 = vadd.f32 %v372, %v897
      %v899 = vpop.f32.mrb[0].mxu0
      %v900 = vadd.f32 %v368, %v899
      %v901 = vpop.f32.mrb[0].mxu0
      %v902 = vadd.f32 %v372, %v901
      %903 = vmatprep.mubr.bf16.mxu0 0
      %904 = vmatmul.mubr.bf16.gmra.mrb[0].mxu0 %v462
      %v905 = vpop.f32.mrb[0].mxu0
      %v906 = vadd.f32 %v368, %v905
      %v907 = vpop.f32.mrb[0].mxu0
      %v908 = vadd.f32 %v372, %v907
      %v909 = vpop.f32.mrb[0].mxu0
      %v910 = vadd.f32 %v368, %v909
      %v911 = vpop.f32.mrb[0].mxu0
      %v912 = vadd.f32 %v372, %v911
      %913 = vmatprep.mubr.bf16.mxu0 0
      %914 = vmatmul.mubr.bf16.gmra.mrb[0].mxu0 %v463
      %v915 = vpop.f32.mrb[0].mxu0
      %v916 = vadd.f32 %v368, %v915
      %v917 = vpop.f32.mrb[0].mxu0
      %v918 = vadd.f32 %v372, %v917
      %v919 = vpop.f32.mrb[0].mxu0
      %v920 = vadd.f32 %v368, %v919
      %v921 = vpop.f32.mrb[0].mxu0
      %v922 = vadd.f32 %v372, %v921
      %923 = vmatprep.mubr.bf16.mxu0 0
      %924 = vmatmul.mubr.bf16.gmra.mrb[0].mxu0 %v464
      %v925 = vpop.f32.mrb[0].mxu0
      %v926 = vadd.f32 %v368, %v925
      %v927 = vpop.f32.mrb[0].mxu0
      %v928 = vadd.f32 %v372, %v927
      %v929 = vpop.f32.mrb[0].mxu0
      %v930 = vadd.f32 %v368, %v929
      %v931 = vpop.f32.mrb[0].mxu0
      %v932 = vadd.f32 %v372, %v931
      %933 = vmatprep.mubr.bf16.mxu0 0
      %934 = vmatmul.mubr.bf16.gmra.mrb[0].mxu0 %v465
      %v935 = vpop.f32.mrb[0].mxu0
      %v936 = vadd.f32 %v368, %v935
      %v937 = vpop.f32.mrb[0].mxu0
      %v938 = vadd.f32 %v372, %v937
      %v939 = vpop.f32.mrb[0].mxu0
      %v940 = vadd.f32 %v368, %v939
      %v941 = vpop.f32.mrb[0].mxu0
      %v942 = vadd.f32 %v372, %v941
      %943 = vmatprep.mubr.bf16.mxu0 0
      %944 = vmatmul.mubr.bf16.gmra.mrb[0].mxu0 %v466
      %v945 = vpop.f32.mrb[0].mxu0
      %v946 = vadd.f32 %v368, %v945
      %v947 = vpop.f32.mrb[0].mxu0
      %v948 = vadd.f32 %v372, %v947
      %v949 = vpop.f32.mrb[0].mxu0
      %v950 = vadd.f32 %v368, %v949
      %v951 = vpop.f32.mrb[0].mxu0
      %v952 = vadd.f32 %v372, %v951
      %953 = vmatprep.mubr.bf16.mxu0 0
      %954 = vmatmul.mubr.bf16.gmra.mrb[0].mxu0 %v467
      %v955 = vpop.f32.mrb[0].mxu0
      %v956 = vadd.f32 %v368, %v955
      %v957 = vpop.f32.mrb[0].mxu0
      %v958 = vadd.f32 %v372, %v957
      %v959 = vpop.f32.mrb[0].mxu0
      %v960 = vpop.f32.mrb[0].mxu0
      %961 = vdwg.mxu0
      %962 = vmatprep.subr.bf16.mxu0 %v676
      %963 = vmatpush1.bf16.msra.mxu0 %v675
      %964 = vmatprep.subr.bf16.mxu0 %v684
      %965 = vmatpush1.bf16.msra.mxu0 %v683
      %966 = vmatprep.subr.bf16.mxu0 %v692
      %967 = vmatpush1.bf16.msra.mxu0 %v691
      %968 = vmatprep.subr.bf16.mxu0 %v700
      %969 = vmatpush1.bf16.msra.mxu0 %v699
      %970 = vmatprep.subr.bf16.mxu0 %v708
      %971 = vmatpush1.bf16.msra.mxu0 %v707
      %972 = vmatprep.subr.bf16.mxu0 %v716
      %973 = vmatpush1.bf16.msra.mxu0 %v715
      %974 = vmatprep.subr.bf16.mxu0 %v724
      %975 = vmatpush1.bf16.msra.mxu0 %v723
      %976 = vmatprep.subr.bf16.mxu0 %v732
      %977 = vmatpush1.bf16.msra.mxu0 %v731
      %978 = vmatprep.subr.bf16.mxu0 0
      %979 = vmatpush1.bf16.msra.mxu0 0
      %980 = vmatprep.subr.bf16.mxu0 0
      %981 = vmatpush1.bf16.msra.mxu0 0
      %982 = vmatprep.subr.bf16.mxu0 0
      %983 = vmatpush1.bf16.msra.mxu0 0
      %984 = vmatprep.subr.bf16.mxu0 0
      %985 = vmatpush1.bf16.msra.mxu0 0
      %986 = vmatprep.subr.bf16.mxu0 0
      %987 = vmatpush1.bf16.msra.mxu0 0
      %988 = vmatprep.subr.bf16.mxu0 0
      %989 = vmatpush1.bf16.msra.mxu0 0
      %990 = vmatprep.subr.bf16.mxu0 0
      %991 = vmatpush1.bf16.msra.mxu0 0
      %992 = vmatprep.subr.bf16.mxu0 0
      %993 = vmatpush1.bf16.msra.mxu0 0
      %994 = vmatprep.mubr.bf16.mxu0 0
      %995 = vmatmul.mubr.bf16.gmra.mrb[0].mxu0 %v455
      %v996 = vpop.f32.mrb[0].mxu0
      %v997 = vadd.f32 %v376, %v996
      %v998 = vpop.f32.mrb[0].mxu0
      %v999 = vadd.f32 %v380, %v998
      %v1000 = vpop.f32.mrb[0].mxu0
      %v1001 = vadd.f32 %v376, %v1000
      %v1002 = vpop.f32.mrb[0].mxu0
      %v1003 = vadd.f32 %v380, %v1002
      %1004 = vmatprep.mubr.bf16.mxu0 0
      %1005 = vmatmul.mubr.bf16.gmra.mrb[0].mxu0 %v456
      %v1006 = vpop.f32.mrb[0].mxu0
      %v1007 = vadd.f32 %v376, %v1006
      %v1008 = vpop.f32.mrb[0].mxu0
      %v1009 = vadd.f32 %v380, %v1008
      %v1010 = vpop.f32.mrb[0].mxu0
      %v1011 = vadd.f32 %v376, %v1010
      %v1012 = vpop.f32.mrb[0].mxu0
      %v1013 = vadd.f32 %v380, %v1012
      %1014 = vmatprep.mubr.bf16.mxu0 0
      %1015 = vmatmul.mubr.bf16.gmra.mrb[0].mxu0 %v457
      %v1016 = vpop.f32.mrb[0].mxu0
      %v1017 = vadd.f32 %v376, %v1016
      %v1018 = vpop.f32.mrb[0].mxu0
      %v1019 = vadd.f32 %v380, %v1018
      %v1020 = vpop.f32.mrb[0].mxu0
      %v1021 = vadd.f32 %v376, %v1020
      %v1022 = vpop.f32.mrb[0].mxu0
      %v1023 = vadd.f32 %v380, %v1022
      %1024 = vmatprep.mubr.bf16.mxu0 0
      %1025 = vmatmul.mubr.bf16.gmra.mrb[0].mxu0 %v458
      %v1026 = vpop.f32.mrb[0].mxu0
      %v1027 = vadd.f32 %v376, %v1026
      %v1028 = vpop.f32.mrb[0].mxu0
      %v1029 = vadd.f32 %v380, %v1028
      %v1030 = vpop.f32.mrb[0].mxu0
      %v1031 = vadd.f32 %v376, %v1030
      %v1032 = vpop.f32.mrb[0].mxu0
      %v1033 = vadd.f32 %v380, %v1032
      %1034 = vmatprep.mubr.bf16.mxu0 0
      %1035 = vmatmul.mubr.bf16.gmra.mrb[0].mxu0 %v459
      %v1036 = vpop.f32.mrb[0].mxu0
      %v1037 = vadd.f32 %v376, %v1036
      %v1038 = vpop.f32.mrb[0].mxu0
      %v1039 = vadd.f32 %v380, %v1038
      %v1040 = vpop.f32.mrb[0].mxu0
      %v1041 = vadd.f32 %v376, %v1040
      %v1042 = vpop.f32.mrb[0].mxu0
      %v1043 = vadd.f32 %v380, %v1042
      %1044 = vmatprep.mubr.bf16.mxu0 0
      %1045 = vmatmul.mubr.bf16.gmra.mrb[0].mxu0 %v460
      %v1046 = vpop.f32.mrb[0].mxu0
      %v1047 = vadd.f32 %v376, %v1046
      %v1048 = vpop.f32.mrb[0].mxu0
      %v1049 = vadd.f32 %v380, %v1048
      %v1050 = vpop.f32.mrb[0].mxu0
      %v1051 = vadd.f32 %v376, %v1050
      %v1052 = vpop.f32.mrb[0].mxu0
      %v1053 = vadd.f32 %v380, %v1052
      %1054 = vmatprep.mubr.bf16.mxu0 0
      %1055 = vmatmul.mubr.bf16.gmra.mrb[0].mxu0 %v461
      %v1056 = vpop.f32.mrb[0].mxu0
      %v1057 = vadd.f32 %v376, %v1056
      %v1058 = vpop.f32.mrb[0].mxu0
      %v1059 = vadd.f32 %v380, %v1058
      %v1060 = vpop.f32.mrb[0].mxu0
      %v1061 = vadd.f32 %v376, %v1060
      %v1062 = vpop.f32.mrb[0].mxu0
      %v1063 = vadd.f32 %v380, %v1062
      %1064 = vmatprep.mubr.bf16.mxu0 0
      %1065 = vmatmul.mubr.bf16.gmra.mrb[0].mxu0 %v462
      %v1066 = vpop.f32.mrb[0].mxu0
      %v1067 = vadd.f32 %v376, %v1066
      %v1068 = vpop.f32.mrb[0].mxu0
      %v1069 = vadd.f32 %v380, %v1068
      %v1070 = vpop.f32.mrb[0].mxu0
      %v1071 = vadd.f32 %v376, %v1070
      %v1072 = vpop.f32.mrb[0].mxu0
      %v1073 = vadd.f32 %v380, %v1072
      %1074 = vmatprep.mubr.bf16.mxu0 0
      %1075 = vmatmul.mubr.bf16.gmra.mrb[0].mxu0 %v463
      %v1076 = vpop.f32.mrb[0].mxu0
      %v1077 = vadd.f32 %v376, %v1076
      %v1078 = vpop.f32.mrb[0].mxu0
      %v1079 = vadd.f32 %v380, %v1078
      %v1080 = vpop.f32.mrb[0].mxu0
      %v1081 = vadd.f32 %v376, %v1080
      %v1082 = vpop.f32.mrb[0].mxu0
      %v1083 = vadd.f32 %v380, %v1082
      %1084 = vmatprep.mubr.bf16.mxu0 0
      %1085 = vmatmul.mubr.bf16.gmra.mrb[0].mxu0 %v464
      %v1086 = vpop.f32.mrb[0].mxu0
      %v1087 = vadd.f32 %v376, %v1086
      %v1088 = vpop.f32.mrb[0].mxu0
      %v1089 = vadd.f32 %v380, %v1088
      %v1090 = vpop.f32.mrb[0].mxu0
      %v1091 = vadd.f32 %v376, %v1090
      %v1092 = vpop.f32.mrb[0].mxu0
      %v1093 = vadd.f32 %v380, %v1092
      %1094 = vmatprep.mubr.bf16.mxu0 0
      %1095 = vmatmul.mubr.bf16.gmra.mrb[0].mxu0 %v465
      %v1096 = vpop.f32.mrb[0].mxu0
      %v1097 = vadd.f32 %v376, %v1096
      %v1098 = vpop.f32.mrb[0].mxu0
      %v1099 = vadd.f32 %v380, %v1098
      %v1100 = vpop.f32.mrb[0].mxu0
      %v1101 = vadd.f32 %v376, %v1100
      %v1102 = vpop.f32.mrb[0].mxu0
      %v1103 = vadd.f32 %v380, %v1102
      %1104 = vmatprep.mubr.bf16.mxu0 0
      %1105 = vmatmul.mubr.bf16.gmra.mrb[0].mxu0 %v466
      %v1106 = vpop.f32.mrb[0].mxu0
      %v1107 = vadd.f32 %v376, %v1106
      %v1108 = vpop.f32.mrb[0].mxu0
      %v1109 = vadd.f32 %v380, %v1108
      %v1110 = vpop.f32.mrb[0].mxu0
      %v1111 = vadd.f32 %v376, %v1110
      %v1112 = vpop.f32.mrb[0].mxu0
      %v1113 = vadd.f32 %v380, %v1112
      %1114 = vmatprep.mubr.bf16.mxu0 0
      %1115 = vmatmul.mubr.bf16.gmra.mrb[0].mxu0 %v467
      %v1116 = vpop.f32.mrb[0].mxu0
      %v1117 = vadd.f32 %v376, %v1116
      %v1118 = vpop.f32.mrb[0].mxu0
      %v1119 = vadd.f32 %v380, %v1118
      %v1120 = vpop.f32.mrb[0].mxu0
      %v1121 = vpop.f32.mrb[0].mxu0
      %1122 = vdwg.mxu0
      %1123 = vmatprep.subr.bf16.mxu0 %v678
      %1124 = vmatpush1.bf16.msra.mxu0 %v677
      %1125 = vmatprep.subr.bf16.mxu0 %v686
      %1126 = vmatpush1.bf16.msra.mxu0 %v685
      %1127 = vmatprep.subr.bf16.mxu0 %v694
      %1128 = vmatpush1.bf16.msra.mxu0 %v693
      %1129 = vmatprep.subr.bf16.mxu0 %v702
      %1130 = vmatpush1.bf16.msra.mxu0 %v701
      %1131 = vmatprep.subr.bf16.mxu0 %v710
      %1132 = vmatpush1.bf16.msra.mxu0 %v709
      %1133 = vmatprep.subr.bf16.mxu0 %v718
      %1134 = vmatpush1.bf16.msra.mxu0 %v717
      %1135 = vmatprep.subr.bf16.mxu0 %v726
      %1136 = vmatpush1.bf16.msra.mxu0 %v725
      %1137 = vmatprep.subr.bf16.mxu0 %v734
      %1138 = vmatpush1.bf16.msra.mxu0 %v733
      %1139 = vmatprep.subr.bf16.mxu0 0
      %1140 = vmatpush1.bf16.msra.mxu0 0
      %1141 = vmatprep.subr.bf16.mxu0 0
      %1142 = vmatpush1.bf16.msra.mxu0 0
      %1143 = vmatprep.subr.bf16.mxu0 0
      %1144 = vmatpush1.bf16.msra.mxu0 0
      %1145 = vmatprep.subr.bf16.mxu0 0
      %1146 = vmatpush1.bf16.msra.mxu0 0
      %1147 = vmatprep.subr.bf16.mxu0 0
      %1148 = vmatpush1.bf16.msra.mxu0 0
      %1149 = vmatprep.subr.bf16.mxu0 0
      %1150 = vmatpush1.bf16.msra.mxu0 0
      %1151 = vmatprep.subr.bf16.mxu0 0
      %1152 = vmatpush1.bf16.msra.mxu0 0
      %1153 = vmatprep.subr.bf16.mxu0 0
      %1154 = vmatpush1.bf16.msra.mxu0 0
      %1155 = vmatprep.mubr.bf16.mxu0 0
      %1156 = vmatmul.mubr.bf16.gmra.mrb[0].mxu0 %v455
      %v1157 = vpop.f32.mrb[0].mxu0
      %v1158 = vadd.f32 %v384, %v1157
      %v1159 = vpop.f32.mrb[0].mxu0
      %v1160 = vadd.f32 %v388, %v1159
      %v1161 = vpop.f32.mrb[0].mxu0
      %v1162 = vadd.f32 %v384, %v1161
      %v1163 = vpop.f32.mrb[0].mxu0
      %v1164 = vadd.f32 %v388, %v1163
      %1165 = vmatprep.mubr.bf16.mxu0 0
      %1166 = vmatmul.mubr.bf16.gmra.mrb[0].mxu0 %v456
      %v1167 = vpop.f32.mrb[0].mxu0
      %v1168 = vadd.f32 %v384, %v1167
      %v1169 = vpop.f32.mrb[0].mxu0
      %v1170 = vadd.f32 %v388, %v1169
      %v1171 = vpop.f32.mrb[0].mxu0
      %v1172 = vadd.f32 %v384, %v1171
      %v1173 = vpop.f32.mrb[0].mxu0
      %v1174 = vadd.f32 %v388, %v1173
      %1175 = vmatprep.mubr.bf16.mxu0 0
      %1176 = vmatmul.mubr.bf16.gmra.mrb[0].mxu0 %v457
      %v1177 = vpop.f32.mrb[0].mxu0
      %v1178 = vadd.f32 %v384, %v1177
      %v1179 = vpop.f32.mrb[0].mxu0
      %v1180 = vadd.f32 %v388, %v1179
      %v1181 = vpop.f32.mrb[0].mxu0
      %v1182 = vadd.f32 %v384, %v1181
      %v1183 = vpop.f32.mrb[0].mxu0
      %v1184 = vadd.f32 %v388, %v1183
      %1185 = vmatprep.mubr.bf16.mxu0 0
      %1186 = vmatmul.mubr.bf16.gmra.mrb[0].mxu0 %v458
      %v1187 = vpop.f32.mrb[0].mxu0
      %v1188 = vadd.f32 %v384, %v1187
      %v1189 = vpop.f32.mrb[0].mxu0
      %v1190 = vadd.f32 %v388, %v1189
      %v1191 = vpop.f32.mrb[0].mxu0
      %v1192 = vadd.f32 %v384, %v1191
      %v1193 = vpop.f32.mrb[0].mxu0
      %v1194 = vadd.f32 %v388, %v1193
      %1195 = vmatprep.mubr.bf16.mxu0 0
      %1196 = vmatmul.mubr.bf16.gmra.mrb[0].mxu0 %v459
      %v1197 = vpop.f32.mrb[0].mxu0
      %v1198 = vadd.f32 %v384, %v1197
      %v1199 = vpop.f32.mrb[0].mxu0
      %v1200 = vadd.f32 %v388, %v1199
      %v1201 = vpop.f32.mrb[0].mxu0
      %v1202 = vadd.f32 %v384, %v1201
      %v1203 = vpop.f32.mrb[0].mxu0
      %v1204 = vadd.f32 %v388, %v1203
      %1205 = vmatprep.mubr.bf16.mxu0 0
      %1206 = vmatmul.mubr.bf16.gmra.mrb[0].mxu0 %v460
      %v1207 = vpop.f32.mrb[0].mxu0
      %v1208 = vadd.f32 %v384, %v1207
      %v1209 = vpop.f32.mrb[0].mxu0
      %v1210 = vadd.f32 %v388, %v1209
      %v1211 = vpop.f32.mrb[0].mxu0
      %v1212 = vadd.f32 %v384, %v1211
      %v1213 = vpop.f32.mrb[0].mxu0
      %v1214 = vadd.f32 %v388, %v1213
      %1215 = vmatprep.mubr.bf16.mxu0 0
      %1216 = vmatmul.mubr.bf16.gmra.mrb[0].mxu0 %v461
      %v1217 = vpop.f32.mrb[0].mxu0
      %v1218 = vadd.f32 %v384, %v1217
      %v1219 = vpop.f32.mrb[0].mxu0
      %v1220 = vadd.f32 %v388, %v1219
      %v1221 = vpop.f32.mrb[0].mxu0
      %v1222 = vadd.f32 %v384, %v1221
      %v1223 = vpop.f32.mrb[0].mxu0
      %v1224 = vadd.f32 %v388, %v1223
      %1225 = vmatprep.mubr.bf16.mxu0 0
      %1226 = vmatmul.mubr.bf16.gmra.mrb[0].mxu0 %v462
      %v1227 = vpop.f32.mrb[0].mxu0
      %v1228 = vadd.f32 %v384, %v1227
      %v1229 = vpop.f32.mrb[0].mxu0
      %v1230 = vadd.f32 %v388, %v1229
      %v1231 = vpop.f32.mrb[0].mxu0
      %v1232 = vadd.f32 %v384, %v1231
      %v1233 = vpop.f32.mrb[0].mxu0
      %v1234 = vadd.f32 %v388, %v1233
      %1235 = vmatprep.mubr.bf16.mxu0 0
      %1236 = vmatmul.mubr.bf16.gmra.mrb[0].mxu0 %v463
      %v1237 = vpop.f32.mrb[0].mxu0
      %v1238 = vadd.f32 %v384, %v1237
      %v1239 = vpop.f32.mrb[0].mxu0
      %v1240 = vadd.f32 %v388, %v1239
      %v1241 = vpop.f32.mrb[0].mxu0
      %v1242 = vadd.f32 %v384, %v1241
      %v1243 = vpop.f32.mrb[0].mxu0
      %v1244 = vadd.f32 %v388, %v1243
      %1245 = vmatprep.mubr.bf16.mxu0 0
      %1246 = vmatmul.mubr.bf16.gmra.mrb[0].mxu0 %v464
      %v1247 = vpop.f32.mrb[0].mxu0
      %v1248 = vadd.f32 %v384, %v1247
      %v1249 = vpop.f32.mrb[0].mxu0
      %v1250 = vadd.f32 %v388, %v1249
      %v1251 = vpop.f32.mrb[0].mxu0
      %v1252 = vadd.f32 %v384, %v1251
      %v1253 = vpop.f32.mrb[0].mxu0
      %v1254 = vadd.f32 %v388, %v1253
      %1255 = vmatprep.mubr.bf16.mxu0 0
      %1256 = vmatmul.mubr.bf16.gmra.mrb[0].mxu0 %v465
      %v1257 = vpop.f32.mrb[0].mxu0
      %v1258 = vadd.f32 %v384, %v1257
      %v1259 = vpop.f32.mrb[0].mxu0
      %v1260 = vadd.f32 %v388, %v1259
      %v1261 = vpop.f32.mrb[0].mxu0
      %v1262 = vadd.f32 %v384, %v1261
      %v1263 = vpop.f32.mrb[0].mxu0
      %v1264 = vadd.f32 %v388, %v1263
      %1265 = vmatprep.mubr.bf16.mxu0 0
      %1266 = vmatmul.mubr.bf16.gmra.mrb[0].mxu0 %v466
      %v1267 = vpop.f32.mrb[0].mxu0
      %v1268 = vadd.f32 %v384, %v1267
      %v1269 = vpop.f32.mrb[0].mxu0
      %v1270 = vadd.f32 %v388, %v1269
      %v1271 = vpop.f32.mrb[0].mxu0
      %v1272 = vadd.f32 %v384, %v1271
      %v1273 = vpop.f32.mrb[0].mxu0
      %v1274 = vadd.f32 %v388, %v1273
      %1275 = vmatprep.mubr.bf16.mxu0 0
      %1276 = vmatmul.mubr.bf16.gmra.mrb[0].mxu0 %v467
      %v1277 = vpop.f32.mrb[0].mxu0
      %v1278 = vadd.f32 %v384, %v1277
      %v1279 = vpop.f32.mrb[0].mxu0
      %v1280 = vadd.f32 %v388, %v1279
      %v1281 = vpop.f32.mrb[0].mxu0
      %v1282 = vpop.f32.mrb[0].mxu0
      %1283 = vdwg.mxu0
      %1284 = vmatprep.subr.bf16.mxu0 %v680
      %1285 = vmatpush1.bf16.msra.mxu0 %v679
      %1286 = vmatprep.subr.bf16.mxu0 %v688
      %1287 = vmatpush1.bf16.msra.mxu0 %v687
      %1288 = vmatprep.subr.bf16.mxu0 %v696
      %1289 = vmatpush1.bf16.msra.mxu0 %v695
      %1290 = vmatprep.subr.bf16.mxu0 %v704
      %1291 = vmatpush1.bf16.msra.mxu0 %v703
      %1292 = vmatprep.subr.bf16.mxu0 %v712
      %1293 = vmatpush1.bf16.msra.mxu0 %v711
      %1294 = vmatprep.subr.bf16.mxu0 %v720
      %1295 = vmatpush1.bf16.msra.mxu0 %v719
      %1296 = vmatprep.subr.bf16.mxu0 %v728
      %1297 = vmatpush1.bf16.msra.mxu0 %v727
      %1298 = vmatprep.subr.bf16.mxu0 %v736
      %1299 = vmatpush1.bf16.msra.mxu0 %v735
      %1300 = vmatprep.subr.bf16.mxu0 0
      %1301 = vmatpush1.bf16.msra.mxu0 0
      %1302 = vmatprep.subr.bf16.mxu0 0
      %1303 = vmatpush1.bf16.msra.mxu0 0
      %1304 = vmatprep.subr.bf16.mxu0 0
      %1305 = vmatpush1.bf16.msra.mxu0 0
      %1306 = vmatprep.subr.bf16.mxu0 0
      %1307 = vmatpush1.bf16.msra.mxu0 0
      %1308 = vmatprep.subr.bf16.mxu0 0
      %1309 = vmatpush1.bf16.msra.mxu0 0
      %1310 = vmatprep.subr.bf16.mxu0 0
      %1311 = vmatpush1.bf16.msra.mxu0 0
      %1312 = vmatprep.subr.bf16.mxu0 0
      %1313 = vmatpush1.bf16.msra.mxu0 0
      %1314 = vmatprep.subr.bf16.mxu0 0
      %1315 = vmatpush1.bf16.msra.mxu0 0
      %1316 = vmatprep.mubr.bf16.mxu0 0
      %1317 = vmatmul.mubr.bf16.gmra.mrb[0].mxu0 %v455
      %v1318 = vpop.f32.mrb[0].mxu0
      %v1319 = vadd.f32 %v392, %v1318
      %v1320 = vpop.f32.mrb[0].mxu0
      %v1321 = vadd.f32 %v396, %v1320
      %v1322 = vpop.f32.mrb[0].mxu0
      %v1323 = vadd.f32 %v392, %v1322
      %v1324 = vpop.f32.mrb[0].mxu0
      %v1325 = vadd.f32 %v396, %v1324
      %1326 = vmatprep.mubr.bf16.mxu0 0
      %1327 = vmatmul.mubr.bf16.gmra.mrb[0].mxu0 %v456
      %v1328 = vpop.f32.mrb[0].mxu0
      %v1329 = vadd.f32 %v392, %v1328
      %v1330 = vpop.f32.mrb[0].mxu0
      %v1331 = vadd.f32 %v396, %v1330
      %v1332 = vpop.f32.mrb[0].mxu0
      %v1333 = vadd.f32 %v392, %v1332
      %v1334 = vpop.f32.mrb[0].mxu0
      %v1335 = vadd.f32 %v396, %v1334
      %1336 = vmatprep.mubr.bf16.mxu0 0
      %1337 = vmatmul.mubr.bf16.gmra.mrb[0].mxu0 %v457
      %v1338 = vpop.f32.mrb[0].mxu0
      %v1339 = vadd.f32 %v392, %v1338
      %v1340 = vpop.f32.mrb[0].mxu0
      %v1341 = vadd.f32 %v396, %v1340
      %v1342 = vpop.f32.mrb[0].mxu0
      %v1343 = vadd.f32 %v392, %v1342
      %v1344 = vpop.f32.mrb[0].mxu0
      %v1345 = vadd.f32 %v396, %v1344
      %1346 = vmatprep.mubr.bf16.mxu0 0
      %1347 = vmatmul.mubr.bf16.gmra.mrb[0].mxu0 %v458
      %v1348 = vpop.f32.mrb[0].mxu0
      %v1349 = vadd.f32 %v392, %v1348
      %v1350 = vpop.f32.mrb[0].mxu0
      %v1351 = vadd.f32 %v396, %v1350
      %v1352 = vpop.f32.mrb[0].mxu0
      %v1353 = vadd.f32 %v392, %v1352
      %v1354 = vpop.f32.mrb[0].mxu0
      %v1355 = vadd.f32 %v396, %v1354
      %1356 = vmatprep.mubr.bf16.mxu0 0
      %1357 = vmatmul.mubr.bf16.gmra.mrb[0].mxu0 %v459
      %v1358 = vpop.f32.mrb[0].mxu0
      %v1359 = vadd.f32 %v392, %v1358
      %v1360 = vpop.f32.mrb[0].mxu0
      %v1361 = vadd.f32 %v396, %v1360
      %v1362 = vpop.f32.mrb[0].mxu0
      %v1363 = vadd.f32 %v392, %v1362
      %v1364 = vpop.f32.mrb[0].mxu0
      %v1365 = vadd.f32 %v396, %v1364
      %1366 = vmatprep.mubr.bf16.mxu0 0
      %1367 = vmatmul.mubr.bf16.gmra.mrb[0].mxu0 %v460
      %v1368 = vpop.f32.mrb[0].mxu0
      %v1369 = vadd.f32 %v392, %v1368
      %v1370 = vpop.f32.mrb[0].mxu0
      %v1371 = vadd.f32 %v396, %v1370
      %v1372 = vpop.f32.mrb[0].mxu0
      %v1373 = vadd.f32 %v392, %v1372
      %v1374 = vpop.f32.mrb[0].mxu0
      %v1375 = vadd.f32 %v396, %v1374
      %1376 = vmatprep.mubr.bf16.mxu0 0
      %1377 = vmatmul.mubr.bf16.gmra.mrb[0].mxu0 %v461
      %v1378 = vpop.f32.mrb[0].mxu0
      %v1379 = vadd.f32 %v392, %v1378
      %v1380 = vpop.f32.mrb[0].mxu0
      %v1381 = vadd.f32 %v396, %v1380
      %v1382 = vpop.f32.mrb[0].mxu0
      %v1383 = vadd.f32 %v392, %v1382
      %v1384 = vpop.f32.mrb[0].mxu0
      %v1385 = vadd.f32 %v396, %v1384
      %1386 = vmatprep.mubr.bf16.mxu0 0
      %1387 = vmatmul.mubr.bf16.gmra.mrb[0].mxu0 %v462
      %v1388 = vpop.f32.mrb[0].mxu0
      %v1389 = vadd.f32 %v392, %v1388
      %v1390 = vpop.f32.mrb[0].mxu0
      %v1391 = vadd.f32 %v396, %v1390
      %v1392 = vpop.f32.mrb[0].mxu0
      %v1393 = vadd.f32 %v392, %v1392
      %v1394 = vpop.f32.mrb[0].mxu0
      %v1395 = vadd.f32 %v396, %v1394
      %1396 = vmatprep.mubr.bf16.mxu0 0
      %1397 = vmatmul.mubr.bf16.gmra.mrb[0].mxu0 %v463
      %v1398 = vpop.f32.mrb[0].mxu0
      %v1399 = vadd.f32 %v392, %v1398
      %v1400 = vpop.f32.mrb[0].mxu0
      %v1401 = vadd.f32 %v396, %v1400
      %v1402 = vpop.f32.mrb[0].mxu0
      %v1403 = vadd.f32 %v392, %v1402
      %v1404 = vpop.f32.mrb[0].mxu0
      %v1405 = vadd.f32 %v396, %v1404
      %1406 = vmatprep.mubr.bf16.mxu0 0
      %1407 = vmatmul.mubr.bf16.gmra.mrb[0].mxu0 %v464
      %v1408 = vpop.f32.mrb[0].mxu0
      %v1409 = vadd.f32 %v392, %v1408
      %v1410 = vpop.f32.mrb[0].mxu0
      %v1411 = vadd.f32 %v396, %v1410
      %v1412 = vpop.f32.mrb[0].mxu0
      %v1413 = vadd.f32 %v392, %v1412
      %v1414 = vpop.f32.mrb[0].mxu0
      %v1415 = vadd.f32 %v396, %v1414
      %1416 = vmatprep.mubr.bf16.mxu0 0
      %1417 = vmatmul.mubr.bf16.gmra.mrb[0].mxu0 %v465
      %v1418 = vpop.f32.mrb[0].mxu0
      %v1419 = vadd.f32 %v392, %v1418
      %v1420 = vpop.f32.mrb[0].mxu0
      %v1421 = vadd.f32 %v396, %v1420
      %v1422 = vpop.f32.mrb[0].mxu0
      %v1423 = vadd.f32 %v392, %v1422
      %v1424 = vpop.f32.mrb[0].mxu0
      %v1425 = vadd.f32 %v396, %v1424
      %1426 = vmatprep.mubr.bf16.mxu0 0
      %1427 = vmatmul.mubr.bf16.gmra.mrb[0].mxu0 %v466
      %v1428 = vpop.f32.mrb[0].mxu0
      %v1429 = vadd.f32 %v392, %v1428
      %v1430 = vpop.f32.mrb[0].mxu0
      %v1431 = vadd.f32 %v396, %v1430
      %v1432 = vpop.f32.mrb[0].mxu0
      %v1433 = vadd.f32 %v392, %v1432
      %v1434 = vpop.f32.mrb[0].mxu0
      %v1435 = vadd.f32 %v396, %v1434
      %1436 = vmatprep.mubr.bf16.mxu0 0
      %1437 = vmatmul.mubr.bf16.gmra.mrb[0].mxu0 %v467
      %v1438 = vpop.f32.mrb[0].mxu0
      %v1439 = vadd.f32 %v392, %v1438
      %v1440 = vpop.f32.mrb[0].mxu0
      %v1441 = vadd.f32 %v396, %v1440
      %v1442 = vpop.f32.mrb[0].mxu0
      %v1443 = vpop.f32.mrb[0].mxu0
      %1444 = vdwg.mxu0
      %v1445 = vmax.f32 %v836, 0.0
      %v1446 = vmax.f32 %v838, 0.0
      %v1447 = vmax.f32 %v997, 0.0
      %v1448 = vmax.f32 %v999, 0.0
      %v1449 = vmax.f32 %v1158, 0.0
      %v1450 = vmax.f32 %v1160, 0.0
      %v1451 = vmax.f32 %v1319, 0.0
      %v1452 = vmax.f32 %v1321, 0.0
      %v1453 = vmax.f32 %v840, 0.0
      %v1454 = vmax.f32 %v842, 0.0
      %v1455 = vmax.f32 %v1001, 0.0
      %v1456 = vmax.f32 %v1003, 0.0
      %v1457 = vmax.f32 %v1162, 0.0
      %v1458 = vmax.f32 %v1164, 0.0
      %v1459 = vmax.f32 %v1323, 0.0
      %v1460 = vmax.f32 %v1325, 0.0
      %v1461 = vmax.f32 %v846, 0.0
      %v1462 = vmax.f32 %v848, 0.0
      %v1463 = vmax.f32 %v1007, 0.0
      %v1464 = vmax.f32 %v1009, 0.0
      %v1465 = vmax.f32 %v1168, 0.0
      %v1466 = vmax.f32 %v1170, 0.0
      %v1467 = vmax.f32 %v1329, 0.0
      %v1468 = vmax.f32 %v1331, 0.0
      %v1469 = vmax.f32 %v850, 0.0
      %v1470 = vmax.f32 %v852, 0.0
      %v1471 = vmax.f32 %v1011, 0.0
      %v1472 = vmax.f32 %v1013, 0.0
      %v1473 = vmax.f32 %v1172, 0.0
      %v1474 = vmax.f32 %v1174, 0.0
      %v1475 = vmax.f32 %v1333, 0.0
      %v1476 = vmax.f32 %v1335, 0.0
      %v1477 = vmax.f32 %v856, 0.0
      %v1478 = vmax.f32 %v858, 0.0
      %v1479 = vmax.f32 %v1017, 0.0
      %v1480 = vmax.f32 %v1019, 0.0
      %v1481 = vmax.f32 %v1178, 0.0
      %v1482 = vmax.f32 %v1180, 0.0
      %v1483 = vmax.f32 %v1339, 0.0
      %v1484 = vmax.f32 %v1341, 0.0
      %v1485 = vmax.f32 %v860, 0.0
      %v1486 = vmax.f32 %v862, 0.0
      %v1487 = vmax.f32 %v1021, 0.0
      %v1488 = vmax.f32 %v1023, 0.0
      %v1489 = vmax.f32 %v1182, 0.0
      %v1490 = vmax.f32 %v1184, 0.0
      %v1491 = vmax.f32 %v1343, 0.0
      %v1492 = vmax.f32 %v1345, 0.0
      %v1493 = vmax.f32 %v866, 0.0
      %v1494 = vmax.f32 %v868, 0.0
      %v1495 = vmax.f32 %v1027, 0.0
      %v1496 = vmax.f32 %v1029, 0.0
      %v1497 = vmax.f32 %v1188, 0.0
      %v1498 = vmax.f32 %v1190, 0.0
      %v1499 = vmax.f32 %v1349, 0.0
      %v1500 = vmax.f32 %v1351, 0.0
      %v1501 = vmax.f32 %v870, 0.0
      %v1502 = vmax.f32 %v872, 0.0
      %v1503 = vmax.f32 %v1031, 0.0
      %v1504 = vmax.f32 %v1033, 0.0
      %v1505 = vmax.f32 %v1192, 0.0
      %v1506 = vmax.f32 %v1194, 0.0
      %v1507 = vmax.f32 %v1353, 0.0
      %v1508 = vmax.f32 %v1355, 0.0
      %v1509 = vmax.f32 %v876, 0.0
      %v1510 = vmax.f32 %v878, 0.0
      %v1511 = vmax.f32 %v1037, 0.0
      %v1512 = vmax.f32 %v1039, 0.0
      %v1513 = vmax.f32 %v1198, 0.0
      %v1514 = vmax.f32 %v1200, 0.0
      %v1515 = vmax.f32 %v1359, 0.0
      %v1516 = vmax.f32 %v1361, 0.0
      %v1517 = vmax.f32 %v880, 0.0
      %v1518 = vmax.f32 %v882, 0.0
      %v1519 = vmax.f32 %v1041, 0.0
      %v1520 = vmax.f32 %v1043, 0.0
      %v1521 = vmax.f32 %v1202, 0.0
      %v1522 = vmax.f32 %v1204, 0.0
      %v1523 = vmax.f32 %v1363, 0.0
      %v1524 = vmax.f32 %v1365, 0.0
      %v1525 = vmax.f32 %v886, 0.0
      %v1526 = vmax.f32 %v888, 0.0
      %v1527 = vmax.f32 %v1047, 0.0
      %v1528 = vmax.f32 %v1049, 0.0
      %v1529 = vmax.f32 %v1208, 0.0
      %v1530 = vmax.f32 %v1210, 0.0
      %v1531 = vmax.f32 %v1369, 0.0
      %v1532 = vmax.f32 %v1371, 0.0
      %v1533 = vmax.f32 %v890, 0.0
      %v1534 = vmax.f32 %v892, 0.0
      %v1535 = vmax.f32 %v1051, 0.0
      %v1536 = vmax.f32 %v1053, 0.0
      %v1537 = vmax.f32 %v1212, 0.0
      %v1538 = vmax.f32 %v1214, 0.0
      %v1539 = vmax.f32 %v1373, 0.0
      %v1540 = vmax.f32 %v1375, 0.0
      %v1541 = vmax.f32 %v896, 0.0
      %v1542 = vmax.f32 %v898, 0.0
      %v1543 = vmax.f32 %v1057, 0.0
      %v1544 = vmax.f32 %v1059, 0.0
      %v1545 = vmax.f32 %v1218, 0.0
      %v1546 = vmax.f32 %v1220, 0.0
      %v1547 = vmax.f32 %v1379, 0.0
      %v1548 = vmax.f32 %v1381, 0.0
      %v1549 = vmax.f32 %v900, 0.0
      %v1550 = vmax.f32 %v902, 0.0
      %v1551 = vmax.f32 %v1061, 0.0
      %v1552 = vmax.f32 %v1063, 0.0
      %v1553 = vmax.f32 %v1222, 0.0
      %v1554 = vmax.f32 %v1224, 0.0
      %v1555 = vmax.f32 %v1383, 0.0
      %v1556 = vmax.f32 %v1385, 0.0
      %v1557 = vmax.f32 %v906, 0.0
      %v1558 = vmax.f32 %v908, 0.0
      %v1559 = vmax.f32 %v1067, 0.0
      %v1560 = vmax.f32 %v1069, 0.0
      %v1561 = vmax.f32 %v1228, 0.0
      %v1562 = vmax.f32 %v1230, 0.0
      %v1563 = vmax.f32 %v1389, 0.0
      %v1564 = vmax.f32 %v1391, 0.0
      %v1565 = vmax.f32 %v910, 0.0
      %v1566 = vmax.f32 %v912, 0.0
      %v1567 = vmax.f32 %v1071, 0.0
      %v1568 = vmax.f32 %v1073, 0.0
      %v1569 = vmax.f32 %v1232, 0.0
      %v1570 = vmax.f32 %v1234, 0.0
      %v1571 = vmax.f32 %v1393, 0.0
      %v1572 = vmax.f32 %v1395, 0.0
      %v1573 = vmax.f32 %v916, 0.0
      %v1574 = vmax.f32 %v918, 0.0
      %v1575 = vmax.f32 %v1077, 0.0
      %v1576 = vmax.f32 %v1079, 0.0
      %v1577 = vmax.f32 %v1238, 0.0
      %v1578 = vmax.f32 %v1240, 0.0
      %v1579 = vmax.f32 %v1399, 0.0
      %v1580 = vmax.f32 %v1401, 0.0
      %v1581 = vmax.f32 %v920, 0.0
      %v1582 = vmax.f32 %v922, 0.0
      %v1583 = vmax.f32 %v1081, 0.0
      %v1584 = vmax.f32 %v1083, 0.0
      %v1585 = vmax.f32 %v1242, 0.0
      %v1586 = vmax.f32 %v1244, 0.0
      %v1587 = vmax.f32 %v1403, 0.0
      %v1588 = vmax.f32 %v1405, 0.0
      %v1589 = vmax.f32 %v926, 0.0
      %v1590 = vmax.f32 %v928, 0.0
      %v1591 = vmax.f32 %v1087, 0.0
      %v1592 = vmax.f32 %v1089, 0.0
      %v1593 = vmax.f32 %v1248, 0.0
      %v1594 = vmax.f32 %v1250, 0.0
      %v1595 = vmax.f32 %v1409, 0.0
      %v1596 = vmax.f32 %v1411, 0.0
      %v1597 = vmax.f32 %v930, 0.0
      %v1598 = vmax.f32 %v932, 0.0
      %v1599 = vmax.f32 %v1091, 0.0
      %v1600 = vmax.f32 %v1093, 0.0
      %v1601 = vmax.f32 %v1252, 0.0
      %v1602 = vmax.f32 %v1254, 0.0
      %v1603 = vmax.f32 %v1413, 0.0
      %v1604 = vmax.f32 %v1415, 0.0
      %v1605 = vmax.f32 %v936, 0.0
      %v1606 = vmax.f32 %v938, 0.0
      %v1607 = vmax.f32 %v1097, 0.0
      %v1608 = vmax.f32 %v1099, 0.0
      %v1609 = vmax.f32 %v1258, 0.0
      %v1610 = vmax.f32 %v1260, 0.0
      %v1611 = vmax.f32 %v1419, 0.0
      %v1612 = vmax.f32 %v1421, 0.0
      %v1613 = vmax.f32 %v940, 0.0
      %v1614 = vmax.f32 %v942, 0.0
      %v1615 = vmax.f32 %v1101, 0.0
      %v1616 = vmax.f32 %v1103, 0.0
      %v1617 = vmax.f32 %v1262, 0.0
      %v1618 = vmax.f32 %v1264, 0.0
      %v1619 = vmax.f32 %v1423, 0.0
      %v1620 = vmax.f32 %v1425, 0.0
      %v1621 = vmax.f32 %v946, 0.0
      %v1622 = vmax.f32 %v948, 0.0
      %v1623 = vmax.f32 %v1107, 0.0
      %v1624 = vmax.f32 %v1109, 0.0
      %v1625 = vmax.f32 %v1268, 0.0
      %v1626 = vmax.f32 %v1270, 0.0
      %v1627 = vmax.f32 %v1429, 0.0
      %v1628 = vmax.f32 %v1431, 0.0
      %v1629 = vmax.f32 %v950, 0.0
      %v1630 = vmax.f32 %v952, 0.0
      %v1631 = vmax.f32 %v1111, 0.0
      %v1632 = vmax.f32 %v1113, 0.0
      %v1633 = vmax.f32 %v1272, 0.0
      %v1634 = vmax.f32 %v1274, 0.0
      %v1635 = vmax.f32 %v1433, 0.0
      %v1636 = vmax.f32 %v1435, 0.0
      %v1637 = vmax.f32 %v956, 0.0
      %v1638 = vmax.f32 %v958, 0.0
      %v1639 = vmax.f32 %v1117, 0.0
      %v1640 = vmax.f32 %v1119, 0.0
      %v1641 = vmax.f32 %v1278, 0.0
      %v1642 = vmax.f32 %v1280, 0.0
      %v1643 = vmax.f32 %v1439, 0.0
      %v1644 = vmax.f32 %v1441, 0.0
      %v1645 = vpack.c.bf16 %v1453, %v1445
      %v1646 = vpack.c.bf16 %v1454, %v1446
      %v1647 = vpack.c.bf16 %v1455, %v1447
      %v1648 = vpack.c.bf16 %v1456, %v1448
      %v1649 = vpack.c.bf16 %v1457, %v1449
      %v1650 = vpack.c.bf16 %v1458, %v1450
      %v1651 = vpack.c.bf16 %v1459, %v1451
      %v1652 = vpack.c.bf16 %v1460, %v1452
      %v1653 = vpack.c.bf16 %v1469, %v1461
      %v1654 = vpack.c.bf16 %v1470, %v1462
      %v1655 = vpack.c.bf16 %v1471, %v1463
      %v1656 = vpack.c.bf16 %v1472, %v1464
      %v1657 = vpack.c.bf16 %v1473, %v1465
      %v1658 = vpack.c.bf16 %v1474, %v1466
      %v1659 = vpack.c.bf16 %v1475, %v1467
      %v1660 = vpack.c.bf16 %v1476, %v1468
      %v1661 = vpack.c.bf16 %v1485, %v1477
      %v1662 = vpack.c.bf16 %v1486, %v1478
      %v1663 = vpack.c.bf16 %v1487, %v1479
      %v1664 = vpack.c.bf16 %v1488, %v1480
      %v1665 = vpack.c.bf16 %v1489, %v1481
      %v1666 = vpack.c.bf16 %v1490, %v1482
      %v1667 = vpack.c.bf16 %v1491, %v1483
      %v1668 = vpack.c.bf16 %v1492, %v1484
      %v1669 = vpack.c.bf16 %v1501, %v1493
      %v1670 = vpack.c.bf16 %v1502, %v1494
      %v1671 = vpack.c.bf16 %v1503, %v1495
      %v1672 = vpack.c.bf16 %v1504, %v1496
      %v1673 = vpack.c.bf16 %v1505, %v1497
      %v1674 = vpack.c.bf16 %v1506, %v1498
      %v1675 = vpack.c.bf16 %v1507, %v1499
      %v1676 = vpack.c.bf16 %v1508, %v1500
      %v1677 = vpack.c.bf16 %v1517, %v1509
      %v1678 = vpack.c.bf16 %v1518, %v1510
      %v1679 = vpack.c.bf16 %v1519, %v1511
      %v1680 = vpack.c.bf16 %v1520, %v1512
      %v1681 = vpack.c.bf16 %v1521, %v1513
      %v1682 = vpack.c.bf16 %v1522, %v1514
      %v1683 = vpack.c.bf16 %v1523, %v1515
      %v1684 = vpack.c.bf16 %v1524, %v1516
      %v1685 = vpack.c.bf16 %v1533, %v1525
      %v1686 = vpack.c.bf16 %v1534, %v1526
      %v1687 = vpack.c.bf16 %v1535, %v1527
      %v1688 = vpack.c.bf16 %v1536, %v1528
      %v1689 = vpack.c.bf16 %v1537, %v1529
      %v1690 = vpack.c.bf16 %v1538, %v1530
      %v1691 = vpack.c.bf16 %v1539, %v1531
      %v1692 = vpack.c.bf16 %v1540, %v1532
      %v1693 = vpack.c.bf16 %v1549, %v1541
      %v1694 = vpack.c.bf16 %v1550, %v1542
      %v1695 = vpack.c.bf16 %v1551, %v1543
      %v1696 = vpack.c.bf16 %v1552, %v1544
      %v1697 = vpack.c.bf16 %v1553, %v1545
      %v1698 = vpack.c.bf16 %v1554, %v1546
      %v1699 = vpack.c.bf16 %v1555, %v1547
      %v1700 = vpack.c.bf16 %v1556, %v1548
      %v1701 = vpack.c.bf16 %v1565, %v1557
      %v1702 = vpack.c.bf16 %v1566, %v1558
      %v1703 = vpack.c.bf16 %v1567, %v1559
      %v1704 = vpack.c.bf16 %v1568, %v1560
      %v1705 = vpack.c.bf16 %v1569, %v1561
      %v1706 = vpack.c.bf16 %v1570, %v1562
      %v1707 = vpack.c.bf16 %v1571, %v1563
      %v1708 = vpack.c.bf16 %v1572, %v1564
      %v1709 = vpack.c.bf16 %v1581, %v1573
      %v1710 = vpack.c.bf16 %v1582, %v1574
      %v1711 = vpack.c.bf16 %v1583, %v1575
      %v1712 = vpack.c.bf16 %v1584, %v1576
      %v1713 = vpack.c.bf16 %v1585, %v1577
      %v1714 = vpack.c.bf16 %v1586, %v1578
      %v1715 = vpack.c.bf16 %v1587, %v1579
      %v1716 = vpack.c.bf16 %v1588, %v1580
      %v1717 = vpack.c.bf16 %v1597, %v1589
      %v1718 = vpack.c.bf16 %v1598, %v1590
      %v1719 = vpack.c.bf16 %v1599, %v1591
      %v1720 = vpack.c.bf16 %v1600, %v1592
      %v1721 = vpack.c.bf16 %v1601, %v1593
      %v1722 = vpack.c.bf16 %v1602, %v1594
      %v1723 = vpack.c.bf16 %v1603, %v1595
      %v1724 = vpack.c.bf16 %v1604, %v1596
      %v1725 = vpack.c.bf16 %v1613, %v1605
      %v1726 = vpack.c.bf16 %v1614, %v1606
      %v1727 = vpack.c.bf16 %v1615, %v1607
      %v1728 = vpack.c.bf16 %v1616, %v1608
      %v1729 = vpack.c.bf16 %v1617, %v1609
      %v1730 = vpack.c.bf16 %v1618, %v1610
      %v1731 = vpack.c.bf16 %v1619, %v1611
      %v1732 = vpack.c.bf16 %v1620, %v1612
      %v1733 = vpack.c.bf16 %v1629, %v1621
      %v1734 = vpack.c.bf16 %v1630, %v1622
      %v1735 = vpack.c.bf16 %v1631, %v1623
      %v1736 = vpack.c.bf16 %v1632, %v1624
      %v1737 = vpack.c.bf16 %v1633, %v1625
      %v1738 = vpack.c.bf16 %v1634, %v1626
      %v1739 = vpack.c.bf16 %v1635, %v1627
      %v1740 = vpack.c.bf16 %v1636, %v1628
      %v1741 = vpack.c.bf16 %v1637, %v1637
      %v1742 = vpack.c.bf16 %v1638, %v1638
      %v1743 = vpack.c.bf16 %v1639, %v1639
      %v1744 = vpack.c.bf16 %v1640, %v1640
      %v1745 = vpack.c.bf16 %v1641, %v1641
      %v1746 = vpack.c.bf16 %v1642, %v1642
      %v1747 = vpack.c.bf16 %v1643, %v1643
      %v1748 = vpack.c.bf16 %v1644, %v1644
      %v1749 = vld [vmem:[%s3] sm:$0xff]
      %v1750 = vld [vmem:[%s3 + $0x8] sm:$0xff]
      %v1751 = vld [vmem:[%s3 + $0x10] sm:$0xff]
      %v1752 = vld [vmem:[%s3 + $0x18] sm:$0xff]
      %v1753 = vld [vmem:[%s3 + $0x20] sm:$0xff]
      %v1754 = vld [vmem:[%s3 + $0x28] sm:$0xff]
      %v1755 = vld [vmem:[%s3 + $0x30] sm:$0xff]
      %v1756 = vld [vmem:[%s3 + $0x38] sm:$0xff]
      %v1757 = vld [vmem:[%s3 + $0x40] sm:$0xff]
      %v1758 = vld [vmem:[%s3 + $0x48] sm:$0xff]
      %v1759 = vld [vmem:[%s3 + $0x50] sm:$0xff]
      %v1760 = vld [vmem:[%s3 + $0x58] sm:$0xff]
      %v1761 = vld [vmem:[%s3 + $0x60] sm:$0xff]
      %v1762 = vld [vmem:[%s3 + $0x68] sm:$0xff]
      %v1763 = vld [vmem:[%s3 + $0x70] sm:$0xff]
      %v1764 = vld [vmem:[%s3 + $0x78] sm:$0xff]
      %v1765 = vld [vmem:[%s3 + $0x80] sm:$0xff]
      %v1766 = vld [vmem:[%s3 + $0x88] sm:$0xff]
      %v1767 = vld [vmem:[%s3 + $0x90] sm:$0xff]
      %v1768 = vld [vmem:[%s3 + $0x98] sm:$0xff]
      %v1769 = vld [vmem:[%s3 + $0xa0] sm:$0xff]
      %v1770 = vld [vmem:[%s3 + $0xa8] sm:$0xff]
      %v1771 = vld [vmem:[%s3 + $0xb0] sm:$0xff]
      %v1772 = vld [vmem:[%s3 + $0xb8] sm:$0xff]
      %v1773 = vld [vmem:[%s3 + $0xc0] sm:$0xff]
      %v1774 = vld [vmem:[%s3 + $0xc8] sm:$0xff]
      %v1775 = vld [vmem:[%s3 + $0xd0] sm:$0xff]
      %v1776 = vld [vmem:[%s3 + $0xd8] sm:$0xff]
      %v1777 = vld [vmem:[%s3 + $0xe0] sm:$0xff]
      %v1778 = vld [vmem:[%s3 + $0xe8] sm:$0xff]
      %v1779 = vld [vmem:[%s3 + $0xf0] sm:$0xff]
      %v1780 = vld [vmem:[%s3 + $0xf8] sm:$0xff]
      %v1781 = vld [vmem:[%s3 + $0x100] sm:$0xff]
      %v1782 = vld [vmem:[%s3 + $0x108] sm:$0xff]
      %v1783 = vld [vmem:[%s3 + $0x110] sm:$0xff]
      %v1784 = vld [vmem:[%s3 + $0x118] sm:$0xff]
      %v1785 = vld [vmem:[%s3 + $0x120] sm:$0xff]
      %v1786 = vld [vmem:[%s3 + $0x128] sm:$0xff]
      %v1787 = vld [vmem:[%s3 + $0x130] sm:$0xff]
      %v1788 = vld [vmem:[%s3 + $0x138] sm:$0xff]
      %v1789 = vld [vmem:[%s3 + $0x140] sm:$0xff]
      %v1790 = vld [vmem:[%s3 + $0x148] sm:$0xff]
      %v1791 = vld [vmem:[%s3 + $0x150] sm:$0xff]
      %v1792 = vld [vmem:[%s3 + $0x158] sm:$0xff]
      %v1793 = vld [vmem:[%s3 + $0x160] sm:$0xff]
      %v1794 = vld [vmem:[%s3 + $0x168] sm:$0xff]
      %v1795 = vld [vmem:[%s3 + $0x170] sm:$0xff]
      %v1796 = vld [vmem:[%s3 + $0x178] sm:$0xff]
      %v1797 = vld [vmem:[%s3 + $0x180] sm:$0xff]
      %v1798 = vld [vmem:[%s3 + $0x188] sm:$0xff]
      %v1799 = vld [vmem:[%s3 + $0x190] sm:$0xff]
      %v1800 = vld [vmem:[%s3 + $0x198] sm:$0xff]
      %v1801 = vld [vmem:[%s3 + $0x1a0] sm:$0xff]
      %v1802 = vld [vmem:[%s3 + $0x1a8] sm:$0xff]
      %v1803 = vld [vmem:[%s3 + $0x1b0] sm:$0xff]
      %v1804 = vld [vmem:[%s3 + $0x1b8] sm:$0xff]
      %v1805 = vld [vmem:[%s3 + $0x1c0] sm:$0xff]
      %v1806 = vld [vmem:[%s3 + $0x1c8] sm:$0xff]
      %v1807 = vld [vmem:[%s3 + $0x1d0] sm:$0xff]
      %v1808 = vld [vmem:[%s3 + $0x1d8] sm:$0xff]
      %v1809 = vld [vmem:[%s3 + $0x1e0] sm:$0xff]
      %v1810 = vld [vmem:[%s3 + $0x1e8] sm:$0xff]
      %v1811 = vld [vmem:[%s3 + $0x1f0] sm:$0xff]
      %v1812 = vld [vmem:[%s3 + $0x1f8] sm:$0xff]
      %v1813 = vld [vmem:[%s3 + $0x200] sm:$0xff]
      %v1814 = vld [vmem:[%s3 + $0x208] sm:$0xff]
      %v1815 = vld [vmem:[%s3 + $0x210] sm:$0xff]
      %v1816 = vld [vmem:[%s3 + $0x218] sm:$0xff]
      %v1817 = vld [vmem:[%s3 + $0x220] sm:$0xff]
      %v1818 = vld [vmem:[%s3 + $0x228] sm:$0xff]
      %v1819 = vld [vmem:[%s3 + $0x230] sm:$0xff]
      %v1820 = vld [vmem:[%s3 + $0x238] sm:$0xff]
      %v1821 = vld [vmem:[%s3 + $0x240] sm:$0xff]
      %v1822 = vld [vmem:[%s3 + $0x248] sm:$0xff]
      %v1823 = vld [vmem:[%s3 + $0x250] sm:$0xff]
      %v1824 = vld [vmem:[%s3 + $0x258] sm:$0xff]
      %v1825 = vld [vmem:[%s3 + $0x260] sm:$0xff]
      %v1826 = vld [vmem:[%s3 + $0x268] sm:$0xff]
      %v1827 = vld [vmem:[%s3 + $0x270] sm:$0xff]
      %v1828 = vld [vmem:[%s3 + $0x278] sm:$0xff]
      %v1829 = vld [vmem:[%s3 + $0x280] sm:$0xff]
      %v1830 = vld [vmem:[%s3 + $0x288] sm:$0xff]
      %v1831 = vld [vmem:[%s3 + $0x290] sm:$0xff]
      %v1832 = vld [vmem:[%s3 + $0x298] sm:$0xff]
      %v1833 = vld [vmem:[%s3 + $0x2a0] sm:$0xff]
      %v1834 = vld [vmem:[%s3 + $0x2a8] sm:$0xff]
      %v1835 = vld [vmem:[%s3 + $0x2b0] sm:$0xff]
      %v1836 = vld [vmem:[%s3 + $0x2b8] sm:$0xff]
      %v1837 = vld [vmem:[%s3 + $0x2c0] sm:$0xff]
      %v1838 = vld [vmem:[%s3 + $0x2c8] sm:$0xff]
      %v1839 = vld [vmem:[%s3 + $0x2d0] sm:$0xff]
      %v1840 = vld [vmem:[%s3 + $0x2d8] sm:$0xff]
      %v1841 = vld [vmem:[%s3 + $0x2e0] sm:$0xff]
      %v1842 = vld [vmem:[%s3 + $0x2e8] sm:$0xff]
      %v1843 = vld [vmem:[%s3 + $0x2f0] sm:$0xff]
      %v1844 = vld [vmem:[%s3 + $0x2f8] sm:$0xff]
      %v1845 = vld [vmem:[%s3 + $0x300] sm:$0xff]
      %v1846 = vld [vmem:[%s3 + $0x308] sm:$0xff]
      %v1847 = vld [vmem:[%s3 + $0x310] sm:$0xff]
      %v1848 = vld [vmem:[%s3 + $0x318] sm:$0xff]
      %v1849 = vld [vmem:[%s3 + $0x320] sm:$0xff]
      %v1850 = vld [vmem:[%s3 + $0x328] sm:$0xff]
      %v1851 = vld [vmem:[%s3 + $0x330] sm:$0xff]
      %v1852 = vld [vmem:[%s3 + $0x338] sm:$0xff]
      %v1853 = vld [vmem:[%s3 + $0x340] sm:$0xff]
      %v1854 = vld [vmem:[%s3 + $0x348] sm:$0xff]
      %v1855 = vld [vmem:[%s3 + $0x350] sm:$0xff]
      %v1856 = vld [vmem:[%s3 + $0x358] sm:$0xff]
      %v1857 = vld [vmem:[%s3 + $0x360] sm:$0xff]
      %v1858 = vld [vmem:[%s3 + $0x368] sm:$0xff]
      %v1859 = vld [vmem:[%s3 + $0x370] sm:$0xff]
      %v1860 = vld [vmem:[%s3 + $0x378] sm:$0xff]
      %v1861 = vld [vmem:[%s3 + $0x380] sm:$0xff]
      %v1862 = vld [vmem:[%s3 + $0x388] sm:$0xff]
      %v1863 = vld [vmem:[%s3 + $0x390] sm:$0xff]
      %v1864 = vld [vmem:[%s3 + $0x398] sm:$0xff]
      %v1865 = vld [vmem:[%s3 + $0x3a0] sm:$0xff]
      %v1866 = vld [vmem:[%s3 + $0x3a8] sm:$0xff]
      %v1867 = vld [vmem:[%s3 + $0x3b0] sm:$0xff]
      %v1868 = vld [vmem:[%s3 + $0x3b8] sm:$0xff]
      %v1869 = vld [vmem:[%s3 + $0x3c0] sm:$0xff]
      %v1870 = vld [vmem:[%s3 + $0x3c8] sm:$0xff]
      %v1871 = vld [vmem:[%s3 + $0x3d0] sm:$0xff]
      %v1872 = vld [vmem:[%s3 + $0x3d8] sm:$0xff]
      %v1873 = vld [vmem:[%s3 + $0x3e0] sm:$0xff]
      %v1874 = vld [vmem:[%s3 + $0x3e8] sm:$0xff]
      %v1875 = vld [vmem:[%s3 + $0x3f0] sm:$0xff]
      %v1876 = vld [vmem:[%s3 + $0x3f8] sm:$0xff]
      %v2005 = vunpack.c.l.b16 %v1749
      %v2006 = vunpack.c.h.b16 %v1749
      %v2007 = vunpack.c.l.b16 %v1750
      %v2008 = vunpack.c.h.b16 %v1750
      %v2009 = vunpack.c.l.b16 %v1751
      %v2010 = vunpack.c.h.b16 %v1751
      %v2011 = vunpack.c.l.b16 %v1752
      %v2012 = vunpack.c.h.b16 %v1752
      %v2013 = vunpack.c.l.b16 %v1753
      %v2014 = vunpack.c.h.b16 %v1753
      %v2015 = vunpack.c.l.b16 %v1754
      %v2016 = vunpack.c.h.b16 %v1754
      %v2017 = vunpack.c.l.b16 %v1755
      %v2018 = vunpack.c.h.b16 %v1755
      %v2019 = vunpack.c.l.b16 %v1756
      %v2020 = vunpack.c.h.b16 %v1756
      %v2021 = vunpack.c.l.b16 %v1757
      %v2022 = vunpack.c.h.b16 %v1757
      %v2023 = vunpack.c.l.b16 %v1758
      %v2024 = vunpack.c.h.b16 %v1758
      %v2025 = vunpack.c.l.b16 %v1759
      %v2026 = vunpack.c.h.b16 %v1759
      %v2027 = vunpack.c.l.b16 %v1760
      %v2028 = vunpack.c.h.b16 %v1760
      %v2029 = vunpack.c.l.b16 %v1761
      %v2030 = vunpack.c.h.b16 %v1761
      %v2031 = vunpack.c.l.b16 %v1762
      %v2032 = vunpack.c.h.b16 %v1762
      %v2033 = vunpack.c.l.b16 %v1763
      %v2034 = vunpack.c.h.b16 %v1763
      %v2035 = vunpack.c.l.b16 %v1764
      %v2036 = vunpack.c.h.b16 %v1764
      %v2037 = vunpack.c.l.b16 %v1765
      %v2038 = vunpack.c.h.b16 %v1765
      %v2039 = vunpack.c.l.b16 %v1766
      %v2040 = vunpack.c.h.b16 %v1766
      %v2041 = vunpack.c.l.b16 %v1767
      %v2042 = vunpack.c.h.b16 %v1767
      %v2043 = vunpack.c.l.b16 %v1768
      %v2044 = vunpack.c.h.b16 %v1768
      %v2045 = vunpack.c.l.b16 %v1769
      %v2046 = vunpack.c.h.b16 %v1769
      %v2047 = vunpack.c.l.b16 %v1770
      %v2048 = vunpack.c.h.b16 %v1770
      %v2049 = vunpack.c.l.b16 %v1771
      %v2050 = vunpack.c.h.b16 %v1771
      %v2051 = vunpack.c.l.b16 %v1772
      %v2052 = vunpack.c.h.b16 %v1772
      %v2053 = vunpack.c.l.b16 %v1773
      %v2054 = vunpack.c.h.b16 %v1773
      %v2055 = vunpack.c.l.b16 %v1774
      %v2056 = vunpack.c.h.b16 %v1774
      %v2057 = vunpack.c.l.b16 %v1775
      %v2058 = vunpack.c.h.b16 %v1775
      %v2059 = vunpack.c.l.b16 %v1776
      %v2060 = vunpack.c.h.b16 %v1776
      %v2061 = vunpack.c.l.b16 %v1777
      %v2062 = vunpack.c.h.b16 %v1777
      %v2063 = vunpack.c.l.b16 %v1778
      %v2064 = vunpack.c.h.b16 %v1778
      %v2065 = vunpack.c.l.b16 %v1779
      %v2066 = vunpack.c.h.b16 %v1779
      %v2067 = vunpack.c.l.b16 %v1780
      %v2068 = vunpack.c.h.b16 %v1780
      %v2069 = vunpack.c.l.b16 %v1781
      %v2070 = vunpack.c.h.b16 %v1781
      %v2071 = vunpack.c.l.b16 %v1782
      %v2072 = vunpack.c.h.b16 %v1782
      %v2073 = vunpack.c.l.b16 %v1783
      %v2074 = vunpack.c.h.b16 %v1783
      %v2075 = vunpack.c.l.b16 %v1784
      %v2076 = vunpack.c.h.b16 %v1784
      %v2077 = vunpack.c.l.b16 %v1785
      %v2078 = vunpack.c.h.b16 %v1785
      %v2079 = vunpack.c.l.b16 %v1786
      %v2080 = vunpack.c.h.b16 %v1786
      %v2081 = vunpack.c.l.b16 %v1787
      %v2082 = vunpack.c.h.b16 %v1787
      %v2083 = vunpack.c.l.b16 %v1788
      %v2084 = vunpack.c.h.b16 %v1788
      %v2085 = vunpack.c.l.b16 %v1789
      %v2086 = vunpack.c.h.b16 %v1789
      %v2087 = vunpack.c.l.b16 %v1790
      %v2088 = vunpack.c.h.b16 %v1790
      %v2089 = vunpack.c.l.b16 %v1791
      %v2090 = vunpack.c.h.b16 %v1791
      %v2091 = vunpack.c.l.b16 %v1792
      %v2092 = vunpack.c.h.b16 %v1792
      %v2093 = vunpack.c.l.b16 %v1793
      %v2094 = vunpack.c.h.b16 %v1793
      %v2095 = vunpack.c.l.b16 %v1794
      %v2096 = vunpack.c.h.b16 %v1794
      %v2097 = vunpack.c.l.b16 %v1795
      %v2098 = vunpack.c.h.b16 %v1795
      %v2099 = vunpack.c.l.b16 %v1796
      %v2100 = vunpack.c.h.b16 %v1796
      %v2101 = vunpack.c.l.b16 %v1797
      %v2102 = vunpack.c.h.b16 %v1797
      %v2103 = vunpack.c.l.b16 %v1798
      %v2104 = vunpack.c.h.b16 %v1798
      %v2105 = vunpack.c.l.b16 %v1799
      %v2106 = vunpack.c.h.b16 %v1799
      %v2107 = vunpack.c.l.b16 %v1800
      %v2108 = vunpack.c.h.b16 %v1800
      %v2109 = vunpack.c.l.b16 %v1801
      %v2110 = vunpack.c.h.b16 %v1801
      %v2111 = vunpack.c.l.b16 %v1802
      %v2112 = vunpack.c.h.b16 %v1802
      %v2113 = vunpack.c.l.b16 %v1803
      %v2114 = vunpack.c.h.b16 %v1803
      %v2115 = vunpack.c.l.b16 %v1804
      %v2116 = vunpack.c.h.b16 %v1804
      %v2117 = vunpack.c.l.b16 %v1805
      %v2118 = vunpack.c.h.b16 %v1805
      %v2119 = vunpack.c.l.b16 %v1806
      %v2120 = vunpack.c.h.b16 %v1806
      %v2121 = vunpack.c.l.b16 %v1807
      %v2122 = vunpack.c.h.b16 %v1807
      %v2123 = vunpack.c.l.b16 %v1808
      %v2124 = vunpack.c.h.b16 %v1808
      %v2125 = vunpack.c.l.b16 %v1809
      %v2126 = vunpack.c.h.b16 %v1809
      %v2127 = vunpack.c.l.b16 %v1810
      %v2128 = vunpack.c.h.b16 %v1810
      %v2129 = vunpack.c.l.b16 %v1811
      %v2130 = vunpack.c.h.b16 %v1811
      %v2131 = vunpack.c.l.b16 %v1812
      %v2132 = vunpack.c.h.b16 %v1812
      %v2133 = vunpack.c.l.b16 %v1813
      %v2134 = vunpack.c.h.b16 %v1813
      %v2135 = vunpack.c.l.b16 %v1814
      %v2136 = vunpack.c.h.b16 %v1814
      %v2137 = vunpack.c.l.b16 %v1815
      %v2138 = vunpack.c.h.b16 %v1815
      %v2139 = vunpack.c.l.b16 %v1816
      %v2140 = vunpack.c.h.b16 %v1816
      %v2141 = vunpack.c.l.b16 %v1817
      %v2142 = vunpack.c.h.b16 %v1817
      %v2143 = vunpack.c.l.b16 %v1818
      %v2144 = vunpack.c.h.b16 %v1818
      %v2145 = vunpack.c.l.b16 %v1819
      %v2146 = vunpack.c.h.b16 %v1819
      %v2147 = vunpack.c.l.b16 %v1820
      %v2148 = vunpack.c.h.b16 %v1820
      %v2149 = vunpack.c.l.b16 %v1821
      %v2150 = vunpack.c.h.b16 %v1821
      %v2151 = vunpack.c.l.b16 %v1822
      %v2152 = vunpack.c.h.b16 %v1822
      %v2153 = vunpack.c.l.b16 %v1823
      %v2154 = vunpack.c.h.b16 %v1823
      %v2155 = vunpack.c.l.b16 %v1824
      %v2156 = vunpack.c.h.b16 %v1824
      %v2157 = vunpack.c.l.b16 %v1825
      %v2158 = vunpack.c.h.b16 %v1825
      %v2159 = vunpack.c.l.b16 %v1826
      %v2160 = vunpack.c.h.b16 %v1826
      %v2161 = vunpack.c.l.b16 %v1827
      %v2162 = vunpack.c.h.b16 %v1827
      %v2163 = vunpack.c.l.b16 %v1828
      %v2164 = vunpack.c.h.b16 %v1828
      %v2165 = vunpack.c.l.b16 %v1829
      %v2166 = vunpack.c.h.b16 %v1829
      %v2167 = vunpack.c.l.b16 %v1830
      %v2168 = vunpack.c.h.b16 %v1830
      %v2169 = vunpack.c.l.b16 %v1831
      %v2170 = vunpack.c.h.b16 %v1831
      %v2171 = vunpack.c.l.b16 %v1832
      %v2172 = vunpack.c.h.b16 %v1832
      %v2173 = vunpack.c.l.b16 %v1833
      %v2174 = vunpack.c.h.b16 %v1833
      %v2175 = vunpack.c.l.b16 %v1834
      %v2176 = vunpack.c.h.b16 %v1834
      %v2177 = vunpack.c.l.b16 %v1835
      %v2178 = vunpack.c.h.b16 %v1835
      %v2179 = vunpack.c.l.b16 %v1836
      %v2180 = vunpack.c.h.b16 %v1836
      %v2181 = vunpack.c.l.b16 %v1837
      %v2182 = vunpack.c.h.b16 %v1837
      %v2183 = vunpack.c.l.b16 %v1838
      %v2184 = vunpack.c.h.b16 %v1838
      %v2185 = vunpack.c.l.b16 %v1839
      %v2186 = vunpack.c.h.b16 %v1839
      %v2187 = vunpack.c.l.b16 %v1840
      %v2188 = vunpack.c.h.b16 %v1840
      %v2189 = vunpack.c.l.b16 %v1841
      %v2190 = vunpack.c.h.b16 %v1841
      %v2191 = vunpack.c.l.b16 %v1842
      %v2192 = vunpack.c.h.b16 %v1842
      %v2193 = vunpack.c.l.b16 %v1843
      %v2194 = vunpack.c.h.b16 %v1843
      %v2195 = vunpack.c.l.b16 %v1844
      %v2196 = vunpack.c.h.b16 %v1844
      %v2197 = vunpack.c.l.b16 %v1845
      %v2198 = vunpack.c.h.b16 %v1845
      %v2199 = vunpack.c.l.b16 %v1846
      %v2200 = vunpack.c.h.b16 %v1846
      %v2201 = vunpack.c.l.b16 %v1847
      %v2202 = vunpack.c.h.b16 %v1847
      %v2203 = vunpack.c.l.b16 %v1848
      %v2204 = vunpack.c.h.b16 %v1848
      %v2205 = vunpack.c.l.b16 %v1849
      %v2206 = vunpack.c.h.b16 %v1849
      %v2207 = vunpack.c.l.b16 %v1850
      %v2208 = vunpack.c.h.b16 %v1850
      %v2209 = vunpack.c.l.b16 %v1851
      %v2210 = vunpack.c.h.b16 %v1851
      %v2211 = vunpack.c.l.b16 %v1852
      %v2212 = vunpack.c.h.b16 %v1852
      %v2213 = vunpack.c.l.b16 %v1853
      %v2214 = vunpack.c.h.b16 %v1853
      %v2215 = vunpack.c.l.b16 %v1854
      %v2216 = vunpack.c.h.b16 %v1854
      %v2217 = vunpack.c.l.b16 %v1855
      %v2218 = vunpack.c.h.b16 %v1855
      %v2219 = vunpack.c.l.b16 %v1856
      %v2220 = vunpack.c.h.b16 %v1856
      %v2221 = vunpack.c.l.b16 %v1857
      %v2222 = vunpack.c.h.b16 %v1857
      %v2223 = vunpack.c.l.b16 %v1858
      %v2224 = vunpack.c.h.b16 %v1858
      %v2225 = vunpack.c.l.b16 %v1859
      %v2226 = vunpack.c.h.b16 %v1859
      %v2227 = vunpack.c.l.b16 %v1860
      %v2228 = vunpack.c.h.b16 %v1860
      %v2229 = vunpack.c.l.b16 %v1861
      %v2230 = vunpack.c.h.b16 %v1861
      %v2231 = vunpack.c.l.b16 %v1862
      %v2232 = vunpack.c.h.b16 %v1862
      %v2233 = vunpack.c.l.b16 %v1863
      %v2234 = vunpack.c.h.b16 %v1863
      %v2235 = vunpack.c.l.b16 %v1864
      %v2236 = vunpack.c.h.b16 %v1864
      %v2237 = vunpack.c.l.b16 %v1865
      %v2238 = vunpack.c.h.b16 %v1865
      %v2239 = vunpack.c.l.b16 %v1866
      %v2240 = vunpack.c.h.b16 %v1866
      %v2241 = vunpack.c.l.b16 %v1867
      %v2242 = vunpack.c.h.b16 %v1867
      %v2243 = vunpack.c.l.b16 %v1868
      %v2244 = vunpack.c.h.b16 %v1868
      %v2245 = vunpack.c.l.b16 %v1869
      %v2246 = vunpack.c.h.b16 %v1869
      %v2247 = vunpack.c.l.b16 %v1870
      %v2248 = vunpack.c.h.b16 %v1870
      %v2249 = vunpack.c.l.b16 %v1871
      %v2250 = vunpack.c.h.b16 %v1871
      %v2251 = vunpack.c.l.b16 %v1872
      %v2252 = vunpack.c.h.b16 %v1872
      %v2253 = vunpack.c.l.b16 %v1873
      %v2254 = vunpack.c.h.b16 %v1873
      %v2255 = vunpack.c.l.b16 %v1874
      %v2256 = vunpack.c.h.b16 %v1874
      %v2257 = vunpack.c.l.b16 %v1875
      %v2258 = vunpack.c.h.b16 %v1875
      %v2259 = vunpack.c.l.b16 %v1876
      %v2260 = vunpack.c.h.b16 %v1876
      %v2261 = vpack.c.b16 %v2007, %v2005
      %v2262 = vpack.c.b16 %v2008, %v2006
      %v2263 = vpack.c.b16 %v2011, %v2009
      %v2264 = vpack.c.b16 %v2012, %v2010
      %v2265 = vpack.c.b16 %v2015, %v2013
      %v2266 = vpack.c.b16 %v2016, %v2014
      %v2267 = vpack.c.b16 %v2019, %v2017
      %v2268 = vpack.c.b16 %v2020, %v2018
      %v2269 = vpack.c.b16 %v2023, %v2021
      %v2270 = vpack.c.b16 %v2024, %v2022
      %v2271 = vpack.c.b16 %v2027, %v2025
      %v2272 = vpack.c.b16 %v2028, %v2026
      %v2273 = vpack.c.b16 %v2031, %v2029
      %v2274 = vpack.c.b16 %v2032, %v2030
      %v2275 = vpack.c.b16 %v2035, %v2033
      %v2276 = vpack.c.b16 %v2036, %v2034
      %v2277 = vpack.c.b16 %v2039, %v2037
      %v2278 = vpack.c.b16 %v2040, %v2038
      %v2279 = vpack.c.b16 %v2043, %v2041
      %v2280 = vpack.c.b16 %v2044, %v2042
      %v2281 = vpack.c.b16 %v2047, %v2045
      %v2282 = vpack.c.b16 %v2048, %v2046
      %v2283 = vpack.c.b16 %v2051, %v2049
      %v2284 = vpack.c.b16 %v2052, %v2050
      %v2285 = vpack.c.b16 %v2055, %v2053
      %v2286 = vpack.c.b16 %v2056, %v2054
      %v2287 = vpack.c.b16 %v2059, %v2057
      %v2288 = vpack.c.b16 %v2060, %v2058
      %v2289 = vpack.c.b16 %v2063, %v2061
      %v2290 = vpack.c.b16 %v2064, %v2062
      %v2291 = vpack.c.b16 %v2067, %v2065
      %v2292 = vpack.c.b16 %v2068, %v2066
      %v2293 = vpack.c.b16 %v2071, %v2069
      %v2294 = vpack.c.b16 %v2072, %v2070
      %v2295 = vpack.c.b16 %v2075, %v2073
      %v2296 = vpack.c.b16 %v2076, %v2074
      %v2297 = vpack.c.b16 %v2079, %v2077
      %v2298 = vpack.c.b16 %v2080, %v2078
      %v2299 = vpack.c.b16 %v2083, %v2081
      %v2300 = vpack.c.b16 %v2084, %v2082
      %v2301 = vpack.c.b16 %v2087, %v2085
      %v2302 = vpack.c.b16 %v2088, %v2086
      %v2303 = vpack.c.b16 %v2091, %v2089
      %v2304 = vpack.c.b16 %v2092, %v2090
      %v2305 = vpack.c.b16 %v2095, %v2093
      %v2306 = vpack.c.b16 %v2096, %v2094
      %v2307 = vpack.c.b16 %v2099, %v2097
      %v2308 = vpack.c.b16 %v2100, %v2098
      %v2309 = vpack.c.b16 %v2103, %v2101
      %v2310 = vpack.c.b16 %v2104, %v2102
      %v2311 = vpack.c.b16 %v2107, %v2105
      %v2312 = vpack.c.b16 %v2108, %v2106
      %v2313 = vpack.c.b16 %v2111, %v2109
      %v2314 = vpack.c.b16 %v2112, %v2110
      %v2315 = vpack.c.b16 %v2115, %v2113
      %v2316 = vpack.c.b16 %v2116, %v2114
      %v2317 = vpack.c.b16 %v2119, %v2117
      %v2318 = vpack.c.b16 %v2120, %v2118
      %v2319 = vpack.c.b16 %v2123, %v2121
      %v2320 = vpack.c.b16 %v2124, %v2122
      %v2321 = vpack.c.b16 %v2127, %v2125
      %v2322 = vpack.c.b16 %v2128, %v2126
      %v2323 = vpack.c.b16 %v2131, %v2129
      %v2324 = vpack.c.b16 %v2132, %v2130
      %v2325 = vpack.c.b16 %v2135, %v2133
      %v2326 = vpack.c.b16 %v2136, %v2134
      %v2327 = vpack.c.b16 %v2139, %v2137
      %v2328 = vpack.c.b16 %v2140, %v2138
      %v2329 = vpack.c.b16 %v2143, %v2141
      %v2330 = vpack.c.b16 %v2144, %v2142
      %v2331 = vpack.c.b16 %v2147, %v2145
      %v2332 = vpack.c.b16 %v2148, %v2146
      %v2333 = vpack.c.b16 %v2151, %v2149
      %v2334 = vpack.c.b16 %v2152, %v2150
      %v2335 = vpack.c.b16 %v2155, %v2153
      %v2336 = vpack.c.b16 %v2156, %v2154
      %v2337 = vpack.c.b16 %v2159, %v2157
      %v2338 = vpack.c.b16 %v2160, %v2158
      %v2339 = vpack.c.b16 %v2163, %v2161
      %v2340 = vpack.c.b16 %v2164, %v2162
      %v2341 = vpack.c.b16 %v2167, %v2165
      %v2342 = vpack.c.b16 %v2168, %v2166
      %v2343 = vpack.c.b16 %v2171, %v2169
      %v2344 = vpack.c.b16 %v2172, %v2170
      %v2345 = vpack.c.b16 %v2175, %v2173
      %v2346 = vpack.c.b16 %v2176, %v2174
      %v2347 = vpack.c.b16 %v2179, %v2177
      %v2348 = vpack.c.b16 %v2180, %v2178
      %v2349 = vpack.c.b16 %v2183, %v2181
      %v2350 = vpack.c.b16 %v2184, %v2182
      %v2351 = vpack.c.b16 %v2187, %v2185
      %v2352 = vpack.c.b16 %v2188, %v2186
      %v2353 = vpack.c.b16 %v2191, %v2189
      %v2354 = vpack.c.b16 %v2192, %v2190
      %v2355 = vpack.c.b16 %v2195, %v2193
      %v2356 = vpack.c.b16 %v2196, %v2194
      %v2357 = vpack.c.b16 %v2199, %v2197
      %v2358 = vpack.c.b16 %v2200, %v2198
      %v2359 = vpack.c.b16 %v2203, %v2201
      %v2360 = vpack.c.b16 %v2204, %v2202
      %v2361 = vpack.c.b16 %v2207, %v2205
      %v2362 = vpack.c.b16 %v2208, %v2206
      %v2363 = vpack.c.b16 %v2211, %v2209
      %v2364 = vpack.c.b16 %v2212, %v2210
      %v2365 = vpack.c.b16 %v2215, %v2213
      %v2366 = vpack.c.b16 %v2216, %v2214
      %v2367 = vpack.c.b16 %v2219, %v2217
      %v2368 = vpack.c.b16 %v2220, %v2218
      %v2369 = vpack.c.b16 %v2223, %v2221
      %v2370 = vpack.c.b16 %v2224, %v2222
      %v2371 = vpack.c.b16 %v2227, %v2225
      %v2372 = vpack.c.b16 %v2228, %v2226
      %v2373 = vpack.c.b16 %v2231, %v2229
      %v2374 = vpack.c.b16 %v2232, %v2230
      %v2375 = vpack.c.b16 %v2235, %v2233
      %v2376 = vpack.c.b16 %v2236, %v2234
      %v2377 = vpack.c.b16 %v2239, %v2237
      %v2378 = vpack.c.b16 %v2240, %v2238
      %v2379 = vpack.c.b16 %v2243, %v2241
      %v2380 = vpack.c.b16 %v2244, %v2242
      %v2381 = vpack.c.b16 %v2247, %v2245
      %v2382 = vpack.c.b16 %v2248, %v2246
      %v2383 = vpack.c.b16 %v2251, %v2249
      %v2384 = vpack.c.b16 %v2252, %v2250
      %v2385 = vpack.c.b16 %v2255, %v2253
      %v2386 = vpack.c.b16 %v2256, %v2254
      %v2387 = vpack.c.b16 %v2259, %v2257
      %v2388 = vpack.c.b16 %v2260, %v2258
      %2517 = vmatprep.subr.bf16.mxu0 %v2262
      %2518 = vmatpush1.bf16.msra.mxu0 %v2261
      %2519 = vmatprep.subr.bf16.mxu0 %v2264
      %2520 = vmatpush1.bf16.msra.mxu0 %v2263
      %2521 = vmatprep.subr.bf16.mxu0 %v2266
      %2522 = vmatpush1.bf16.msra.mxu0 %v2265
      %2523 = vmatprep.subr.bf16.mxu0 %v2268
      %2524 = vmatpush1.bf16.msra.mxu0 %v2267
      %2525 = vmatprep.subr.bf16.mxu0 %v2270
      %2526 = vmatpush1.bf16.msra.mxu0 %v2269
      %2527 = vmatprep.subr.bf16.mxu0 %v2272
      %2528 = vmatpush1.bf16.msra.mxu0 %v2271
      %2529 = vmatprep.subr.bf16.mxu0 %v2274
      %2530 = vmatpush1.bf16.msra.mxu0 %v2273
      %2531 = vmatprep.subr.bf16.mxu0 %v2276
      %2532 = vmatpush1.bf16.msra.mxu0 %v2275
      %2533 = vmatprep.subr.bf16.mxu0 %v2278
      %2534 = vmatpush1.bf16.msra.mxu0 %v2277
      %2535 = vmatprep.subr.bf16.mxu0 %v2280
      %2536 = vmatpush1.bf16.msra.mxu0 %v2279
      %2537 = vmatprep.subr.bf16.mxu0 %v2282
      %2538 = vmatpush1.bf16.msra.mxu0 %v2281
      %2539 = vmatprep.subr.bf16.mxu0 %v2284
      %2540 = vmatpush1.bf16.msra.mxu0 %v2283
      %2541 = vmatprep.subr.bf16.mxu0 %v2286
      %2542 = vmatpush1.bf16.msra.mxu0 %v2285
      %2543 = vmatprep.subr.bf16.mxu0 %v2288
      %2544 = vmatpush1.bf16.msra.mxu0 %v2287
      %2545 = vmatprep.subr.bf16.mxu0 %v2290
      %2546 = vmatpush1.bf16.msra.mxu0 %v2289
      %2547 = vmatprep.subr.bf16.mxu0 %v2292
      %2548 = vmatpush1.bf16.msra.mxu0 %v2291
      %2549 = vmatprep.mubr.bf16.mxu0 %v1646
      %2550 = vmatmul.mubr.bf16.gmra.mrb[0].mxu0 %v1645
      %v2551 = vpop.f32.mrb[0].mxu0
      %v2552 = vadd.f32 0.0, %v2551
      %v2553 = vpop.f32.mrb[0].mxu0
      %v2554 = vadd.f32 0.0, %v2553
      %v2555 = vpop.f32.mrb[0].mxu0
      %v2556 = vadd.f32 0.0, %v2555
      %v2557 = vpop.f32.mrb[0].mxu0
      %v2558 = vadd.f32 0.0, %v2557
      %2559 = vmatprep.mubr.bf16.mxu0 %v1654
      %2560 = vmatmul.mubr.bf16.gmra.mrb[0].mxu0 %v1653
      %v2561 = vpop.f32.mrb[0].mxu0
      %v2562 = vadd.f32 0.0, %v2561
      %v2563 = vpop.f32.mrb[0].mxu0
      %v2564 = vadd.f32 0.0, %v2563
      %v2565 = vpop.f32.mrb[0].mxu0
      %v2566 = vadd.f32 0.0, %v2565
      %v2567 = vpop.f32.mrb[0].mxu0
      %v2568 = vadd.f32 0.0, %v2567
      %2569 = vmatprep.mubr.bf16.mxu0 %v1662
      %2570 = vmatmul.mubr.bf16.gmra.mrb[0].mxu0 %v1661
      %v2571 = vpop.f32.mrb[0].mxu0
      %v2572 = vadd.f32 0.0, %v2571
      %v2573 = vpop.f32.mrb[0].mxu0
      %v2574 = vadd.f32 0.0, %v2573
      %v2575 = vpop.f32.mrb[0].mxu0
      %v2576 = vadd.f32 0.0, %v2575
      %v2577 = vpop.f32.mrb[0].mxu0
      %v2578 = vadd.f32 0.0, %v2577
      %2579 = vmatprep.mubr.bf16.mxu0 %v1670
      %2580 = vmatmul.mubr.bf16.gmra.mrb[0].mxu0 %v1669
      %v2581 = vpop.f32.mrb[0].mxu0
      %v2582 = vadd.f32 0.0, %v2581
      %v2583 = vpop.f32.mrb[0].mxu0
      %v2584 = vadd.f32 0.0, %v2583
      %v2585 = vpop.f32.mrb[0].mxu0
      %v2586 = vadd.f32 0.0, %v2585
      %v2587 = vpop.f32.mrb[0].mxu0
      %v2588 = vadd.f32 0.0, %v2587
      %2589 = vmatprep.mubr.bf16.mxu0 %v1678
      %2590 = vmatmul.mubr.bf16.gmra.mrb[0].mxu0 %v1677
      %v2591 = vpop.f32.mrb[0].mxu0
      %v2592 = vadd.f32 0.0, %v2591
      %v2593 = vpop.f32.mrb[0].mxu0
      %v2594 = vadd.f32 0.0, %v2593
      %v2595 = vpop.f32.mrb[0].mxu0
      %v2596 = vadd.f32 0.0, %v2595
      %v2597 = vpop.f32.mrb[0].mxu0
      %v2598 = vadd.f32 0.0, %v2597
      %2599 = vmatprep.mubr.bf16.mxu0 %v1686
      %2600 = vmatmul.mubr.bf16.gmra.mrb[0].mxu0 %v1685
      %v2601 = vpop.f32.mrb[0].mxu0
      %v2602 = vadd.f32 0.0, %v2601
      %v2603 = vpop.f32.mrb[0].mxu0
      %v2604 = vadd.f32 0.0, %v2603
      %v2605 = vpop.f32.mrb[0].mxu0
      %v2606 = vadd.f32 0.0, %v2605
      %v2607 = vpop.f32.mrb[0].mxu0
      %v2608 = vadd.f32 0.0, %v2607
      %2609 = vmatprep.mubr.bf16.mxu0 %v1694
      %2610 = vmatmul.mubr.bf16.gmra.mrb[0].mxu0 %v1693
      %v2611 = vpop.f32.mrb[0].mxu0
      %v2612 = vadd.f32 0.0, %v2611
      %v2613 = vpop.f32.mrb[0].mxu0
      %v2614 = vadd.f32 0.0, %v2613
      %v2615 = vpop.f32.mrb[0].mxu0
      %v2616 = vadd.f32 0.0, %v2615
      %v2617 = vpop.f32.mrb[0].mxu0
      %v2618 = vadd.f32 0.0, %v2617
      %2619 = vmatprep.mubr.bf16.mxu0 %v1702
      %2620 = vmatmul.mubr.bf16.gmra.mrb[0].mxu0 %v1701
      %v2621 = vpop.f32.mrb[0].mxu0
      %v2622 = vadd.f32 0.0, %v2621
      %v2623 = vpop.f32.mrb[0].mxu0
      %v2624 = vadd.f32 0.0, %v2623
      %v2625 = vpop.f32.mrb[0].mxu0
      %v2626 = vadd.f32 0.0, %v2625
      %v2627 = vpop.f32.mrb[0].mxu0
      %v2628 = vadd.f32 0.0, %v2627
      %2629 = vmatprep.mubr.bf16.mxu0 %v1710
      %2630 = vmatmul.mubr.bf16.gmra.mrb[0].mxu0 %v1709
      %v2631 = vpop.f32.mrb[0].mxu0
      %v2632 = vadd.f32 0.0, %v2631
      %v2633 = vpop.f32.mrb[0].mxu0
      %v2634 = vadd.f32 0.0, %v2633
      %v2635 = vpop.f32.mrb[0].mxu0
      %v2636 = vadd.f32 0.0, %v2635
      %v2637 = vpop.f32.mrb[0].mxu0
      %v2638 = vadd.f32 0.0, %v2637
      %2639 = vmatprep.mubr.bf16.mxu0 %v1718
      %2640 = vmatmul.mubr.bf16.gmra.mrb[0].mxu0 %v1717
      %v2641 = vpop.f32.mrb[0].mxu0
      %v2642 = vadd.f32 0.0, %v2641
      %v2643 = vpop.f32.mrb[0].mxu0
      %v2644 = vadd.f32 0.0, %v2643
      %v2645 = vpop.f32.mrb[0].mxu0
      %v2646 = vadd.f32 0.0, %v2645
      %v2647 = vpop.f32.mrb[0].mxu0
      %v2648 = vadd.f32 0.0, %v2647
      %2649 = vmatprep.mubr.bf16.mxu0 %v1726
      %2650 = vmatmul.mubr.bf16.gmra.mrb[0].mxu0 %v1725
      %v2651 = vpop.f32.mrb[0].mxu0
      %v2652 = vadd.f32 0.0, %v2651
      %v2653 = vpop.f32.mrb[0].mxu0
      %v2654 = vadd.f32 0.0, %v2653
      %v2655 = vpop.f32.mrb[0].mxu0
      %v2656 = vadd.f32 0.0, %v2655
      %v2657 = vpop.f32.mrb[0].mxu0
      %v2658 = vadd.f32 0.0, %v2657
      %2659 = vmatprep.mubr.bf16.mxu0 %v1734
      %2660 = vmatmul.mubr.bf16.gmra.mrb[0].mxu0 %v1733
      %v2661 = vpop.f32.mrb[0].mxu0
      %v2662 = vadd.f32 0.0, %v2661
      %v2663 = vpop.f32.mrb[0].mxu0
      %v2664 = vadd.f32 0.0, %v2663
      %v2665 = vpop.f32.mrb[0].mxu0
      %v2666 = vadd.f32 0.0, %v2665
      %v2667 = vpop.f32.mrb[0].mxu0
      %v2668 = vadd.f32 0.0, %v2667
      %2669 = vmatprep.mubr.bf16.mxu0 %v1742
      %2670 = vmatmul.mubr.bf16.gmra.mrb[0].mxu0 %v1741
      %v2671 = vpop.f32.mrb[0].mxu0
      %v2672 = vadd.f32 0.0, %v2671
      %v2673 = vpop.f32.mrb[0].mxu0
      %v2674 = vadd.f32 0.0, %v2673
      %v2675 = vpop.f32.mrb[0].mxu0
      %v2676 = vpop.f32.mrb[0].mxu0
      %2677 = vdwg.mxu0
      %2678 = vmatprep.subr.bf16.mxu0 %v2294
      %2679 = vmatpush1.bf16.msra.mxu0 %v2293
      %2680 = vmatprep.subr.bf16.mxu0 %v2296
      %2681 = vmatpush1.bf16.msra.mxu0 %v2295
      %2682 = vmatprep.subr.bf16.mxu0 %v2298
      %2683 = vmatpush1.bf16.msra.mxu0 %v2297
      %2684 = vmatprep.subr.bf16.mxu0 %v2300
      %2685 = vmatpush1.bf16.msra.mxu0 %v2299
      %2686 = vmatprep.subr.bf16.mxu0 %v2302
      %2687 = vmatpush1.bf16.msra.mxu0 %v2301
      %2688 = vmatprep.subr.bf16.mxu0 %v2304
      %2689 = vmatpush1.bf16.msra.mxu0 %v2303
      %2690 = vmatprep.subr.bf16.mxu0 %v2306
      %2691 = vmatpush1.bf16.msra.mxu0 %v2305
      %2692 = vmatprep.subr.bf16.mxu0 %v2308
      %2693 = vmatpush1.bf16.msra.mxu0 %v2307
      %2694 = vmatprep.subr.bf16.mxu0 %v2310
      %2695 = vmatpush1.bf16.msra.mxu0 %v2309
      %2696 = vmatprep.subr.bf16.mxu0 %v2312
      %2697 = vmatpush1.bf16.msra.mxu0 %v2311
      %2698 = vmatprep.subr.bf16.mxu0 %v2314
      %2699 = vmatpush1.bf16.msra.mxu0 %v2313
      %2700 = vmatprep.subr.bf16.mxu0 %v2316
      %2701 = vmatpush1.bf16.msra.mxu0 %v2315
      %2702 = vmatprep.subr.bf16.mxu0 %v2318
      %2703 = vmatpush1.bf16.msra.mxu0 %v2317
      %2704 = vmatprep.subr.bf16.mxu0 %v2320
      %2705 = vmatpush1.bf16.msra.mxu0 %v2319
      %2706 = vmatprep.subr.bf16.mxu0 %v2322
      %2707 = vmatpush1.bf16.msra.mxu0 %v2321
      %2708 = vmatprep.subr.bf16.mxu0 %v2324
      %2709 = vmatpush1.bf16.msra.mxu0 %v2323
      %2710 = vmatprep.mubr.bf16.mxu0 %v1648
      %2711 = vmatmul.mubr.bf16.gmra.mrb[0].mxu0 %v1647
      %v2712 = vpop.f32.mrb[0].mxu0
      %v2713 = vadd.f32 %v2552, %v2712
      %v2714 = vpop.f32.mrb[0].mxu0
      %v2715 = vadd.f32 %v2554, %v2714
      %v2716 = vpop.f32.mrb[0].mxu0
      %v2717 = vadd.f32 %v2556, %v2716
      %v2718 = vpop.f32.mrb[0].mxu0
      %v2719 = vadd.f32 %v2558, %v2718
      %2720 = vmatprep.mubr.bf16.mxu0 %v1656
      %2721 = vmatmul.mubr.bf16.gmra.mrb[0].mxu0 %v1655
      %v2722 = vpop.f32.mrb[0].mxu0
      %v2723 = vadd.f32 %v2562, %v2722
      %v2724 = vpop.f32.mrb[0].mxu0
      %v2725 = vadd.f32 %v2564, %v2724
      %v2726 = vpop.f32.mrb[0].mxu0
      %v2727 = vadd.f32 %v2566, %v2726
      %v2728 = vpop.f32.mrb[0].mxu0
      %v2729 = vadd.f32 %v2568, %v2728
      %2730 = vmatprep.mubr.bf16.mxu0 %v1664
      %2731 = vmatmul.mubr.bf16.gmra.mrb[0].mxu0 %v1663
      %v2732 = vpop.f32.mrb[0].mxu0
      %v2733 = vadd.f32 %v2572, %v2732
      %v2734 = vpop.f32.mrb[0].mxu0
      %v2735 = vadd.f32 %v2574, %v2734
      %v2736 = vpop.f32.mrb[0].mxu0
      %v2737 = vadd.f32 %v2576, %v2736
      %v2738 = vpop.f32.mrb[0].mxu0
      %v2739 = vadd.f32 %v2578, %v2738
      %2740 = vmatprep.mubr.bf16.mxu0 %v1672
      %2741 = vmatmul.mubr.bf16.gmra.mrb[0].mxu0 %v1671
      %v2742 = vpop.f32.mrb[0].mxu0
      %v2743 = vadd.f32 %v2582, %v2742
      %v2744 = vpop.f32.mrb[0].mxu0
      %v2745 = vadd.f32 %v2584, %v2744
      %v2746 = vpop.f32.mrb[0].mxu0
      %v2747 = vadd.f32 %v2586, %v2746
      %v2748 = vpop.f32.mrb[0].mxu0
      %v2749 = vadd.f32 %v2588, %v2748
      %2750 = vmatprep.mubr.bf16.mxu0 %v1680
      %2751 = vmatmul.mubr.bf16.gmra.mrb[0].mxu0 %v1679
      %v2752 = vpop.f32.mrb[0].mxu0
      %v2753 = vadd.f32 %v2592, %v2752
      %v2754 = vpop.f32.mrb[0].mxu0
      %v2755 = vadd.f32 %v2594, %v2754
      %v2756 = vpop.f32.mrb[0].mxu0
      %v2757 = vadd.f32 %v2596, %v2756
      %v2758 = vpop.f32.mrb[0].mxu0
      %v2759 = vadd.f32 %v2598, %v2758
      %2760 = vmatprep.mubr.bf16.mxu0 %v1688
      %2761 = vmatmul.mubr.bf16.gmra.mrb[0].mxu0 %v1687
      %v2762 = vpop.f32.mrb[0].mxu0
      %v2763 = vadd.f32 %v2602, %v2762
      %v2764 = vpop.f32.mrb[0].mxu0
      %v2765 = vadd.f32 %v2604, %v2764
      %v2766 = vpop.f32.mrb[0].mxu0
      %v2767 = vadd.f32 %v2606, %v2766
      %v2768 = vpop.f32.mrb[0].mxu0
      %v2769 = vadd.f32 %v2608, %v2768
      %2770 = vmatprep.mubr.bf16.mxu0 %v1696
      %2771 = vmatmul.mubr.bf16.gmra.mrb[0].mxu0 %v1695
      %v2772 = vpop.f32.mrb[0].mxu0
      %v2773 = vadd.f32 %v2612, %v2772
      %v2774 = vpop.f32.mrb[0].mxu0
      %v2775 = vadd.f32 %v2614, %v2774
      %v2776 = vpop.f32.mrb[0].mxu0
      %v2777 = vadd.f32 %v2616, %v2776
      %v2778 = vpop.f32.mrb[0].mxu0
      %v2779 = vadd.f32 %v2618, %v2778
      %2780 = vmatprep.mubr.bf16.mxu0 %v1704
      %2781 = vmatmul.mubr.bf16.gmra.mrb[0].mxu0 %v1703
      %v2782 = vpop.f32.mrb[0].mxu0
      %v2783 = vadd.f32 %v2622, %v2782
      %v2784 = vpop.f32.mrb[0].mxu0
      %v2785 = vadd.f32 %v2624, %v2784
      %v2786 = vpop.f32.mrb[0].mxu0
      %v2787 = vadd.f32 %v2626, %v2786
      %v2788 = vpop.f32.mrb[0].mxu0
      %v2789 = vadd.f32 %v2628, %v2788
      %2790 = vmatprep.mubr.bf16.mxu0 %v1712
      %2791 = vmatmul.mubr.bf16.gmra.mrb[0].mxu0 %v1711
      %v2792 = vpop.f32.mrb[0].mxu0
      %v2793 = vadd.f32 %v2632, %v2792
      %v2794 = vpop.f32.mrb[0].mxu0
      %v2795 = vadd.f32 %v2634, %v2794
      %v2796 = vpop.f32.mrb[0].mxu0
      %v2797 = vadd.f32 %v2636, %v2796
      %v2798 = vpop.f32.mrb[0].mxu0
      %v2799 = vadd.f32 %v2638, %v2798
      %2800 = vmatprep.mubr.bf16.mxu0 %v1720
      %2801 = vmatmul.mubr.bf16.gmra.mrb[0].mxu0 %v1719
      %v2802 = vpop.f32.mrb[0].mxu0
      %v2803 = vadd.f32 %v2642, %v2802
      %v2804 = vpop.f32.mrb[0].mxu0
      %v2805 = vadd.f32 %v2644, %v2804
      %v2806 = vpop.f32.mrb[0].mxu0
      %v2807 = vadd.f32 %v2646, %v2806
      %v2808 = vpop.f32.mrb[0].mxu0
      %v2809 = vadd.f32 %v2648, %v2808
      %2810 = vmatprep.mubr.bf16.mxu0 %v1728
      %2811 = vmatmul.mubr.bf16.gmra.mrb[0].mxu0 %v1727
      %v2812 = vpop.f32.mrb[0].mxu0
      %v2813 = vadd.f32 %v2652, %v2812
      %v2814 = vpop.f32.mrb[0].mxu0
      %v2815 = vadd.f32 %v2654, %v2814
      %v2816 = vpop.f32.mrb[0].mxu0
      %v2817 = vadd.f32 %v2656, %v2816
      %v2818 = vpop.f32.mrb[0].mxu0
      %v2819 = vadd.f32 %v2658, %v2818
      %2820 = vmatprep.mubr.bf16.mxu0 %v1736
      %2821 = vmatmul.mubr.bf16.gmra.mrb[0].mxu0 %v1735
      %v2822 = vpop.f32.mrb[0].mxu0
      %v2823 = vadd.f32 %v2662, %v2822
      %v2824 = vpop.f32.mrb[0].mxu0
      %v2825 = vadd.f32 %v2664, %v2824
      %v2826 = vpop.f32.mrb[0].mxu0
      %v2827 = vadd.f32 %v2666, %v2826
      %v2828 = vpop.f32.mrb[0].mxu0
      %v2829 = vadd.f32 %v2668, %v2828
      %2830 = vmatprep.mubr.bf16.mxu0 %v1744
      %2831 = vmatmul.mubr.bf16.gmra.mrb[0].mxu0 %v1743
      %v2832 = vpop.f32.mrb[0].mxu0
      %v2833 = vadd.f32 %v2672, %v2832
      %v2834 = vpop.f32.mrb[0].mxu0
      %v2835 = vadd.f32 %v2674, %v2834
      %v2836 = vpop.f32.mrb[0].mxu0
      %v2837 = vpop.f32.mrb[0].mxu0
      %2838 = vdwg.mxu0
      %2839 = vmatprep.subr.bf16.mxu0 %v2326
      %2840 = vmatpush1.bf16.msra.mxu0 %v2325
      %2841 = vmatprep.subr.bf16.mxu0 %v2328
      %2842 = vmatpush1.bf16.msra.mxu0 %v2327
      %2843 = vmatprep.subr.bf16.mxu0 %v2330
      %2844 = vmatpush1.bf16.msra.mxu0 %v2329
      %2845 = vmatprep.subr.bf16.mxu0 %v2332
      %2846 = vmatpush1.bf16.msra.mxu0 %v2331
      %2847 = vmatprep.subr.bf16.mxu0 %v2334
      %2848 = vmatpush1.bf16.msra.mxu0 %v2333
      %2849 = vmatprep.subr.bf16.mxu0 %v2336
      %2850 = vmatpush1.bf16.msra.mxu0 %v2335
      %2851 = vmatprep.subr.bf16.mxu0 %v2338
      %2852 = vmatpush1.bf16.msra.mxu0 %v2337
      %2853 = vmatprep.subr.bf16.mxu0 %v2340
      %2854 = vmatpush1.bf16.msra.mxu0 %v2339
      %2855 = vmatprep.subr.bf16.mxu0 %v2342
      %2856 = vmatpush1.bf16.msra.mxu0 %v2341
      %2857 = vmatprep.subr.bf16.mxu0 %v2344
      %2858 = vmatpush1.bf16.msra.mxu0 %v2343
      %2859 = vmatprep.subr.bf16.mxu0 %v2346
      %2860 = vmatpush1.bf16.msra.mxu0 %v2345
      %2861 = vmatprep.subr.bf16.mxu0 %v2348
      %2862 = vmatpush1.bf16.msra.mxu0 %v2347
      %2863 = vmatprep.subr.bf16.mxu0 %v2350
      %2864 = vmatpush1.bf16.msra.mxu0 %v2349
      %2865 = vmatprep.subr.bf16.mxu0 %v2352
      %2866 = vmatpush1.bf16.msra.mxu0 %v2351
      %2867 = vmatprep.subr.bf16.mxu0 %v2354
      %2868 = vmatpush1.bf16.msra.mxu0 %v2353
      %2869 = vmatprep.subr.bf16.mxu0 %v2356
      %2870 = vmatpush1.bf16.msra.mxu0 %v2355
      %2871 = vmatprep.mubr.bf16.mxu0 %v1650
      %2872 = vmatmul.mubr.bf16.gmra.mrb[0].mxu0 %v1649
      %v2873 = vpop.f32.mrb[0].mxu0
      %v2874 = vadd.f32 %v2713, %v2873
      %v2875 = vpop.f32.mrb[0].mxu0
      %v2876 = vadd.f32 %v2715, %v2875
      %v2877 = vpop.f32.mrb[0].mxu0
      %v2878 = vadd.f32 %v2717, %v2877
      %v2879 = vpop.f32.mrb[0].mxu0
      %v2880 = vadd.f32 %v2719, %v2879
      %2881 = vmatprep.mubr.bf16.mxu0 %v1658
      %2882 = vmatmul.mubr.bf16.gmra.mrb[0].mxu0 %v1657
      %v2883 = vpop.f32.mrb[0].mxu0
      %v2884 = vadd.f32 %v2723, %v2883
      %v2885 = vpop.f32.mrb[0].mxu0
      %v2886 = vadd.f32 %v2725, %v2885
      %v2887 = vpop.f32.mrb[0].mxu0
      %v2888 = vadd.f32 %v2727, %v2887
      %v2889 = vpop.f32.mrb[0].mxu0
      %v2890 = vadd.f32 %v2729, %v2889
      %2891 = vmatprep.mubr.bf16.mxu0 %v1666
      %2892 = vmatmul.mubr.bf16.gmra.mrb[0].mxu0 %v1665
      %v2893 = vpop.f32.mrb[0].mxu0
      %v2894 = vadd.f32 %v2733, %v2893
      %v2895 = vpop.f32.mrb[0].mxu0
      %v2896 = vadd.f32 %v2735, %v2895
      %v2897 = vpop.f32.mrb[0].mxu0
      %v2898 = vadd.f32 %v2737, %v2897
      %v2899 = vpop.f32.mrb[0].mxu0
      %v2900 = vadd.f32 %v2739, %v2899
      %2901 = vmatprep.mubr.bf16.mxu0 %v1674
      %2902 = vmatmul.mubr.bf16.gmra.mrb[0].mxu0 %v1673
      %v2903 = vpop.f32.mrb[0].mxu0
      %v2904 = vadd.f32 %v2743, %v2903
      %v2905 = vpop.f32.mrb[0].mxu0
      %v2906 = vadd.f32 %v2745, %v2905
      %v2907 = vpop.f32.mrb[0].mxu0
      %v2908 = vadd.f32 %v2747, %v2907
      %v2909 = vpop.f32.mrb[0].mxu0
      %v2910 = vadd.f32 %v2749, %v2909
      %2911 = vmatprep.mubr.bf16.mxu0 %v1682
      %2912 = vmatmul.mubr.bf16.gmra.mrb[0].mxu0 %v1681
      %v2913 = vpop.f32.mrb[0].mxu0
      %v2914 = vadd.f32 %v2753, %v2913
      %v2915 = vpop.f32.mrb[0].mxu0
      %v2916 = vadd.f32 %v2755, %v2915
      %v2917 = vpop.f32.mrb[0].mxu0
      %v2918 = vadd.f32 %v2757, %v2917
      %v2919 = vpop.f32.mrb[0].mxu0
      %v2920 = vadd.f32 %v2759, %v2919
      %2921 = vmatprep.mubr.bf16.mxu0 %v1690
      %2922 = vmatmul.mubr.bf16.gmra.mrb[0].mxu0 %v1689
      %v2923 = vpop.f32.mrb[0].mxu0
      %v2924 = vadd.f32 %v2763, %v2923
      %v2925 = vpop.f32.mrb[0].mxu0
      %v2926 = vadd.f32 %v2765, %v2925
      %v2927 = vpop.f32.mrb[0].mxu0
      %v2928 = vadd.f32 %v2767, %v2927
      %v2929 = vpop.f32.mrb[0].mxu0
      %v2930 = vadd.f32 %v2769, %v2929
      %2931 = vmatprep.mubr.bf16.mxu0 %v1698
      %2932 = vmatmul.mubr.bf16.gmra.mrb[0].mxu0 %v1697
      %v2933 = vpop.f32.mrb[0].mxu0
      %v2934 = vadd.f32 %v2773, %v2933
      %v2935 = vpop.f32.mrb[0].mxu0
      %v2936 = vadd.f32 %v2775, %v2935
      %v2937 = vpop.f32.mrb[0].mxu0
      %v2938 = vadd.f32 %v2777, %v2937
      %v2939 = vpop.f32.mrb[0].mxu0
      %v2940 = vadd.f32 %v2779, %v2939
      %2941 = vmatprep.mubr.bf16.mxu0 %v1706
      %2942 = vmatmul.mubr.bf16.gmra.mrb[0].mxu0 %v1705
      %v2943 = vpop.f32.mrb[0].mxu0
      %v2944 = vadd.f32 %v2783, %v2943
      %v2945 = vpop.f32.mrb[0].mxu0
      %v2946 = vadd.f32 %v2785, %v2945
      %v2947 = vpop.f32.mrb[0].mxu0
      %v2948 = vadd.f32 %v2787, %v2947
      %v2949 = vpop.f32.mrb[0].mxu0
      %v2950 = vadd.f32 %v2789, %v2949
      %2951 = vmatprep.mubr.bf16.mxu0 %v1714
      %2952 = vmatmul.mubr.bf16.gmra.mrb[0].mxu0 %v1713
      %v2953 = vpop.f32.mrb[0].mxu0
      %v2954 = vadd.f32 %v2793, %v2953
      %v2955 = vpop.f32.mrb[0].mxu0
      %v2956 = vadd.f32 %v2795, %v2955
      %v2957 = vpop.f32.mrb[0].mxu0
      %v2958 = vadd.f32 %v2797, %v2957
      %v2959 = vpop.f32.mrb[0].mxu0
      %v2960 = vadd.f32 %v2799, %v2959
      %2961 = vmatprep.mubr.bf16.mxu0 %v1722
      %2962 = vmatmul.mubr.bf16.gmra.mrb[0].mxu0 %v1721
      %v2963 = vpop.f32.mrb[0].mxu0
      %v2964 = vadd.f32 %v2803, %v2963
      %v2965 = vpop.f32.mrb[0].mxu0
      %v2966 = vadd.f32 %v2805, %v2965
      %v2967 = vpop.f32.mrb[0].mxu0
      %v2968 = vadd.f32 %v2807, %v2967
      %v2969 = vpop.f32.mrb[0].mxu0
      %v2970 = vadd.f32 %v2809, %v2969
      %2971 = vmatprep.mubr.bf16.mxu0 %v1730
      %2972 = vmatmul.mubr.bf16.gmra.mrb[0].mxu0 %v1729
      %v2973 = vpop.f32.mrb[0].mxu0
      %v2974 = vadd.f32 %v2813, %v2973
      %v2975 = vpop.f32.mrb[0].mxu0
      %v2976 = vadd.f32 %v2815, %v2975
      %v2977 = vpop.f32.mrb[0].mxu0
      %v2978 = vadd.f32 %v2817, %v2977
      %v2979 = vpop.f32.mrb[0].mxu0
      %v2980 = vadd.f32 %v2819, %v2979
      %2981 = vmatprep.mubr.bf16.mxu0 %v1738
      %2982 = vmatmul.mubr.bf16.gmra.mrb[0].mxu0 %v1737
      %v2983 = vpop.f32.mrb[0].mxu0
      %v2984 = vadd.f32 %v2823, %v2983
      %v2985 = vpop.f32.mrb[0].mxu0
      %v2986 = vadd.f32 %v2825, %v2985
      %v2987 = vpop.f32.mrb[0].mxu0
      %v2988 = vadd.f32 %v2827, %v2987
      %v2989 = vpop.f32.mrb[0].mxu0
      %v2990 = vadd.f32 %v2829, %v2989
      %2991 = vmatprep.mubr.bf16.mxu0 %v1746
      %2992 = vmatmul.mubr.bf16.gmra.mrb[0].mxu0 %v1745
      %v2993 = vpop.f32.mrb[0].mxu0
      %v2994 = vadd.f32 %v2833, %v2993
      %v2995 = vpop.f32.mrb[0].mxu0
      %v2996 = vadd.f32 %v2835, %v2995
      %v2997 = vpop.f32.mrb[0].mxu0
      %v2998 = vpop.f32.mrb[0].mxu0
      %2999 = vdwg.mxu0
      %3000 = vmatprep.subr.bf16.mxu0 %v2358
      %3001 = vmatpush1.bf16.msra.mxu0 %v2357
      %3002 = vmatprep.subr.bf16.mxu0 %v2360
      %3003 = vmatpush1.bf16.msra.mxu0 %v2359
      %3004 = vmatprep.subr.bf16.mxu0 %v2362
      %3005 = vmatpush1.bf16.msra.mxu0 %v2361
      %3006 = vmatprep.subr.bf16.mxu0 %v2364
      %3007 = vmatpush1.bf16.msra.mxu0 %v2363
      %3008 = vmatprep.subr.bf16.mxu0 %v2366
      %3009 = vmatpush1.bf16.msra.mxu0 %v2365
      %3010 = vmatprep.subr.bf16.mxu0 %v2368
      %3011 = vmatpush1.bf16.msra.mxu0 %v2367
      %3012 = vmatprep.subr.bf16.mxu0 %v2370
      %3013 = vmatpush1.bf16.msra.mxu0 %v2369
      %3014 = vmatprep.subr.bf16.mxu0 %v2372
      %3015 = vmatpush1.bf16.msra.mxu0 %v2371
      %3016 = vmatprep.subr.bf16.mxu0 %v2374
      %3017 = vmatpush1.bf16.msra.mxu0 %v2373
      %3018 = vmatprep.subr.bf16.mxu0 %v2376
      %3019 = vmatpush1.bf16.msra.mxu0 %v2375
      %3020 = vmatprep.subr.bf16.mxu0 %v2378
      %3021 = vmatpush1.bf16.msra.mxu0 %v2377
      %3022 = vmatprep.subr.bf16.mxu0 %v2380
      %3023 = vmatpush1.bf16.msra.mxu0 %v2379
      %3024 = vmatprep.subr.bf16.mxu0 %v2382
      %3025 = vmatpush1.bf16.msra.mxu0 %v2381
      %3026 = vmatprep.subr.bf16.mxu0 %v2384
      %3027 = vmatpush1.bf16.msra.mxu0 %v2383
      %3028 = vmatprep.subr.bf16.mxu0 %v2386
      %3029 = vmatpush1.bf16.msra.mxu0 %v2385
      %3030 = vmatprep.subr.bf16.mxu0 %v2388
      %3031 = vmatpush1.bf16.msra.mxu0 %v2387
      %3032 = vmatprep.mubr.bf16.mxu0 %v1652
      %3033 = vmatmul.mubr.bf16.gmra.mrb[0].mxu0 %v1651
      %v3034 = vpop.f32.mrb[0].mxu0
      %v3035 = vadd.f32 %v2874, %v3034
      %v3036 = vpop.f32.mrb[0].mxu0
      %v3037 = vadd.f32 %v2876, %v3036
      %v3038 = vpop.f32.mrb[0].mxu0
      %v3039 = vadd.f32 %v2878, %v3038
      %v3040 = vpop.f32.mrb[0].mxu0
      %v3041 = vadd.f32 %v2880, %v3040
      %3042 = vmatprep.mubr.bf16.mxu0 %v1660
      %3043 = vmatmul.mubr.bf16.gmra.mrb[0].mxu0 %v1659
      %v3044 = vpop.f32.mrb[0].mxu0
      %v3045 = vadd.f32 %v2884, %v3044
      %v3046 = vpop.f32.mrb[0].mxu0
      %v3047 = vadd.f32 %v2886, %v3046
      %v3048 = vpop.f32.mrb[0].mxu0
      %v3049 = vadd.f32 %v2888, %v3048
      %v3050 = vpop.f32.mrb[0].mxu0
      %v3051 = vadd.f32 %v2890, %v3050
      %3052 = vmatprep.mubr.bf16.mxu0 %v1668
      %3053 = vmatmul.mubr.bf16.gmra.mrb[0].mxu0 %v1667
      %v3054 = vpop.f32.mrb[0].mxu0
      %v3055 = vadd.f32 %v2894, %v3054
      %v3056 = vpop.f32.mrb[0].mxu0
      %v3057 = vadd.f32 %v2896, %v3056
      %v3058 = vpop.f32.mrb[0].mxu0
      %v3059 = vadd.f32 %v2898, %v3058
      %v3060 = vpop.f32.mrb[0].mxu0
      %v3061 = vadd.f32 %v2900, %v3060
      %3062 = vmatprep.mubr.bf16.mxu0 %v1676
      %3063 = vmatmul.mubr.bf16.gmra.mrb[0].mxu0 %v1675
      %v3064 = vpop.f32.mrb[0].mxu0
      %v3065 = vadd.f32 %v2904, %v3064
      %v3066 = vpop.f32.mrb[0].mxu0
      %v3067 = vadd.f32 %v2906, %v3066
      %v3068 = vpop.f32.mrb[0].mxu0
      %v3069 = vadd.f32 %v2908, %v3068
      %v3070 = vpop.f32.mrb[0].mxu0
      %v3071 = vadd.f32 %v2910, %v3070
      %3072 = vmatprep.mubr.bf16.mxu0 %v1684
      %3073 = vmatmul.mubr.bf16.gmra.mrb[0].mxu0 %v1683
      %v3074 = vpop.f32.mrb[0].mxu0
      %v3075 = vadd.f32 %v2914, %v3074
      %v3076 = vpop.f32.mrb[0].mxu0
      %v3077 = vadd.f32 %v2916, %v3076
      %v3078 = vpop.f32.mrb[0].mxu0
      %v3079 = vadd.f32 %v2918, %v3078
      %v3080 = vpop.f32.mrb[0].mxu0
      %v3081 = vadd.f32 %v2920, %v3080
      %3082 = vmatprep.mubr.bf16.mxu0 %v1692
      %3083 = vmatmul.mubr.bf16.gmra.mrb[0].mxu0 %v1691
      %v3084 = vpop.f32.mrb[0].mxu0
      %v3085 = vadd.f32 %v2924, %v3084
      %v3086 = vpop.f32.mrb[0].mxu0
      %v3087 = vadd.f32 %v2926, %v3086
      %v3088 = vpop.f32.mrb[0].mxu0
      %v3089 = vadd.f32 %v2928, %v3088
      %v3090 = vpop.f32.mrb[0].mxu0
      %v3091 = vadd.f32 %v2930, %v3090
      %3092 = vmatprep.mubr.bf16.mxu0 %v1700
      %3093 = vmatmul.mubr.bf16.gmra.mrb[0].mxu0 %v1699
      %v3094 = vpop.f32.mrb[0].mxu0
      %v3095 = vadd.f32 %v2934, %v3094
      %v3096 = vpop.f32.mrb[0].mxu0
      %v3097 = vadd.f32 %v2936, %v3096
      %v3098 = vpop.f32.mrb[0].mxu0
      %v3099 = vadd.f32 %v2938, %v3098
      %v3100 = vpop.f32.mrb[0].mxu0
      %v3101 = vadd.f32 %v2940, %v3100
      %3102 = vmatprep.mubr.bf16.mxu0 %v1708
      %3103 = vmatmul.mubr.bf16.gmra.mrb[0].mxu0 %v1707
      %v3104 = vpop.f32.mrb[0].mxu0
      %v3105 = vadd.f32 %v2944, %v3104
      %v3106 = vpop.f32.mrb[0].mxu0
      %v3107 = vadd.f32 %v2946, %v3106
      %v3108 = vpop.f32.mrb[0].mxu0
      %v3109 = vadd.f32 %v2948, %v3108
      %v3110 = vpop.f32.mrb[0].mxu0
      %v3111 = vadd.f32 %v2950, %v3110
      %3112 = vmatprep.mubr.bf16.mxu0 %v1716
      %3113 = vmatmul.mubr.bf16.gmra.mrb[0].mxu0 %v1715
      %v3114 = vpop.f32.mrb[0].mxu0
      %v3115 = vadd.f32 %v2954, %v3114
      %v3116 = vpop.f32.mrb[0].mxu0
      %v3117 = vadd.f32 %v2956, %v3116
      %v3118 = vpop.f32.mrb[0].mxu0
      %v3119 = vadd.f32 %v2958, %v3118
      %v3120 = vpop.f32.mrb[0].mxu0
      %v3121 = vadd.f32 %v2960, %v3120
      %3122 = vmatprep.mubr.bf16.mxu0 %v1724
      %3123 = vmatmul.mubr.bf16.gmra.mrb[0].mxu0 %v1723
      %v3124 = vpop.f32.mrb[0].mxu0
      %v3125 = vadd.f32 %v2964, %v3124
      %v3126 = vpop.f32.mrb[0].mxu0
      %v3127 = vadd.f32 %v2966, %v3126
      %v3128 = vpop.f32.mrb[0].mxu0
      %v3129 = vadd.f32 %v2968, %v3128
      %v3130 = vpop.f32.mrb[0].mxu0
      %v3131 = vadd.f32 %v2970, %v3130
      %3132 = vmatprep.mubr.bf16.mxu0 %v1732
      %3133 = vmatmul.mubr.bf16.gmra.mrb[0].mxu0 %v1731
      %v3134 = vpop.f32.mrb[0].mxu0
      %v3135 = vadd.f32 %v2974, %v3134
      %v3136 = vpop.f32.mrb[0].mxu0
      %v3137 = vadd.f32 %v2976, %v3136
      %v3138 = vpop.f32.mrb[0].mxu0
      %v3139 = vadd.f32 %v2978, %v3138
      %v3140 = vpop.f32.mrb[0].mxu0
      %v3141 = vadd.f32 %v2980, %v3140
      %3142 = vmatprep.mubr.bf16.mxu0 %v1740
      %3143 = vmatmul.mubr.bf16.gmra.mrb[0].mxu0 %v1739
      %v3144 = vpop.f32.mrb[0].mxu0
      %v3145 = vadd.f32 %v2984, %v3144
      %v3146 = vpop.f32.mrb[0].mxu0
      %v3147 = vadd.f32 %v2986, %v3146
      %v3148 = vpop.f32.mrb[0].mxu0
      %v3149 = vadd.f32 %v2988, %v3148
      %v3150 = vpop.f32.mrb[0].mxu0
      %v3151 = vadd.f32 %v2990, %v3150
      %3152 = vmatprep.mubr.bf16.mxu0 %v1748
      %3153 = vmatmul.mubr.bf16.gmra.mrb[0].mxu0 %v1747
      %v3154 = vpop.f32.mrb[0].mxu0
      %v3155 = vadd.f32 %v2994, %v3154
      %v3156 = vpop.f32.mrb[0].mxu0
      %v3157 = vadd.f32 %v2996, %v3156
      %v3158 = vpop.f32.mrb[0].mxu0
      %v3159 = vpop.f32.mrb[0].mxu0
      %3160 = vdwg.mxu0
      %v3177 = vunpack.c.l.b16 %v283
      %v3178 = vunpack.c.h.b16 %v283
      %v3179 = vunpack.c.l.b16 %v284
      %v3180 = vunpack.c.h.b16 %v284
      %v3181 = vunpack.c.l.b16 %v285
      %v3182 = vunpack.c.h.b16 %v285
      %v3183 = vunpack.c.l.b16 %v286
      %v3184 = vunpack.c.h.b16 %v286
      %v3185 = vunpack.c.l.b16 %v287
      %v3186 = vunpack.c.h.b16 %v287
      %v3187 = vunpack.c.l.b16 %v288
      %v3188 = vunpack.c.h.b16 %v288
      %v3189 = vunpack.c.l.b16 %v289
      %v3190 = vunpack.c.h.b16 %v289
      %v3191 = vunpack.c.l.b16 %v290
      %v3192 = vunpack.c.h.b16 %v290
      %v3193 = vunpack.c.l.b16 %v291
      %v3194 = vunpack.c.h.b16 %v291
      %v3195 = vunpack.c.l.b16 %v292
      %v3196 = vunpack.c.h.b16 %v292
      %v3197 = vunpack.c.l.b16 %v293
      %v3198 = vunpack.c.h.b16 %v293
      %v3199 = vunpack.c.l.b16 %v294
      %v3200 = vunpack.c.h.b16 %v294
      %v3201 = vunpack.c.l.b16 %v295
      %v3202 = vunpack.c.h.b16 %v295
      %v3203 = vunpack.c.l.b16 %v296
      %v3204 = vunpack.c.h.b16 %v296
      %v3205 = vunpack.c.l.b16 %v297
      %v3206 = vunpack.c.h.b16 %v297
      %v3207 = vunpack.c.l.b16 %v298
      %v3208 = vunpack.c.h.b16 %v298
      %v3209 = vpack.c.b16 %v3179, %v3177
      %v3210 = vpack.c.b16 %v3180, %v3178
      %v3211 = vpack.c.b16 %v3183, %v3181
      %v3212 = vpack.c.b16 %v3184, %v3182
      %v3213 = vpack.c.b16 %v3187, %v3185
      %v3214 = vpack.c.b16 %v3188, %v3186
      %v3215 = vpack.c.b16 %v3191, %v3189
      %v3216 = vpack.c.b16 %v3192, %v3190
      %v3217 = vpack.c.b16 %v3195, %v3193
      %v3218 = vpack.c.b16 %v3196, %v3194
      %v3219 = vpack.c.b16 %v3199, %v3197
      %v3220 = vpack.c.b16 %v3200, %v3198
      %v3221 = vpack.c.b16 %v3203, %v3201
      %v3222 = vpack.c.b16 %v3204, %v3202
      %v3223 = vpack.c.b16 %v3207, %v3205
      %v3224 = vpack.c.b16 %v3208, %v3206
      %3241 = vmatprep.subr.bf16.mxu0 %v3210
      %3242 = vmatpush1.bf16.msra.mxu0 %v3209
      %3243 = vmatprep.subr.bf16.mxu0 %v3212
      %3244 = vmatpush1.bf16.msra.mxu0 %v3211
      %3245 = vmatprep.subr.bf16.mxu0 %v3214
      %3246 = vmatpush1.bf16.msra.mxu0 %v3213
      %3247 = vmatprep.subr.bf16.mxu0 %v3216
      %3248 = vmatpush1.bf16.msra.mxu0 %v3215
      %3249 = vmatprep.subr.bf16.mxu0 %v3218
      %3250 = vmatpush1.bf16.msra.mxu0 %v3217
      %3251 = vmatprep.subr.bf16.mxu0 %v3220
      %3252 = vmatpush1.bf16.msra.mxu0 %v3219
      %3253 = vmatprep.subr.bf16.mxu0 %v3222
      %3254 = vmatpush1.bf16.msra.mxu0 %v3221
      %3255 = vmatprep.subr.bf16.mxu0 %v3224
      %3256 = vmatpush1.bf16.msra.mxu0 %v3223
      %3257 = vmatprep.subr.bf16.mxu0 0
      %3258 = vmatpush1.bf16.msra.mxu0 0
      %3259 = vmatprep.subr.bf16.mxu0 0
      %3260 = vmatpush1.bf16.msra.mxu0 0
      %3261 = vmatprep.subr.bf16.mxu0 0
      %3262 = vmatpush1.bf16.msra.mxu0 0
      %3263 = vmatprep.subr.bf16.mxu0 0
      %3264 = vmatpush1.bf16.msra.mxu0 0
      %3265 = vmatprep.subr.bf16.mxu0 0
      %3266 = vmatpush1.bf16.msra.mxu0 0
      %3267 = vmatprep.subr.bf16.mxu0 0
      %3268 = vmatpush1.bf16.msra.mxu0 0
      %3269 = vmatprep.subr.bf16.mxu0 0
      %3270 = vmatpush1.bf16.msra.mxu0 0
      %3271 = vmatprep.subr.bf16.mxu0 0
      %3272 = vmatpush1.bf16.msra.mxu0 0
      %3273 = vmatprep.mubr.bf16.mxu0 0
      %3274 = vmatmul.mubr.bf16.gmra.mrb[0].mxu0 %v455
      %v3275 = vpop.f32.mrb[0].mxu0
      %v3276 = vadd.f32 %v3035, %v3275
      %v3277 = vpop.f32.mrb[0].mxu0
      %v3278 = vadd.f32 %v3037, %v3277
      %v3279 = vpop.f32.mrb[0].mxu0
      %v3280 = vadd.f32 %v3039, %v3279
      %v3281 = vpop.f32.mrb[0].mxu0
      %v3282 = vadd.f32 %v3041, %v3281
      %3283 = vmatprep.mubr.bf16.mxu0 0
      %3284 = vmatmul.mubr.bf16.gmra.mrb[0].mxu0 %v456
      %v3285 = vpop.f32.mrb[0].mxu0
      %v3286 = vadd.f32 %v3045, %v3285
      %v3287 = vpop.f32.mrb[0].mxu0
      %v3288 = vadd.f32 %v3047, %v3287
      %v3289 = vpop.f32.mrb[0].mxu0
      %v3290 = vadd.f32 %v3049, %v3289
      %v3291 = vpop.f32.mrb[0].mxu0
      %v3292 = vadd.f32 %v3051, %v3291
      %3293 = vmatprep.mubr.bf16.mxu0 0
      %3294 = vmatmul.mubr.bf16.gmra.mrb[0].mxu0 %v457
      %v3295 = vpop.f32.mrb[0].mxu0
      %v3296 = vadd.f32 %v3055, %v3295
      %v3297 = vpop.f32.mrb[0].mxu0
      %v3298 = vadd.f32 %v3057, %v3297
      %v3299 = vpop.f32.mrb[0].mxu0
      %v3300 = vadd.f32 %v3059, %v3299
      %v3301 = vpop.f32.mrb[0].mxu0
      %v3302 = vadd.f32 %v3061, %v3301
      %3303 = vmatprep.mubr.bf16.mxu0 0
      %3304 = vmatmul.mubr.bf16.gmra.mrb[0].mxu0 %v458
      %v3305 = vpop.f32.mrb[0].mxu0
      %v3306 = vadd.f32 %v3065, %v3305
      %v3307 = vpop.f32.mrb[0].mxu0
      %v3308 = vadd.f32 %v3067, %v3307
      %v3309 = vpop.f32.mrb[0].mxu0
      %v3310 = vadd.f32 %v3069, %v3309
      %v3311 = vpop.f32.mrb[0].mxu0
      %v3312 = vadd.f32 %v3071, %v3311
      %3313 = vmatprep.mubr.bf16.mxu0 0
      %3314 = vmatmul.mubr.bf16.gmra.mrb[0].mxu0 %v459
      %v3315 = vpop.f32.mrb[0].mxu0
      %v3316 = vadd.f32 %v3075, %v3315
      %v3317 = vpop.f32.mrb[0].mxu0
      %v3318 = vadd.f32 %v3077, %v3317
      %v3319 = vpop.f32.mrb[0].mxu0
      %v3320 = vadd.f32 %v3079, %v3319
      %v3321 = vpop.f32.mrb[0].mxu0
      %v3322 = vadd.f32 %v3081, %v3321
      %3323 = vmatprep.mubr.bf16.mxu0 0
      %3324 = vmatmul.mubr.bf16.gmra.mrb[0].mxu0 %v460
      %v3325 = vpop.f32.mrb[0].mxu0
      %v3326 = vadd.f32 %v3085, %v3325
      %v3327 = vpop.f32.mrb[0].mxu0
      %v3328 = vadd.f32 %v3087, %v3327
      %v3329 = vpop.f32.mrb[0].mxu0
      %v3330 = vadd.f32 %v3089, %v3329
      %v3331 = vpop.f32.mrb[0].mxu0
      %v3332 = vadd.f32 %v3091, %v3331
      %3333 = vmatprep.mubr.bf16.mxu0 0
      %3334 = vmatmul.mubr.bf16.gmra.mrb[0].mxu0 %v461
      %v3335 = vpop.f32.mrb[0].mxu0
      %v3336 = vadd.f32 %v3095, %v3335
      %v3337 = vpop.f32.mrb[0].mxu0
      %v3338 = vadd.f32 %v3097, %v3337
      %v3339 = vpop.f32.mrb[0].mxu0
      %v3340 = vadd.f32 %v3099, %v3339
      %v3341 = vpop.f32.mrb[0].mxu0
      %v3342 = vadd.f32 %v3101, %v3341
      %3343 = vmatprep.mubr.bf16.mxu0 0
      %3344 = vmatmul.mubr.bf16.gmra.mrb[0].mxu0 %v462
      %v3345 = vpop.f32.mrb[0].mxu0
      %v3346 = vadd.f32 %v3105, %v3345
      %v3347 = vpop.f32.mrb[0].mxu0
      %v3348 = vadd.f32 %v3107, %v3347
      %v3349 = vpop.f32.mrb[0].mxu0
      %v3350 = vadd.f32 %v3109, %v3349
      %v3351 = vpop.f32.mrb[0].mxu0
      %v3352 = vadd.f32 %v3111, %v3351
      %3353 = vmatprep.mubr.bf16.mxu0 0
      %3354 = vmatmul.mubr.bf16.gmra.mrb[0].mxu0 %v463
      %v3355 = vpop.f32.mrb[0].mxu0
      %v3356 = vadd.f32 %v3115, %v3355
      %v3357 = vpop.f32.mrb[0].mxu0
      %v3358 = vadd.f32 %v3117, %v3357
      %v3359 = vpop.f32.mrb[0].mxu0
      %v3360 = vadd.f32 %v3119, %v3359
      %v3361 = vpop.f32.mrb[0].mxu0
      %v3362 = vadd.f32 %v3121, %v3361
      %3363 = vmatprep.mubr.bf16.mxu0 0
      %3364 = vmatmul.mubr.bf16.gmra.mrb[0].mxu0 %v464
      %v3365 = vpop.f32.mrb[0].mxu0
      %v3366 = vadd.f32 %v3125, %v3365
      %v3367 = vpop.f32.mrb[0].mxu0
      %v3368 = vadd.f32 %v3127, %v3367
      %v3369 = vpop.f32.mrb[0].mxu0
      %v3370 = vadd.f32 %v3129, %v3369
      %v3371 = vpop.f32.mrb[0].mxu0
      %v3372 = vadd.f32 %v3131, %v3371
      %3373 = vmatprep.mubr.bf16.mxu0 0
      %3374 = vmatmul.mubr.bf16.gmra.mrb[0].mxu0 %v465
      %v3375 = vpop.f32.mrb[0].mxu0
      %v3376 = vadd.f32 %v3135, %v3375
      %v3377 = vpop.f32.mrb[0].mxu0
      %v3378 = vadd.f32 %v3137, %v3377
      %v3379 = vpop.f32.mrb[0].mxu0
      %v3380 = vadd.f32 %v3139, %v3379
      %v3381 = vpop.f32.mrb[0].mxu0
      %v3382 = vadd.f32 %v3141, %v3381
      %3383 = vmatprep.mubr.bf16.mxu0 0
      %3384 = vmatmul.mubr.bf16.gmra.mrb[0].mxu0 %v466
      %v3385 = vpop.f32.mrb[0].mxu0
      %v3386 = vadd.f32 %v3145, %v3385
      %v3387 = vpop.f32.mrb[0].mxu0
      %v3388 = vadd.f32 %v3147, %v3387
      %v3389 = vpop.f32.mrb[0].mxu0
      %v3390 = vadd.f32 %v3149, %v3389
      %v3391 = vpop.f32.mrb[0].mxu0
      %v3392 = vadd.f32 %v3151, %v3391
      %3393 = vmatprep.mubr.bf16.mxu0 0
      %3394 = vmatmul.mubr.bf16.gmra.mrb[0].mxu0 %v467
      %v3395 = vpop.f32.mrb[0].mxu0
      %v3396 = vadd.f32 %v3155, %v3395
      %v3397 = vpop.f32.mrb[0].mxu0
      %v3398 = vadd.f32 %v3157, %v3397
      %v3399 = vpop.f32.mrb[0].mxu0
      %v3400 = vpop.f32.mrb[0].mxu0
      %3401 = vdwg.mxu0
      %v3402 = vld [vmem:[%s5] sm:$0x3]
      %v3404 = vlaneseq
      %v3405 = vshrl.u32 %v3404, 7
      %v3406 = vsub.s32 0, %v3405
      %v3407 = vrot.slane %v3402, %v3406
      %v3408 = vlaneseq
      %v3409 = vshrl.u32 %v3408, 7
      %v3410 = vsub.s32 1, %v3409
      %v3411 = vrot.slane %v3402, %v3410
      %v3414 = vadd.f32 %v3276, %v3407
      %v3415 = vadd.f32 %v3278, %v3411
      %v3416 = vadd.f32 %v3280, %v3407
      %v3417 = vadd.f32 %v3282, %v3411
      %v3418 = vadd.f32 %v3286, %v3407
      %v3419 = vadd.f32 %v3288, %v3411
      %v3420 = vadd.f32 %v3290, %v3407
      %v3421 = vadd.f32 %v3292, %v3411
      %v3422 = vadd.f32 %v3296, %v3407
      %v3423 = vadd.f32 %v3298, %v3411
      %v3424 = vadd.f32 %v3300, %v3407
      %v3425 = vadd.f32 %v3302, %v3411
      %v3426 = vadd.f32 %v3306, %v3407
      %v3427 = vadd.f32 %v3308, %v3411
      %v3428 = vadd.f32 %v3310, %v3407
      %v3429 = vadd.f32 %v3312, %v3411
      %v3430 = vadd.f32 %v3316, %v3407
      %v3431 = vadd.f32 %v3318, %v3411
      %v3432 = vadd.f32 %v3320, %v3407
      %v3433 = vadd.f32 %v3322, %v3411
      %v3434 = vadd.f32 %v3326, %v3407
      %v3435 = vadd.f32 %v3328, %v3411
      %v3436 = vadd.f32 %v3330, %v3407
      %v3437 = vadd.f32 %v3332, %v3411
      %v3438 = vadd.f32 %v3336, %v3407
      %v3439 = vadd.f32 %v3338, %v3411
      %v3440 = vadd.f32 %v3340, %v3407
      %v3441 = vadd.f32 %v3342, %v3411
      %v3442 = vadd.f32 %v3346, %v3407
      %v3443 = vadd.f32 %v3348, %v3411
      %v3444 = vadd.f32 %v3350, %v3407
      %v3445 = vadd.f32 %v3352, %v3411
      %v3446 = vadd.f32 %v3356, %v3407
      %v3447 = vadd.f32 %v3358, %v3411
      %v3448 = vadd.f32 %v3360, %v3407
      %v3449 = vadd.f32 %v3362, %v3411
      %v3450 = vadd.f32 %v3366, %v3407
      %v3451 = vadd.f32 %v3368, %v3411
      %v3452 = vadd.f32 %v3370, %v3407
      %v3453 = vadd.f32 %v3372, %v3411
      %v3454 = vadd.f32 %v3376, %v3407
      %v3455 = vadd.f32 %v3378, %v3411
      %v3456 = vadd.f32 %v3380, %v3407
      %v3457 = vadd.f32 %v3382, %v3411
      %v3458 = vadd.f32 %v3386, %v3407
      %v3459 = vadd.f32 %v3388, %v3411
      %v3460 = vadd.f32 %v3390, %v3407
      %v3461 = vadd.f32 %v3392, %v3411
      %v3462 = vadd.f32 %v3396, %v3407
      %v3463 = vadd.f32 %v3398, %v3411
      %v3464 = vmax.f32 %v3414, 0.0
      %v3465 = vmax.f32 %v3415, 0.0
      %v3466 = vmax.f32 %v3416, 0.0
      %v3467 = vmax.f32 %v3417, 0.0
      %v3468 = vmax.f32 %v3418, 0.0
      %v3469 = vmax.f32 %v3419, 0.0
      %v3470 = vmax.f32 %v3420, 0.0
      %v3471 = vmax.f32 %v3421, 0.0
      %v3472 = vmax.f32 %v3422, 0.0
      %v3473 = vmax.f32 %v3423, 0.0
      %v3474 = vmax.f32 %v3424, 0.0
      %v3475 = vmax.f32 %v3425, 0.0
      %v3476 = vmax.f32 %v3426, 0.0
      %v3477 = vmax.f32 %v3427, 0.0
      %v3478 = vmax.f32 %v3428, 0.0
      %v3479 = vmax.f32 %v3429, 0.0
      %v3480 = vmax.f32 %v3430, 0.0
      %v3481 = vmax.f32 %v3431, 0.0
      %v3482 = vmax.f32 %v3432, 0.0
      %v3483 = vmax.f32 %v3433, 0.0
      %v3484 = vmax.f32 %v3434, 0.0
      %v3485 = vmax.f32 %v3435, 0.0
      %v3486 = vmax.f32 %v3436, 0.0
      %v3487 = vmax.f32 %v3437, 0.0
      %v3488 = vmax.f32 %v3438, 0.0
      %v3489 = vmax.f32 %v3439, 0.0
      %v3490 = vmax.f32 %v3440, 0.0
      %v3491 = vmax.f32 %v3441, 0.0
      %v3492 = vmax.f32 %v3442, 0.0
      %v3493 = vmax.f32 %v3443, 0.0
      %v3494 = vmax.f32 %v3444, 0.0
      %v3495 = vmax.f32 %v3445, 0.0
      %v3496 = vmax.f32 %v3446, 0.0
      %v3497 = vmax.f32 %v3447, 0.0
      %v3498 = vmax.f32 %v3448, 0.0
      %v3499 = vmax.f32 %v3449, 0.0
      %v3500 = vmax.f32 %v3450, 0.0
      %v3501 = vmax.f32 %v3451, 0.0
      %v3502 = vmax.f32 %v3452, 0.0
      %v3503 = vmax.f32 %v3453, 0.0
      %v3504 = vmax.f32 %v3454, 0.0
      %v3505 = vmax.f32 %v3455, 0.0
      %v3506 = vmax.f32 %v3456, 0.0
      %v3507 = vmax.f32 %v3457, 0.0
      %v3508 = vmax.f32 %v3458, 0.0
      %v3509 = vmax.f32 %v3459, 0.0
      %v3510 = vmax.f32 %v3460, 0.0
      %v3511 = vmax.f32 %v3461, 0.0
      %v3512 = vmax.f32 %v3462, 0.0
      %v3513 = vmax.f32 %v3463, 0.0
      %3514 = vst [vmem:[%s255] sm:$0xff] %v3464
      %3515 = vst [vmem:[%s255 + $0x8] sm:$0xff] %v3465
      %3516 = vst [vmem:[%s255 + $0x10] sm:$0xff] %v3466
      %3517 = vst [vmem:[%s255 + $0x18] sm:$0xff] %v3467
      %3518 = vst [vmem:[%s255 + $0x20] sm:$0xff] %v3468
      %3519 = vst [vmem:[%s255 + $0x28] sm:$0xff] %v3469
      %3520 = vst [vmem:[%s255 + $0x30] sm:$0xff] %v3470
      %3521 = vst [vmem:[%s255 + $0x38] sm:$0xff] %v3471
      %3522 = vst [vmem:[%s255 + $0x40] sm:$0xff] %v3472
      %3523 = vst [vmem:[%s255 + $0x48] sm:$0xff] %v3473
      %3524 = vst [vmem:[%s255 + $0x50] sm:$0xff] %v3474
      %3525 = vst [vmem:[%s255 + $0x58] sm:$0xff] %v3475
      %3526 = vst [vmem:[%s255 + $0x60] sm:$0xff] %v3476
      %3527 = vst [vmem:[%s255 + $0x68] sm:$0xff] %v3477
      %3528 = vst [vmem:[%s255 + $0x70] sm:$0xff] %v3478
      %3529 = vst [vmem:[%s255 + $0x78] sm:$0xff] %v3479
      %3530 = vst [vmem:[%s255 + $0x80] sm:$0xff] %v3480
      %3531 = vst [vmem:[%s255 + $0x88] sm:$0xff] %v3481
      %3532 = vst [vmem:[%s255 + $0x90] sm:$0xff] %v3482
      %3533 = vst [vmem:[%s255 + $0x98] sm:$0xff] %v3483
      %3534 = vst [vmem:[%s255 + $0xa0] sm:$0xff] %v3484
      %3535 = vst [vmem:[%s255 + $0xa8] sm:$0xff] %v3485
      %3536 = vst [vmem:[%s255 + $0xb0] sm:$0xff] %v3486
      %3537 = vst [vmem:[%s255 + $0xb8] sm:$0xff] %v3487
      %3538 = vst [vmem:[%s255 + $0xc0] sm:$0xff] %v3488
      %3539 = vst [vmem:[%s255 + $0xc8] sm:$0xff] %v3489
      %3540 = vst [vmem:[%s255 + $0xd0] sm:$0xff] %v3490
      %3541 = vst [vmem:[%s255 + $0xd8] sm:$0xff] %v3491
      %3542 = vst [vmem:[%s255 + $0xe0] sm:$0xff] %v3492
      %3543 = vst [vmem:[%s255 + $0xe8] sm:$0xff] %v3493
      %3544 = vst [vmem:[%s255 + $0xf0] sm:$0xff] %v3494
      %3545 = vst [vmem:[%s255 + $0xf8] sm:$0xff] %v3495
      %3546 = vst [vmem:[%s255 + $0x100] sm:$0xff] %v3496
      %3547 = vst [vmem:[%s255 + $0x108] sm:$0xff] %v3497
      %3548 = vst [vmem:[%s255 + $0x110] sm:$0xff] %v3498
      %3549 = vst [vmem:[%s255 + $0x118] sm:$0xff] %v3499
      %3550 = vst [vmem:[%s255 + $0x120] sm:$0xff] %v3500
      %3551 = vst [vmem:[%s255 + $0x128] sm:$0xff] %v3501
      %3552 = vst [vmem:[%s255 + $0x130] sm:$0xff] %v3502
      %3553 = vst [vmem:[%s255 + $0x138] sm:$0xff] %v3503
      %3554 = vst [vmem:[%s255 + $0x140] sm:$0xff] %v3504
      %3555 = vst [vmem:[%s255 + $0x148] sm:$0xff] %v3505
      %3556 = vst [vmem:[%s255 + $0x150] sm:$0xff] %v3506
      %3557 = vst [vmem:[%s255 + $0x158] sm:$0xff] %v3507
      %3558 = vst [vmem:[%s255 + $0x160] sm:$0xff] %v3508
      %3559 = vst [vmem:[%s255 + $0x168] sm:$0xff] %v3509
      %3560 = vst [vmem:[%s255 + $0x170] sm:$0xff] %v3510
      %3561 = vst [vmem:[%s255 + $0x178] sm:$0xff] %v3511
      %3562 = vst [vmem:[%s255 + $0x180] sm:$0xff] %v3512
      %3563 = vst [vmem:[%s255 + $0x188] sm:$0xff] %v3513
      %s3564 = smul.u32 25, %s17
      %p3565 = scmp.lt.s32.totalorder %s3564, 49
      %s3566 = scalar_select %p3565, %s3564, 49
      %s3567 = smul.addr %s3566, 2
      %s3568 = smul.addr %s3567, 8
      %s3569 = scalar_lea.vmem %s6, %s3568
      // Predicated region
      $region45: #{residual_layer.1} parent=43 // pred_check
        %p3570 = pneg %p166
      $region46: #{residual_layer.1} parent=43 // pred_check_branch
        %3572 = sbr.rel (%p3570) target = $region48
      $region47: #{residual_layer.1} parent=43 // pred_region
        %s3573 = smul.u32 25, %s17
      $region48: #{residual_layer.1} parent=43 // pred_fallthru
        _
    $region44: #{residual_layer.1} parent=5 // pred_fallthru
      _
    %p3574 = scmp.le.s32.totalorder 2, %s12
    // Predicated region
    $region49: #{residual_layer.1} parent=5 // pred_check
      %p3575 = pneg %p3574
    $region50: #{residual_layer.1} parent=5 // pred_check_branch
      %3577 = sbr.rel (%p3575) target = $region52
    $region51: #{residual_layer.1} parent=5 // pred_region
      %s3578 = ssub.s32 %s12, 2
      // Predicated region
      $region53: #{residual_layer.1} parent=51 // pred_check
        %p3579 = pneg %p172
      $region54: #{residual_layer.1} parent=51 // pred_check_branch
        %3581 = sbr.rel (%p3579) target = $region56
      $region55: #{residual_layer.1} parent=51 // pred_region
        %s3582 = smul.u32 25, %s18
        %p3583 = scmp.lt.s32.totalorder %s3582, 49
        %s3584 = scalar_select %p3583, %s3582, 49
        %s3585 = smul.addr %s3584, 2
        %s3586 = smul.addr %s3585, 8
        %s3587 = scalar_lea.vmem %s6, %s3586
      $region56: #{residual_layer.1} parent=51 // pred_fallthru
        _
    $region52: #{residual_layer.1} parent=5 // pred_fallthru
      _
  $region6: #{residual_layer.1} parent=0 // loop_footer
    %s16 = sadd.s32 1, %s12
  $region7: #{residual_layer.1} parent=0 // loop_footer_branch
    %11 = sbr.rel target = $region3
  $region8: #{residual_layer.1} parent=0 // loop_exit
    _

</llo_original>
